<compile_context>
chip_gen: v6e
topology: v6e:2x2x1
jax: 0.10.0
libtpu: 0.0.40
codegen_flags: <defaults>
</compile_context>

<pallas_src>
import math

import jax
import jax.numpy as jnp
from jax.experimental import pallas as pl
from jax.experimental.pallas import tpu as pltpu

# ----------------------------- model configuration (small) -----------------------------
BATCH = 2
IMG = 16
PATCH = 4                    # patch_size (merging_size); shift = PATCH // 2
CHANNELS = 3
DIM = 32
DEPTH = 2
HEADS = 4
DIM_HEAD = 8
MLP_RATIO = 2
HIDDEN = DIM * MLP_RATIO
NUM_CLASSES = 10
NUM_PATCHES = (IMG // PATCH) ** 2            # 16
PATCH_DIM = CHANNELS * 5 * PATCH * PATCH     # 240 (is_pe=True -> 5x channels)
INNER = HEADS * DIM_HEAD                     # 32
SEQ = NUM_PATCHES + 1                        # 17 tokens per image (cls + patches)
LN_EPS = 1e-5


# ------------------------------------ kernel helpers -----------------------------------
def _layernorm(x, g, b):
    mu = jnp.mean(x, axis=-1, keepdims=True)
    var = jnp.mean(jnp.square(x - mu), axis=-1, keepdims=True)
    return (x - mu) * jax.lax.rsqrt(var + LN_EPS) * g + b


def _gelu(x):
    # exact (erf) GELU, matching torch.nn.GELU() default
    return 0.5 * x * (1.0 + jax.lax.erf(x * 0.7071067811865476))


# ------------------------------------ fused kernel -------------------------------------
# One grid step == one image.  Refs:
#   patches_ref : (1, NUM_PATCHES, PATCH_DIM)   per-image patch block
#   pe_ln_ref   : (2, PATCH_DIM)                [gamma; beta] of the patch-embed LayerNorm
#   pe_w_ref    : (PATCH_DIM, DIM)
#   tok_ref     : (SEQ, DIM)    row 0 = cls_token + pos[0]; rows 1.. = pos[1:] + pe_bias
#   lvec_ref    : (DEPTH, 6, DIM)   [attn_ln_g, attn_ln_b, attn_out_b, ffn_ln_g, ffn_ln_b, ffn_out_b]
#   wqkv_ref    : (DEPTH, DIM, 3*INNER)   attention scale folded into the Q columns
#   w1b_ref     : (DEPTH, DIM+1, HIDDEN)  rows 0..DIM-1 = W1, row DIM = b1
#   wow2_ref    : (DEPTH, INNER+HIDDEN, DIM)  rows 0..INNER-1 = Wo, rest = W2
#   hln_ref     : (2, DIM)                 head LayerNorm [gamma; beta]
#   hwb_ref     : (DIM+1, NUM_CLASSES)     rows 0..DIM-1 = head W, row DIM = head b
#   o_ref       : (1, 1, NUM_CLASSES)      per-image logits
def _git_kernel(patches_ref, pe_ln_ref, pe_w_ref, tok_ref,
                lvec_ref, wqkv_ref, w1b_ref, wow2_ref,
                hln_ref, hwb_ref, o_ref):
    f32 = jnp.float32

    # ---- patch embedding: LayerNorm(patch_dim) + Linear(patch_dim, dim) (bias folded) ----
    p = patches_ref[0].astype(f32)                             # (Np, PATCH_DIM)
    pe_ln = pe_ln_ref[...]
    pn = _layernorm(p, pe_ln[0:1, :], pe_ln[1:2, :])
    emb = jnp.dot(pn, pe_w_ref[...], preferred_element_type=f32)   # (Np, DIM)

    # ---- assemble token matrix: [cls+pos0 ; patch_emb + pe_b + pos_rest] -> (SEQ, DIM) ----
    tb = tok_ref[...]                                          # (SEQ, DIM)
    x = jnp.concatenate([tb[0:1, :], emb + tb[1:, :]], axis=0)  # (SEQ, DIM)

    # ---- transformer (static unroll, DEPTH=2; weights resident in VMEM) ----
    for l in range(DEPTH):
        lv = lvec_ref[l]                                       # (6, DIM)

        # --- PreNorm -> fused QKV matmul -> per-head attention -> fused out-proj ---
        xn = _layernorm(x, lv[0:1, :], lv[1:2, :])             # (SEQ, DIM)
        qkv = jnp.dot(xn, wqkv_ref[l],
                      preferred_element_type=f32)              # (SEQ, 3*INNER), Q pre-scaled
        kT = qkv[:, INNER:2 * INNER].T                         # (INNER, SEQ), one transpose/layer

        heads_out = []
        for h in range(HEADS):                                 # static, HEADS = 4
            q_h = qkv[:, h * DIM_HEAD:(h + 1) * DIM_HEAD]      # (SEQ, dh)
            v_h = qkv[:, 2 * INNER + h * DIM_HEAD:2 * INNER + (h + 1) * DIM_HEAD]
            kT_h = kT[h * DIM_HEAD:(h + 1) * DIM_HEAD, :]      # (dh, SEQ)
            dots = jnp.dot(q_h, kT_h, preferred_element_type=f32)   # (SEQ, SEQ)
            dots = dots - jnp.max(dots, axis=-1, keepdims=True)
            e = jnp.exp(dots)
            attn = e * pl.reciprocal(jnp.sum(e, axis=-1, keepdims=True), approx=True)
            heads_out.append(jnp.dot(attn, v_h, preferred_element_type=f32))  # (SEQ, dh)

        ho = jnp.concatenate(heads_out, axis=-1)               # (SEQ, INNER)
        wow2 = wow2_ref[l]                                     # (INNER+HIDDEN, DIM)
        x = x + jnp.dot(ho, wow2[:INNER, :],
                        preferred_element_type=f32) + lv[2:3, :]   # residual + out bias

        # --- PreNorm -> Linear -> GELU -> Linear -> residual ---
        xn2 = _layernorm(x, lv[3:4, :], lv[4:5, :])
        w1b = w1b_ref[l]                                       # (DIM+1, HIDDEN)
        h1 = jnp.dot(xn2, w1b[:DIM, :],
                     preferred_element_type=f32) + w1b[DIM:DIM + 1, :]
        h1 = _gelu(h1)
        x = x + jnp.dot(h1, wow2[INNER:, :],
                        preferred_element_type=f32) + lv[5:6, :]

    # ---- pool='cls' + mlp_head; only (1, NUM_CLASSES) logits leave the kernel ----
    hln = hln_ref[...]
    cn = _layernorm(x[0:1, :], hln[0:1, :], hln[1:2, :])
    hwb = hwb_ref[...]
    logits = jnp.dot(cn, hwb[:DIM, :],
                     preferred_element_type=f32) + hwb[DIM:DIM + 1, :]
    o_ref[0] = logits.astype(o_ref.dtype)


# --------------------------------------- JAX glue ---------------------------------------
def patch_shifting_pe(x, shift):
    """5x-channel PatchShifting: concat [x, lu, ru, lb, rb] along channels."""
    B, C, H, W = x.shape
    xp = jnp.pad(x, ((0, 0), (0, 0), (shift, shift), (shift, shift)))
    s2 = 2 * shift
    x_lu = xp[:, :, :H, :W]
    x_ru = xp[:, :, :H, s2:s2 + W]
    x_lb = xp[:, :, s2:s2 + H, :W]
    x_rb = xp[:, :, s2:s2 + H, s2:s2 + W]
    return jnp.concatenate([x, x_lu, x_ru, x_lb, x_rb], axis=1)   # (B, 5C, H, W)


def to_patches(x, p):
    """Rearrange 'b c (h p1) (w p2) -> b (h w) (p1 p2 c)'."""
    B, C, H, W = x.shape
    h, w = H // p, W // p
    x = x.reshape(B, C, h, p, w, p)
    x = jnp.transpose(x, (0, 2, 4, 3, 5, 1))                      # (B, h, w, p1, p2, C)
    return x.reshape(B, h * w, p * p * C)


def xavier_normal(key, fan_in, fan_out):
    std = math.sqrt(2.0 / (fan_in + fan_out))
    return jax.random.normal(key, (fan_in, fan_out), jnp.float32) * std


def init_params(key):
    keys = jax.random.split(key, 8 + 6 * DEPTH)
    ki = iter(keys)
    p = {
        # shifted patch merging (LayerNorm + Linear on patch_dim)
        "pe_ln_g": jnp.ones((1, PATCH_DIM), jnp.float32),
        "pe_ln_b": jnp.zeros((1, PATCH_DIM), jnp.float32),
        "pe_w": xavier_normal(next(ki), PATCH_DIM, DIM),
        "pe_b": jnp.zeros((1, DIM), jnp.float32),
        # tokens / positions
        "cls_token": jax.random.normal(next(ki), (1, 1, DIM), jnp.float32),
        "pos_emb": jax.random.normal(next(ki), (1, NUM_PATCHES + 1, DIM), jnp.float32),
        # head
        "head_ln_g": jnp.ones((1, DIM), jnp.float32),
        "head_ln_b": jnp.zeros((1, DIM), jnp.float32),
        "head_w": xavier_normal(next(ki), DIM, NUM_CLASSES),
        "head_b": jnp.zeros((1, NUM_CLASSES), jnp.float32),
        "layers": [],
    }
    for _ in range(DEPTH):
        p["layers"].append({
            "attn_ln_g": jnp.ones((1, DIM), jnp.float32),
            "attn_ln_b": jnp.zeros((1, DIM), jnp.float32),
            "wqkv": xavier_normal(next(ki), DIM, 3 * INNER),      # bias=False
            "wo": xavier_normal(next(ki), INNER, DIM),
            "bo": jnp.zeros((1, DIM), jnp.float32),
            "ffn_ln_g": jnp.ones((1, DIM), jnp.float32),
            "ffn_ln_b": jnp.zeros((1, DIM), jnp.float32),
            "w1": xavier_normal(next(ki), DIM, HIDDEN),
            "b1": jnp.zeros((1, HIDDEN), jnp.float32),
            "w2": xavier_normal(next(ki), HIDDEN, DIM),
            "b2": jnp.zeros((1, DIM), jnp.float32),
        })
    return p


def pack_params(p):
    """Stack per-layer params along DEPTH; fold attn scale into Q; merge small vectors."""
    scale = DIM_HEAD ** -0.5
    layer_vecs, wqkv_s, w1b_s, wo_w2_s = [], [], [], []
    for lyr in p["layers"]:
        wqkv = lyr["wqkv"]                                        # (DIM, 3*INNER)
        wqkv = jnp.concatenate([wqkv[:, :INNER] * scale, wqkv[:, INNER:]], axis=1)
        wqkv_s.append(wqkv)
        w1b_s.append(jnp.concatenate([lyr["w1"], lyr["b1"]], axis=0))    # (DIM+1, HIDDEN)
        wo_w2_s.append(jnp.concatenate([lyr["wo"], lyr["w2"]], axis=0))  # (INNER+HIDDEN, DIM)
        layer_vecs.append(jnp.stack([
            lyr["attn_ln_g"][0], lyr["attn_ln_b"][0], lyr["bo"][0],
            lyr["ffn_ln_g"][0], lyr["ffn_ln_b"][0], lyr["b2"][0]], axis=0))  # (6, DIM)

    cls_row = p["cls_token"][0, 0] + p["pos_emb"][0, 0]           # (DIM,)
    rest = p["pos_emb"][0, 1:] + p["pe_b"]                        # (Np, DIM), pe bias folded
    return {
        "pe_ln": jnp.stack([p["pe_ln_g"][0], p["pe_ln_b"][0]], axis=0),     # (2, PATCH_DIM)
        "pe_w": p["pe_w"],                                                  # (PATCH_DIM, DIM)
        "tok_bias": jnp.concatenate([cls_row[None, :], rest], axis=0),      # (SEQ, DIM)
        "layer_vecs": jnp.stack(layer_vecs, axis=0),                        # (DEPTH, 6, DIM)
        "wqkv": jnp.stack(wqkv_s, axis=0),                                  # (DEPTH, DIM, 3*INNER)
        "w1b": jnp.stack(w1b_s, axis=0),                                    # (DEPTH, DIM+1, HIDDEN)
        "wo_w2": jnp.stack(wo_w2_s, axis=0),                                # (DEPTH, INNER+HIDDEN, DIM)
        "head_ln": jnp.stack([p["head_ln_g"][0], p["head_ln_b"][0]], axis=0),   # (2, DIM)
        "head_wb": jnp.concatenate([p["head_w"], p["head_b"]], axis=0),     # (DIM+1, NUM_CLASSES)
    }


def _resident_spec(shape):
    """Full-shape block whose index_map always returns block 0 -> stays VMEM-resident."""
    n = len(shape)
    return pl.BlockSpec(shape, lambda b, n=n: (0,) * n)


def git_forward(img, pp):
    # --- to_patch_embedding pre-processing (pad/shift/concat + 6-D rearrange) in XLA ---
    # TODO(synk): patch-shift/rearrange kept as cheap XLA index ops outside the Pallas kernel.
    shift = PATCH // 2
    x = patch_shifting_pe(img, shift)                             # (B, 15, H, W)
    patches = to_patches(x, PATCH)                                # (B, Np, PATCH_DIM)

    out = pl.pallas_call(
        _git_kernel,
        out_shape=jax.ShapeDtypeStruct((BATCH, 1, NUM_CLASSES), jnp.float32),
        grid=(BATCH,),
        in_specs=[
            pl.BlockSpec((1, NUM_PATCHES, PATCH_DIM), lambda b: (b, 0, 0)),
            _resident_spec((2, PATCH_DIM)),
            _resident_spec((PATCH_DIM, DIM)),
            _resident_spec((SEQ, DIM)),
            _resident_spec((DEPTH, 6, DIM)),
            _resident_spec((DEPTH, DIM, 3 * INNER)),
            _resident_spec((DEPTH, DIM + 1, HIDDEN)),
            _resident_spec((DEPTH, INNER + HIDDEN, DIM)),
            _resident_spec((2, DIM)),
            _resident_spec((DIM + 1, NUM_CLASSES)),
        ],
        out_specs=pl.BlockSpec((1, 1, NUM_CLASSES), lambda b: (b, 0, 0)),
        compiler_params=pltpu.CompilerParams(
            dimension_semantics=("parallel",),
            vmem_limit_bytes=32 * 1024 * 1024),
    )(patches, pp["pe_ln"], pp["pe_w"], pp["tok_bias"],
      pp["layer_vecs"], pp["wqkv"], pp["w1b"], pp["wo_w2"],
      pp["head_ln"], pp["head_wb"])
    return out[:, 0, :]                                           # (B, NUM_CLASSES)


if __name__ == "__main__":
    key = jax.random.PRNGKey(0)
    pkey, xkey = jax.random.split(key)
    params = init_params(pkey)
    packed = pack_params(params)
    img = jax.random.normal(xkey, (BATCH, CHANNELS, IMG, IMG), jnp.float32)  # NCHW

    out = jax.jit(git_forward)(img, packed)
    out = jax.block_until_ready(out)
    assert out.shape == (BATCH, NUM_CLASSES), out.shape
    assert bool(jnp.all(jnp.isfinite(out)))
    print("KERNEL_OK")
</pallas_src>

<mosaic_0001>
module attributes {stable_mosaic.version = 11 : i64} {
  func.func @_git_kernel(%arg0: i32, %arg1: memref<1x16x240xf32, #tpu.memory_space<vmem>>, %arg2: memref<2x240xf32, #tpu.memory_space<vmem>>, %arg3: memref<240x32xf32, #tpu.memory_space<vmem>>, %arg4: memref<17x32xf32, #tpu.memory_space<vmem>>, %arg5: memref<2x6x32xf32, #tpu.memory_space<vmem>>, %arg6: memref<2x32x96xf32, #tpu.memory_space<vmem>>, %arg7: memref<2x33x64xf32, #tpu.memory_space<vmem>>, %arg8: memref<2x96x32xf32, #tpu.memory_space<vmem>>, %arg9: memref<2x32xf32, #tpu.memory_space<vmem>>, %arg10: memref<33x10xf32, #tpu.memory_space<vmem>>, %arg11: memref<1x1x10xf32, #tpu.memory_space<vmem>>) attributes {dimension_semantics = [#tpu.dimension_semantics<parallel>], iteration_bounds = array<i64: 2>, scalar_prefetch = 0 : i64, scratch_operands = 0 : i64, tpu.core_type = #tpu.core_type<tc>, window_params = [{transform_indices = @transform_0, window_bounds = array<i64: 1, 16, 240>}, {pipeline_mode = #tpu.pipeline_mode<synchronous>, transform_indices = @transform_1, window_bounds = array<i64: 2, 240>}, {pipeline_mode = #tpu.pipeline_mode<synchronous>, transform_indices = @transform_2, window_bounds = array<i64: 240, 32>}, {pipeline_mode = #tpu.pipeline_mode<synchronous>, transform_indices = @transform_3, window_bounds = array<i64: 17, 32>}, {pipeline_mode = #tpu.pipeline_mode<synchronous>, transform_indices = @transform_4, window_bounds = array<i64: 2, 6, 32>}, {pipeline_mode = #tpu.pipeline_mode<synchronous>, transform_indices = @transform_5, window_bounds = array<i64: 2, 32, 96>}, {pipeline_mode = #tpu.pipeline_mode<synchronous>, transform_indices = @transform_6, window_bounds = array<i64: 2, 33, 64>}, {pipeline_mode = #tpu.pipeline_mode<synchronous>, transform_indices = @transform_7, window_bounds = array<i64: 2, 96, 32>}, {pipeline_mode = #tpu.pipeline_mode<synchronous>, transform_indices = @transform_8, window_bounds = array<i64: 2, 32>}, {pipeline_mode = #tpu.pipeline_mode<synchronous>, transform_indices = @transform_9, window_bounds = array<i64: 33, 10>}, {transform_indices = @transform_10, window_bounds = array<i64: 1, 1, 10>}]} {
    %c0 = arith.constant 0 : index
    %c0_0 = arith.constant 0 : index
    %c0_1 = arith.constant 0 : index
    %0 = vector.load %arg1[%c0, %c0_0, %c0_1] : memref<1x16x240xf32, #tpu.memory_space<vmem>>, vector<1x16x240xf32>
    %1 = vector.shape_cast %0 : vector<1x16x240xf32> to vector<16x240xf32>
    %c0_2 = arith.constant 0 : index
    %c0_3 = arith.constant 0 : index
    %2 = vector.load %arg2[%c0_2, %c0_3] : memref<2x240xf32, #tpu.memory_space<vmem>>, vector<2x240xf32>
    %3 = vector.extract_strided_slice %2 {offsets = [0, 0], sizes = [1, 240], strides = [1, 1]} : vector<2x240xf32> to vector<1x240xf32>
    %4 = vector.extract_strided_slice %2 {offsets = [1, 0], sizes = [1, 240], strides = [1, 1]} : vector<2x240xf32> to vector<1x240xf32>
    %cst = arith.constant dense<0.000000e+00> : vector<16xf32>
    %5 = vector.multi_reduction <add>, %1, %cst [1] : vector<16x240xf32> to vector<16xf32>
    %6 = vector.shape_cast %5 : vector<16xf32> to vector<16x1xf32>
    %cst_4 = arith.constant 2.400000e+02 : f32
    %7 = vector.broadcast %cst_4 : f32 to vector<16x1xf32>
    %8 = arith.divf %6, %7 : vector<16x1xf32>
    %9 = vector.broadcast %8 : vector<16x1xf32> to vector<16x240xf32>
    %10 = arith.subf %1, %9 : vector<16x240xf32>
    %11 = arith.mulf %10, %10 : vector<16x240xf32>
    %cst_5 = arith.constant dense<0.000000e+00> : vector<16xf32>
    %12 = vector.multi_reduction <add>, %11, %cst_5 [1] : vector<16x240xf32> to vector<16xf32>
    %13 = vector.shape_cast %12 : vector<16xf32> to vector<16x1xf32>
    %cst_6 = arith.constant 2.400000e+02 : f32
    %14 = vector.broadcast %cst_6 : f32 to vector<16x1xf32>
    %15 = arith.divf %13, %14 : vector<16x1xf32>
    %16 = vector.broadcast %8 : vector<16x1xf32> to vector<16x240xf32>
    %17 = arith.subf %1, %16 : vector<16x240xf32>
    %cst_7 = arith.constant 9.99999974E-6 : f32
    %18 = vector.broadcast %cst_7 : f32 to vector<16x1xf32>
    %19 = arith.addf %15, %18 : vector<16x1xf32>
    %20 = math.rsqrt %19 : vector<16x1xf32>
    %21 = vector.broadcast %20 : vector<16x1xf32> to vector<16x240xf32>
    %22 = arith.mulf %17, %21 : vector<16x240xf32>
    %23 = vector.broadcast %3 : vector<1x240xf32> to vector<16x240xf32>
    %24 = arith.mulf %22, %23 : vector<16x240xf32>
    %25 = vector.broadcast %4 : vector<1x240xf32> to vector<16x240xf32>
    %26 = arith.addf %24, %25 : vector<16x240xf32>
    %c0_8 = arith.constant 0 : index
    %c0_9 = arith.constant 0 : index
    %27 = vector.load %arg3[%c0_8, %c0_9] : memref<240x32xf32, #tpu.memory_space<vmem>>, vector<240x32xf32>
    %cst_10 = arith.constant dense<0.000000e+00> : vector<16x32xf32>
    %28 = tpu.matmul %26, %27, %cst_10 {dimension_numbers = #tpu.dot_dimension_numbers<[1], [0], [0], [1], [0, 0, 1, 1], [], []>} : vector<16x240xf32>, vector<240x32xf32>, vector<16x32xf32> -> vector<16x32xf32>
    %c0_11 = arith.constant 0 : index
    %c0_12 = arith.constant 0 : index
    %29 = vector.load %arg4[%c0_11, %c0_12] : memref<17x32xf32, #tpu.memory_space<vmem>>, vector<17x32xf32>
    %30 = vector.extract_strided_slice %29 {offsets = [0, 0], sizes = [1, 32], strides = [1, 1]} : vector<17x32xf32> to vector<1x32xf32>
    %31 = vector.extract_strided_slice %29 {offsets = [1, 0], sizes = [16, 32], strides = [1, 1]} : vector<17x32xf32> to vector<16x32xf32>
    %32 = arith.addf %28, %31 : vector<16x32xf32>
    %33 = tpu.concatenate %30, %32 in 0 : vector<1x32xf32>, vector<16x32xf32> -> vector<17x32xf32>
    %c0_13 = arith.constant 0 : index
    %c0_14 = arith.constant 0 : index
    %c0_15 = arith.constant 0 : index
    %34 = vector.load %arg5[%c0_13, %c0_14, %c0_15] : memref<2x6x32xf32, #tpu.memory_space<vmem>>, vector<1x6x32xf32>
    %35 = vector.shape_cast %34 : vector<1x6x32xf32> to vector<6x32xf32>
    %36 = vector.extract_strided_slice %35 {offsets = [0, 0], sizes = [1, 32], strides = [1, 1]} : vector<6x32xf32> to vector<1x32xf32>
    %37 = vector.extract_strided_slice %35 {offsets = [1, 0], sizes = [1, 32], strides = [1, 1]} : vector<6x32xf32> to vector<1x32xf32>
    %cst_16 = arith.constant dense<0.000000e+00> : vector<17xf32>
    %38 = vector.multi_reduction <add>, %33, %cst_16 [1] : vector<17x32xf32> to vector<17xf32>
    %39 = vector.shape_cast %38 : vector<17xf32> to vector<17x1xf32>
    %cst_17 = arith.constant 3.200000e+01 : f32
    %40 = vector.broadcast %cst_17 : f32 to vector<17x1xf32>
    %41 = arith.divf %39, %40 : vector<17x1xf32>
    %42 = vector.broadcast %41 : vector<17x1xf32> to vector<17x32xf32>
    %43 = arith.subf %33, %42 : vector<17x32xf32>
    %44 = arith.mulf %43, %43 : vector<17x32xf32>
    %cst_18 = arith.constant dense<0.000000e+00> : vector<17xf32>
    %45 = vector.multi_reduction <add>, %44, %cst_18 [1] : vector<17x32xf32> to vector<17xf32>
    %46 = vector.shape_cast %45 : vector<17xf32> to vector<17x1xf32>
    %cst_19 = arith.constant 3.200000e+01 : f32
    %47 = vector.broadcast %cst_19 : f32 to vector<17x1xf32>
    %48 = arith.divf %46, %47 : vector<17x1xf32>
    %49 = vector.broadcast %41 : vector<17x1xf32> to vector<17x32xf32>
    %50 = arith.subf %33, %49 : vector<17x32xf32>
    %cst_20 = arith.constant 9.99999974E-6 : f32
    %51 = vector.broadcast %cst_20 : f32 to vector<17x1xf32>
    %52 = arith.addf %48, %51 : vector<17x1xf32>
    %53 = math.rsqrt %52 : vector<17x1xf32>
    %54 = vector.broadcast %53 : vector<17x1xf32> to vector<17x32xf32>
    %55 = arith.mulf %50, %54 : vector<17x32xf32>
    %56 = vector.broadcast %36 : vector<1x32xf32> to vector<17x32xf32>
    %57 = arith.mulf %55, %56 : vector<17x32xf32>
    %58 = vector.broadcast %37 : vector<1x32xf32> to vector<17x32xf32>
    %59 = arith.addf %57, %58 : vector<17x32xf32>
    %c0_21 = arith.constant 0 : index
    %c0_22 = arith.constant 0 : index
    %c0_23 = arith.constant 0 : index
    %60 = vector.load %arg6[%c0_21, %c0_22, %c0_23] : memref<2x32x96xf32, #tpu.memory_space<vmem>>, vector<1x32x96xf32>
    %61 = vector.shape_cast %60 : vector<1x32x96xf32> to vector<32x96xf32>
    %cst_24 = arith.constant dense<0.000000e+00> : vector<17x96xf32>
    %62 = tpu.matmul %59, %61, %cst_24 {dimension_numbers = #tpu.dot_dimension_numbers<[1], [0], [0], [1], [0, 0, 1, 1], [], []>} : vector<17x32xf32>, vector<32x96xf32>, vector<17x96xf32> -> vector<17x96xf32>
    %63 = vector.extract_strided_slice %62 {offsets = [0, 32], sizes = [17, 32], strides = [1, 1]} : vector<17x96xf32> to vector<17x32xf32>
    %64 = tpu.transpose %63, [1, 0] : vector<17x32xf32> -> vector<32x17xf32>
    %65 = vector.extract_strided_slice %62 {offsets = [0, 0], sizes = [17, 8], strides = [1, 1]} : vector<17x96xf32> to vector<17x8xf32>
    %66 = vector.extract_strided_slice %62 {offsets = [0, 64], sizes = [17, 8], strides = [1, 1]} : vector<17x96xf32> to vector<17x8xf32>
    %67 = vector.extract_strided_slice %64 {offsets = [0, 0], sizes = [8, 17], strides = [1, 1]} : vector<32x17xf32> to vector<8x17xf32>
    %cst_25 = arith.constant dense<0.000000e+00> : vector<17x17xf32>
    %68 = tpu.matmul %65, %67, %cst_25 {dimension_numbers = #tpu.dot_dimension_numbers<[1], [0], [0], [1], [0, 0, 1, 1], [], []>} : vector<17x8xf32>, vector<8x17xf32>, vector<17x17xf32> -> vector<17x17xf32>
    %cst_26 = arith.constant dense<0xFF800000> : vector<17xf32>
    %69 = vector.multi_reduction <maximumf>, %68, %cst_26 [1] : vector<17x17xf32> to vector<17xf32>
    %70 = vector.shape_cast %69 : vector<17xf32> to vector<17x1xf32>
    %71 = vector.broadcast %70 : vector<17x1xf32> to vector<17x17xf32>
    %72 = arith.subf %68, %71 : vector<17x17xf32>
    %73 = math.exp %72 : vector<17x17xf32>
    %cst_27 = arith.constant dense<0.000000e+00> : vector<17xf32>
    %74 = vector.multi_reduction <add>, %73, %cst_27 [1] : vector<17x17xf32> to vector<17xf32>
    %75 = vector.shape_cast %74 : vector<17xf32> to vector<17x1xf32>
    %76 = tpu.reciprocal %75 {approx = true} : vector<17x1xf32> -> vector<17x1xf32>
    %77 = vector.broadcast %76 : vector<17x1xf32> to vector<17x17xf32>
    %78 = arith.mulf %73, %77 : vector<17x17xf32>
    %cst_28 = arith.constant dense<0.000000e+00> : vector<17x8xf32>
    %79 = tpu.matmul %78, %66, %cst_28 {dimension_numbers = #tpu.dot_dimension_numbers<[1], [0], [0], [1], [0, 0, 1, 1], [], []>} : vector<17x17xf32>, vector<17x8xf32>, vector<17x8xf32> -> vector<17x8xf32>
    %80 = vector.extract_strided_slice %62 {offsets = [0, 8], sizes = [17, 8], strides = [1, 1]} : vector<17x96xf32> to vector<17x8xf32>
    %81 = vector.extract_strided_slice %62 {offsets = [0, 72], sizes = [17, 8], strides = [1, 1]} : vector<17x96xf32> to vector<17x8xf32>
    %82 = vector.extract_strided_slice %64 {offsets = [8, 0], sizes = [8, 17], strides = [1, 1]} : vector<32x17xf32> to vector<8x17xf32>
    %cst_29 = arith.constant dense<0.000000e+00> : vector<17x17xf32>
    %83 = tpu.matmul %80, %82, %cst_29 {dimension_numbers = #tpu.dot_dimension_numbers<[1], [0], [0], [1], [0, 0, 1, 1], [], []>} : vector<17x8xf32>, vector<8x17xf32>, vector<17x17xf32> -> vector<17x17xf32>
    %cst_30 = arith.constant dense<0xFF800000> : vector<17xf32>
    %84 = vector.multi_reduction <maximumf>, %83, %cst_30 [1] : vector<17x17xf32> to vector<17xf32>
    %85 = vector.shape_cast %84 : vector<17xf32> to vector<17x1xf32>
    %86 = vector.broadcast %85 : vector<17x1xf32> to vector<17x17xf32>
    %87 = arith.subf %83, %86 : vector<17x17xf32>
    %88 = math.exp %87 : vector<17x17xf32>
    %cst_31 = arith.constant dense<0.000000e+00> : vector<17xf32>
    %89 = vector.multi_reduction <add>, %88, %cst_31 [1] : vector<17x17xf32> to vector<17xf32>
    %90 = vector.shape_cast %89 : vector<17xf32> to vector<17x1xf32>
    %91 = tpu.reciprocal %90 {approx = true} : vector<17x1xf32> -> vector<17x1xf32>
    %92 = vector.broadcast %91 : vector<17x1xf32> to vector<17x17xf32>
    %93 = arith.mulf %88, %92 : vector<17x17xf32>
    %cst_32 = arith.constant dense<0.000000e+00> : vector<17x8xf32>
    %94 = tpu.matmul %93, %81, %cst_32 {dimension_numbers = #tpu.dot_dimension_numbers<[1], [0], [0], [1], [0, 0, 1, 1], [], []>} : vector<17x17xf32>, vector<17x8xf32>, vector<17x8xf32> -> vector<17x8xf32>
    %95 = vector.extract_strided_slice %62 {offsets = [0, 16], sizes = [17, 8], strides = [1, 1]} : vector<17x96xf32> to vector<17x8xf32>
    %96 = vector.extract_strided_slice %62 {offsets = [0, 80], sizes = [17, 8], strides = [1, 1]} : vector<17x96xf32> to vector<17x8xf32>
    %97 = vector.extract_strided_slice %64 {offsets = [16, 0], sizes = [8, 17], strides = [1, 1]} : vector<32x17xf32> to vector<8x17xf32>
    %cst_33 = arith.constant dense<0.000000e+00> : vector<17x17xf32>
    %98 = tpu.matmul %95, %97, %cst_33 {dimension_numbers = #tpu.dot_dimension_numbers<[1], [0], [0], [1], [0, 0, 1, 1], [], []>} : vector<17x8xf32>, vector<8x17xf32>, vector<17x17xf32> -> vector<17x17xf32>
    %cst_34 = arith.constant dense<0xFF800000> : vector<17xf32>
    %99 = vector.multi_reduction <maximumf>, %98, %cst_34 [1] : vector<17x17xf32> to vector<17xf32>
    %100 = vector.shape_cast %99 : vector<17xf32> to vector<17x1xf32>
    %101 = vector.broadcast %100 : vector<17x1xf32> to vector<17x17xf32>
    %102 = arith.subf %98, %101 : vector<17x17xf32>
    %103 = math.exp %102 : vector<17x17xf32>
    %cst_35 = arith.constant dense<0.000000e+00> : vector<17xf32>
    %104 = vector.multi_reduction <add>, %103, %cst_35 [1] : vector<17x17xf32> to vector<17xf32>
    %105 = vector.shape_cast %104 : vector<17xf32> to vector<17x1xf32>
    %106 = tpu.reciprocal %105 {approx = true} : vector<17x1xf32> -> vector<17x1xf32>
    %107 = vector.broadcast %106 : vector<17x1xf32> to vector<17x17xf32>
    %108 = arith.mulf %103, %107 : vector<17x17xf32>
    %cst_36 = arith.constant dense<0.000000e+00> : vector<17x8xf32>
    %109 = tpu.matmul %108, %96, %cst_36 {dimension_numbers = #tpu.dot_dimension_numbers<[1], [0], [0], [1], [0, 0, 1, 1], [], []>} : vector<17x17xf32>, vector<17x8xf32>, vector<17x8xf32> -> vector<17x8xf32>
    %110 = vector.extract_strided_slice %62 {offsets = [0, 24], sizes = [17, 8], strides = [1, 1]} : vector<17x96xf32> to vector<17x8xf32>
    %111 = vector.extract_strided_slice %62 {offsets = [0, 88], sizes = [17, 8], strides = [1, 1]} : vector<17x96xf32> to vector<17x8xf32>
    %112 = vector.extract_strided_slice %64 {offsets = [24, 0], sizes = [8, 17], strides = [1, 1]} : vector<32x17xf32> to vector<8x17xf32>
    %cst_37 = arith.constant dense<0.000000e+00> : vector<17x17xf32>
    %113 = tpu.matmul %110, %112, %cst_37 {dimension_numbers = #tpu.dot_dimension_numbers<[1], [0], [0], [1], [0, 0, 1, 1], [], []>} : vector<17x8xf32>, vector<8x17xf32>, vector<17x17xf32> -> vector<17x17xf32>
    %cst_38 = arith.constant dense<0xFF800000> : vector<17xf32>
    %114 = vector.multi_reduction <maximumf>, %113, %cst_38 [1] : vector<17x17xf32> to vector<17xf32>
    %115 = vector.shape_cast %114 : vector<17xf32> to vector<17x1xf32>
    %116 = vector.broadcast %115 : vector<17x1xf32> to vector<17x17xf32>
    %117 = arith.subf %113, %116 : vector<17x17xf32>
    %118 = math.exp %117 : vector<17x17xf32>
    %cst_39 = arith.constant dense<0.000000e+00> : vector<17xf32>
    %119 = vector.multi_reduction <add>, %118, %cst_39 [1] : vector<17x17xf32> to vector<17xf32>
    %120 = vector.shape_cast %119 : vector<17xf32> to vector<17x1xf32>
    %121 = tpu.reciprocal %120 {approx = true} : vector<17x1xf32> -> vector<17x1xf32>
    %122 = vector.broadcast %121 : vector<17x1xf32> to vector<17x17xf32>
    %123 = arith.mulf %118, %122 : vector<17x17xf32>
    %cst_40 = arith.constant dense<0.000000e+00> : vector<17x8xf32>
    %124 = tpu.matmul %123, %111, %cst_40 {dimension_numbers = #tpu.dot_dimension_numbers<[1], [0], [0], [1], [0, 0, 1, 1], [], []>} : vector<17x17xf32>, vector<17x8xf32>, vector<17x8xf32> -> vector<17x8xf32>
    %125 = tpu.concatenate %79, %94, %109, %124 in 1 : vector<17x8xf32>, vector<17x8xf32>, vector<17x8xf32>, vector<17x8xf32> -> vector<17x32xf32>
    %c0_41 = arith.constant 0 : index
    %c0_42 = arith.constant 0 : index
    %c0_43 = arith.constant 0 : index
    %126 = vector.load %arg8[%c0_41, %c0_42, %c0_43] : memref<2x96x32xf32, #tpu.memory_space<vmem>>, vector<1x96x32xf32>
    %127 = vector.shape_cast %126 : vector<1x96x32xf32> to vector<96x32xf32>
    %128 = vector.extract_strided_slice %127 {offsets = [0, 0], sizes = [32, 32], strides = [1, 1]} : vector<96x32xf32> to vector<32x32xf32>
    %cst_44 = arith.constant dense<0.000000e+00> : vector<17x32xf32>
    %129 = tpu.matmul %125, %128, %cst_44 {dimension_numbers = #tpu.dot_dimension_numbers<[1], [0], [0], [1], [0, 0, 1, 1], [], []>} : vector<17x32xf32>, vector<32x32xf32>, vector<17x32xf32> -> vector<17x32xf32>
    %130 = arith.addf %33, %129 : vector<17x32xf32>
    %131 = vector.extract_strided_slice %35 {offsets = [2, 0], sizes = [1, 32], strides = [1, 1]} : vector<6x32xf32> to vector<1x32xf32>
    %132 = vector.broadcast %131 : vector<1x32xf32> to vector<17x32xf32>
    %133 = arith.addf %130, %132 : vector<17x32xf32>
    %134 = vector.extract_strided_slice %35 {offsets = [3, 0], sizes = [1, 32], strides = [1, 1]} : vector<6x32xf32> to vector<1x32xf32>
    %135 = vector.extract_strided_slice %35 {offsets = [4, 0], sizes = [1, 32], strides = [1, 1]} : vector<6x32xf32> to vector<1x32xf32>
    %cst_45 = arith.constant dense<0.000000e+00> : vector<17xf32>
    %136 = vector.multi_reduction <add>, %133, %cst_45 [1] : vector<17x32xf32> to vector<17xf32>
    %137 = vector.shape_cast %136 : vector<17xf32> to vector<17x1xf32>
    %cst_46 = arith.constant 3.200000e+01 : f32
    %138 = vector.broadcast %cst_46 : f32 to vector<17x1xf32>
    %139 = arith.divf %137, %138 : vector<17x1xf32>
    %140 = vector.broadcast %139 : vector<17x1xf32> to vector<17x32xf32>
    %141 = arith.subf %133, %140 : vector<17x32xf32>
    %142 = arith.mulf %141, %141 : vector<17x32xf32>
    %cst_47 = arith.constant dense<0.000000e+00> : vector<17xf32>
    %143 = vector.multi_reduction <add>, %142, %cst_47 [1] : vector<17x32xf32> to vector<17xf32>
    %144 = vector.shape_cast %143 : vector<17xf32> to vector<17x1xf32>
    %cst_48 = arith.constant 3.200000e+01 : f32
    %145 = vector.broadcast %cst_48 : f32 to vector<17x1xf32>
    %146 = arith.divf %144, %145 : vector<17x1xf32>
    %147 = vector.broadcast %139 : vector<17x1xf32> to vector<17x32xf32>
    %148 = arith.subf %133, %147 : vector<17x32xf32>
    %cst_49 = arith.constant 9.99999974E-6 : f32
    %149 = vector.broadcast %cst_49 : f32 to vector<17x1xf32>
    %150 = arith.addf %146, %149 : vector<17x1xf32>
    %151 = math.rsqrt %150 : vector<17x1xf32>
    %152 = vector.broadcast %151 : vector<17x1xf32> to vector<17x32xf32>
    %153 = arith.mulf %148, %152 : vector<17x32xf32>
    %154 = vector.broadcast %134 : vector<1x32xf32> to vector<17x32xf32>
    %155 = arith.mulf %153, %154 : vector<17x32xf32>
    %156 = vector.broadcast %135 : vector<1x32xf32> to vector<17x32xf32>
    %157 = arith.addf %155, %156 : vector<17x32xf32>
    %c0_50 = arith.constant 0 : index
    %c0_51 = arith.constant 0 : index
    %c0_52 = arith.constant 0 : index
    %158 = vector.load %arg7[%c0_50, %c0_51, %c0_52] : memref<2x33x64xf32, #tpu.memory_space<vmem>>, vector<1x33x64xf32>
    %159 = vector.shape_cast %158 : vector<1x33x64xf32> to vector<33x64xf32>
    %160 = vector.extract_strided_slice %159 {offsets = [0, 0], sizes = [32, 64], strides = [1, 1]} : vector<33x64xf32> to vector<32x64xf32>
    %cst_53 = arith.constant dense<0.000000e+00> : vector<17x64xf32>
    %161 = tpu.matmul %157, %160, %cst_53 {dimension_numbers = #tpu.dot_dimension_numbers<[1], [0], [0], [1], [0, 0, 1, 1], [], []>} : vector<17x32xf32>, vector<32x64xf32>, vector<17x64xf32> -> vector<17x64xf32>
    %162 = vector.extract_strided_slice %159 {offsets = [32, 0], sizes = [1, 64], strides = [1, 1]} : vector<33x64xf32> to vector<1x64xf32>
    %163 = vector.broadcast %162 : vector<1x64xf32> to vector<17x64xf32>
    %164 = arith.addf %161, %163 : vector<17x64xf32>
    %cst_54 = arith.constant 5.000000e-01 : f32
    %165 = vector.broadcast %cst_54 : f32 to vector<17x64xf32>
    %166 = arith.mulf %165, %164 : vector<17x64xf32>
    %cst_55 = arith.constant 0.707106769 : f32
    %167 = vector.broadcast %cst_55 : f32 to vector<17x64xf32>
    %168 = arith.mulf %164, %167 : vector<17x64xf32>
    %169 = math.erf %168 : vector<17x64xf32>
    %cst_56 = arith.constant 1.000000e+00 : f32
    %170 = vector.broadcast %cst_56 : f32 to vector<17x64xf32>
    %171 = arith.addf %170, %169 : vector<17x64xf32>
    %172 = arith.mulf %166, %171 : vector<17x64xf32>
    %173 = vector.extract_strided_slice %127 {offsets = [32, 0], sizes = [64, 32], strides = [1, 1]} : vector<96x32xf32> to vector<64x32xf32>
    %cst_57 = arith.constant dense<0.000000e+00> : vector<17x32xf32>
    %174 = tpu.matmul %172, %173, %cst_57 {dimension_numbers = #tpu.dot_dimension_numbers<[1], [0], [0], [1], [0, 0, 1, 1], [], []>} : vector<17x64xf32>, vector<64x32xf32>, vector<17x32xf32> -> vector<17x32xf32>
    %175 = arith.addf %133, %174 : vector<17x32xf32>
    %176 = vector.extract_strided_slice %35 {offsets = [5, 0], sizes = [1, 32], strides = [1, 1]} : vector<6x32xf32> to vector<1x32xf32>
    %177 = vector.broadcast %176 : vector<1x32xf32> to vector<17x32xf32>
    %178 = arith.addf %175, %177 : vector<17x32xf32>
    %c1 = arith.constant 1 : index
    %c0_58 = arith.constant 0 : index
    %c0_59 = arith.constant 0 : index
    %179 = vector.load %arg5[%c1, %c0_58, %c0_59] : memref<2x6x32xf32, #tpu.memory_space<vmem>>, vector<1x6x32xf32>
    %180 = vector.shape_cast %179 : vector<1x6x32xf32> to vector<6x32xf32>
    %181 = vector.extract_strided_slice %180 {offsets = [0, 0], sizes = [1, 32], strides = [1, 1]} : vector<6x32xf32> to vector<1x32xf32>
    %182 = vector.extract_strided_slice %180 {offsets = [1, 0], sizes = [1, 32], strides = [1, 1]} : vector<6x32xf32> to vector<1x32xf32>
    %cst_60 = arith.constant dense<0.000000e+00> : vector<17xf32>
    %183 = vector.multi_reduction <add>, %178, %cst_60 [1] : vector<17x32xf32> to vector<17xf32>
    %184 = vector.shape_cast %183 : vector<17xf32> to vector<17x1xf32>
    %cst_61 = arith.constant 3.200000e+01 : f32
    %185 = vector.broadcast %cst_61 : f32 to vector<17x1xf32>
    %186 = arith.divf %184, %185 : vector<17x1xf32>
    %187 = vector.broadcast %186 : vector<17x1xf32> to vector<17x32xf32>
    %188 = arith.subf %178, %187 : vector<17x32xf32>
    %189 = arith.mulf %188, %188 : vector<17x32xf32>
    %cst_62 = arith.constant dense<0.000000e+00> : vector<17xf32>
    %190 = vector.multi_reduction <add>, %189, %cst_62 [1] : vector<17x32xf32> to vector<17xf32>
    %191 = vector.shape_cast %190 : vector<17xf32> to vector<17x1xf32>
    %cst_63 = arith.constant 3.200000e+01 : f32
    %192 = vector.broadcast %cst_63 : f32 to vector<17x1xf32>
    %193 = arith.divf %191, %192 : vector<17x1xf32>
    %194 = vector.broadcast %186 : vector<17x1xf32> to vector<17x32xf32>
    %195 = arith.subf %178, %194 : vector<17x32xf32>
    %cst_64 = arith.constant 9.99999974E-6 : f32
    %196 = vector.broadcast %cst_64 : f32 to vector<17x1xf32>
    %197 = arith.addf %193, %196 : vector<17x1xf32>
    %198 = math.rsqrt %197 : vector<17x1xf32>
    %199 = vector.broadcast %198 : vector<17x1xf32> to vector<17x32xf32>
    %200 = arith.mulf %195, %199 : vector<17x32xf32>
    %201 = vector.broadcast %181 : vector<1x32xf32> to vector<17x32xf32>
    %202 = arith.mulf %200, %201 : vector<17x32xf32>
    %203 = vector.broadcast %182 : vector<1x32xf32> to vector<17x32xf32>
    %204 = arith.addf %202, %203 : vector<17x32xf32>
    %c1_65 = arith.constant 1 : index
    %c0_66 = arith.constant 0 : index
    %c0_67 = arith.constant 0 : index
    %205 = vector.load %arg6[%c1_65, %c0_66, %c0_67] : memref<2x32x96xf32, #tpu.memory_space<vmem>>, vector<1x32x96xf32>
    %206 = vector.shape_cast %205 : vector<1x32x96xf32> to vector<32x96xf32>
    %cst_68 = arith.constant dense<0.000000e+00> : vector<17x96xf32>
    %207 = tpu.matmul %204, %206, %cst_68 {dimension_numbers = #tpu.dot_dimension_numbers<[1], [0], [0], [1], [0, 0, 1, 1], [], []>} : vector<17x32xf32>, vector<32x96xf32>, vector<17x96xf32> -> vector<17x96xf32>
    %208 = vector.extract_strided_slice %207 {offsets = [0, 32], sizes = [17, 32], strides = [1, 1]} : vector<17x96xf32> to vector<17x32xf32>
    %209 = tpu.transpose %208, [1, 0] : vector<17x32xf32> -> vector<32x17xf32>
    %210 = vector.extract_strided_slice %207 {offsets = [0, 0], sizes = [17, 8], strides = [1, 1]} : vector<17x96xf32> to vector<17x8xf32>
    %211 = vector.extract_strided_slice %207 {offsets = [0, 64], sizes = [17, 8], strides = [1, 1]} : vector<17x96xf32> to vector<17x8xf32>
    %212 = vector.extract_strided_slice %209 {offsets = [0, 0], sizes = [8, 17], strides = [1, 1]} : vector<32x17xf32> to vector<8x17xf32>
    %cst_69 = arith.constant dense<0.000000e+00> : vector<17x17xf32>
    %213 = tpu.matmul %210, %212, %cst_69 {dimension_numbers = #tpu.dot_dimension_numbers<[1], [0], [0], [1], [0, 0, 1, 1], [], []>} : vector<17x8xf32>, vector<8x17xf32>, vector<17x17xf32> -> vector<17x17xf32>
    %cst_70 = arith.constant dense<0xFF800000> : vector<17xf32>
    %214 = vector.multi_reduction <maximumf>, %213, %cst_70 [1] : vector<17x17xf32> to vector<17xf32>
    %215 = vector.shape_cast %214 : vector<17xf32> to vector<17x1xf32>
    %216 = vector.broadcast %215 : vector<17x1xf32> to vector<17x17xf32>
    %217 = arith.subf %213, %216 : vector<17x17xf32>
    %218 = math.exp %217 : vector<17x17xf32>
    %cst_71 = arith.constant dense<0.000000e+00> : vector<17xf32>
    %219 = vector.multi_reduction <add>, %218, %cst_71 [1] : vector<17x17xf32> to vector<17xf32>
    %220 = vector.shape_cast %219 : vector<17xf32> to vector<17x1xf32>
    %221 = tpu.reciprocal %220 {approx = true} : vector<17x1xf32> -> vector<17x1xf32>
    %222 = vector.broadcast %221 : vector<17x1xf32> to vector<17x17xf32>
    %223 = arith.mulf %218, %222 : vector<17x17xf32>
    %cst_72 = arith.constant dense<0.000000e+00> : vector<17x8xf32>
    %224 = tpu.matmul %223, %211, %cst_72 {dimension_numbers = #tpu.dot_dimension_numbers<[1], [0], [0], [1], [0, 0, 1, 1], [], []>} : vector<17x17xf32>, vector<17x8xf32>, vector<17x8xf32> -> vector<17x8xf32>
    %225 = vector.extract_strided_slice %207 {offsets = [0, 8], sizes = [17, 8], strides = [1, 1]} : vector<17x96xf32> to vector<17x8xf32>
    %226 = vector.extract_strided_slice %207 {offsets = [0, 72], sizes = [17, 8], strides = [1, 1]} : vector<17x96xf32> to vector<17x8xf32>
    %227 = vector.extract_strided_slice %209 {offsets = [8, 0], sizes = [8, 17], strides = [1, 1]} : vector<32x17xf32> to vector<8x17xf32>
    %cst_73 = arith.constant dense<0.000000e+00> : vector<17x17xf32>
    %228 = tpu.matmul %225, %227, %cst_73 {dimension_numbers = #tpu.dot_dimension_numbers<[1], [0], [0], [1], [0, 0, 1, 1], [], []>} : vector<17x8xf32>, vector<8x17xf32>, vector<17x17xf32> -> vector<17x17xf32>
    %cst_74 = arith.constant dense<0xFF800000> : vector<17xf32>
    %229 = vector.multi_reduction <maximumf>, %228, %cst_74 [1] : vector<17x17xf32> to vector<17xf32>
    %230 = vector.shape_cast %229 : vector<17xf32> to vector<17x1xf32>
    %231 = vector.broadcast %230 : vector<17x1xf32> to vector<17x17xf32>
    %232 = arith.subf %228, %231 : vector<17x17xf32>
    %233 = math.exp %232 : vector<17x17xf32>
    %cst_75 = arith.constant dense<0.000000e+00> : vector<17xf32>
    %234 = vector.multi_reduction <add>, %233, %cst_75 [1] : vector<17x17xf32> to vector<17xf32>
    %235 = vector.shape_cast %234 : vector<17xf32> to vector<17x1xf32>
    %236 = tpu.reciprocal %235 {approx = true} : vector<17x1xf32> -> vector<17x1xf32>
    %237 = vector.broadcast %236 : vector<17x1xf32> to vector<17x17xf32>
    %238 = arith.mulf %233, %237 : vector<17x17xf32>
    %cst_76 = arith.constant dense<0.000000e+00> : vector<17x8xf32>
    %239 = tpu.matmul %238, %226, %cst_76 {dimension_numbers = #tpu.dot_dimension_numbers<[1], [0], [0], [1], [0, 0, 1, 1], [], []>} : vector<17x17xf32>, vector<17x8xf32>, vector<17x8xf32> -> vector<17x8xf32>
    %240 = vector.extract_strided_slice %207 {offsets = [0, 16], sizes = [17, 8], strides = [1, 1]} : vector<17x96xf32> to vector<17x8xf32>
    %241 = vector.extract_strided_slice %207 {offsets = [0, 80], sizes = [17, 8], strides = [1, 1]} : vector<17x96xf32> to vector<17x8xf32>
    %242 = vector.extract_strided_slice %209 {offsets = [16, 0], sizes = [8, 17], strides = [1, 1]} : vector<32x17xf32> to vector<8x17xf32>
    %cst_77 = arith.constant dense<0.000000e+00> : vector<17x17xf32>
    %243 = tpu.matmul %240, %242, %cst_77 {dimension_numbers = #tpu.dot_dimension_numbers<[1], [0], [0], [1], [0, 0, 1, 1], [], []>} : vector<17x8xf32>, vector<8x17xf32>, vector<17x17xf32> -> vector<17x17xf32>
    %cst_78 = arith.constant dense<0xFF800000> : vector<17xf32>
    %244 = vector.multi_reduction <maximumf>, %243, %cst_78 [1] : vector<17x17xf32> to vector<17xf32>
    %245 = vector.shape_cast %244 : vector<17xf32> to vector<17x1xf32>
    %246 = vector.broadcast %245 : vector<17x1xf32> to vector<17x17xf32>
    %247 = arith.subf %243, %246 : vector<17x17xf32>
    %248 = math.exp %247 : vector<17x17xf32>
    %cst_79 = arith.constant dense<0.000000e+00> : vector<17xf32>
    %249 = vector.multi_reduction <add>, %248, %cst_79 [1] : vector<17x17xf32> to vector<17xf32>
    %250 = vector.shape_cast %249 : vector<17xf32> to vector<17x1xf32>
    %251 = tpu.reciprocal %250 {approx = true} : vector<17x1xf32> -> vector<17x1xf32>
    %252 = vector.broadcast %251 : vector<17x1xf32> to vector<17x17xf32>
    %253 = arith.mulf %248, %252 : vector<17x17xf32>
    %cst_80 = arith.constant dense<0.000000e+00> : vector<17x8xf32>
    %254 = tpu.matmul %253, %241, %cst_80 {dimension_numbers = #tpu.dot_dimension_numbers<[1], [0], [0], [1], [0, 0, 1, 1], [], []>} : vector<17x17xf32>, vector<17x8xf32>, vector<17x8xf32> -> vector<17x8xf32>
    %255 = vector.extract_strided_slice %207 {offsets = [0, 24], sizes = [17, 8], strides = [1, 1]} : vector<17x96xf32> to vector<17x8xf32>
    %256 = vector.extract_strided_slice %207 {offsets = [0, 88], sizes = [17, 8], strides = [1, 1]} : vector<17x96xf32> to vector<17x8xf32>
    %257 = vector.extract_strided_slice %209 {offsets = [24, 0], sizes = [8, 17], strides = [1, 1]} : vector<32x17xf32> to vector<8x17xf32>
    %cst_81 = arith.constant dense<0.000000e+00> : vector<17x17xf32>
    %258 = tpu.matmul %255, %257, %cst_81 {dimension_numbers = #tpu.dot_dimension_numbers<[1], [0], [0], [1], [0, 0, 1, 1], [], []>} : vector<17x8xf32>, vector<8x17xf32>, vector<17x17xf32> -> vector<17x17xf32>
    %cst_82 = arith.constant dense<0xFF800000> : vector<17xf32>
    %259 = vector.multi_reduction <maximumf>, %258, %cst_82 [1] : vector<17x17xf32> to vector<17xf32>
    %260 = vector.shape_cast %259 : vector<17xf32> to vector<17x1xf32>
    %261 = vector.broadcast %260 : vector<17x1xf32> to vector<17x17xf32>
    %262 = arith.subf %258, %261 : vector<17x17xf32>
    %263 = math.exp %262 : vector<17x17xf32>
    %cst_83 = arith.constant dense<0.000000e+00> : vector<17xf32>
    %264 = vector.multi_reduction <add>, %263, %cst_83 [1] : vector<17x17xf32> to vector<17xf32>
    %265 = vector.shape_cast %264 : vector<17xf32> to vector<17x1xf32>
    %266 = tpu.reciprocal %265 {approx = true} : vector<17x1xf32> -> vector<17x1xf32>
    %267 = vector.broadcast %266 : vector<17x1xf32> to vector<17x17xf32>
    %268 = arith.mulf %263, %267 : vector<17x17xf32>
    %cst_84 = arith.constant dense<0.000000e+00> : vector<17x8xf32>
    %269 = tpu.matmul %268, %256, %cst_84 {dimension_numbers = #tpu.dot_dimension_numbers<[1], [0], [0], [1], [0, 0, 1, 1], [], []>} : vector<17x17xf32>, vector<17x8xf32>, vector<17x8xf32> -> vector<17x8xf32>
    %270 = tpu.concatenate %224, %239, %254, %269 in 1 : vector<17x8xf32>, vector<17x8xf32>, vector<17x8xf32>, vector<17x8xf32> -> vector<17x32xf32>
    %c1_85 = arith.constant 1 : index
    %c0_86 = arith.constant 0 : index
    %c0_87 = arith.constant 0 : index
    %271 = vector.load %arg8[%c1_85, %c0_86, %c0_87] : memref<2x96x32xf32, #tpu.memory_space<vmem>>, vector<1x96x32xf32>
    %272 = vector.shape_cast %271 : vector<1x96x32xf32> to vector<96x32xf32>
    %273 = vector.extract_strided_slice %272 {offsets = [0, 0], sizes = [32, 32], strides = [1, 1]} : vector<96x32xf32> to vector<32x32xf32>
    %cst_88 = arith.constant dense<0.000000e+00> : vector<17x32xf32>
    %274 = tpu.matmul %270, %273, %cst_88 {dimension_numbers = #tpu.dot_dimension_numbers<[1], [0], [0], [1], [0, 0, 1, 1], [], []>} : vector<17x32xf32>, vector<32x32xf32>, vector<17x32xf32> -> vector<17x32xf32>
    %275 = arith.addf %178, %274 : vector<17x32xf32>
    %276 = vector.extract_strided_slice %180 {offsets = [2, 0], sizes = [1, 32], strides = [1, 1]} : vector<6x32xf32> to vector<1x32xf32>
    %277 = vector.broadcast %276 : vector<1x32xf32> to vector<17x32xf32>
    %278 = arith.addf %275, %277 : vector<17x32xf32>
    %279 = vector.extract_strided_slice %180 {offsets = [3, 0], sizes = [1, 32], strides = [1, 1]} : vector<6x32xf32> to vector<1x32xf32>
    %280 = vector.extract_strided_slice %180 {offsets = [4, 0], sizes = [1, 32], strides = [1, 1]} : vector<6x32xf32> to vector<1x32xf32>
    %cst_89 = arith.constant dense<0.000000e+00> : vector<17xf32>
    %281 = vector.multi_reduction <add>, %278, %cst_89 [1] : vector<17x32xf32> to vector<17xf32>
    %282 = vector.shape_cast %281 : vector<17xf32> to vector<17x1xf32>
    %cst_90 = arith.constant 3.200000e+01 : f32
    %283 = vector.broadcast %cst_90 : f32 to vector<17x1xf32>
    %284 = arith.divf %282, %283 : vector<17x1xf32>
    %285 = vector.broadcast %284 : vector<17x1xf32> to vector<17x32xf32>
    %286 = arith.subf %278, %285 : vector<17x32xf32>
    %287 = arith.mulf %286, %286 : vector<17x32xf32>
    %cst_91 = arith.constant dense<0.000000e+00> : vector<17xf32>
    %288 = vector.multi_reduction <add>, %287, %cst_91 [1] : vector<17x32xf32> to vector<17xf32>
    %289 = vector.shape_cast %288 : vector<17xf32> to vector<17x1xf32>
    %cst_92 = arith.constant 3.200000e+01 : f32
    %290 = vector.broadcast %cst_92 : f32 to vector<17x1xf32>
    %291 = arith.divf %289, %290 : vector<17x1xf32>
    %292 = vector.broadcast %284 : vector<17x1xf32> to vector<17x32xf32>
    %293 = arith.subf %278, %292 : vector<17x32xf32>
    %cst_93 = arith.constant 9.99999974E-6 : f32
    %294 = vector.broadcast %cst_93 : f32 to vector<17x1xf32>
    %295 = arith.addf %291, %294 : vector<17x1xf32>
    %296 = math.rsqrt %295 : vector<17x1xf32>
    %297 = vector.broadcast %296 : vector<17x1xf32> to vector<17x32xf32>
    %298 = arith.mulf %293, %297 : vector<17x32xf32>
    %299 = vector.broadcast %279 : vector<1x32xf32> to vector<17x32xf32>
    %300 = arith.mulf %298, %299 : vector<17x32xf32>
    %301 = vector.broadcast %280 : vector<1x32xf32> to vector<17x32xf32>
    %302 = arith.addf %300, %301 : vector<17x32xf32>
    %c1_94 = arith.constant 1 : index
    %c0_95 = arith.constant 0 : index
    %c0_96 = arith.constant 0 : index
    %303 = vector.load %arg7[%c1_94, %c0_95, %c0_96] : memref<2x33x64xf32, #tpu.memory_space<vmem>>, vector<1x33x64xf32>
    %304 = vector.shape_cast %303 : vector<1x33x64xf32> to vector<33x64xf32>
    %305 = vector.extract_strided_slice %304 {offsets = [0, 0], sizes = [32, 64], strides = [1, 1]} : vector<33x64xf32> to vector<32x64xf32>
    %cst_97 = arith.constant dense<0.000000e+00> : vector<17x64xf32>
    %306 = tpu.matmul %302, %305, %cst_97 {dimension_numbers = #tpu.dot_dimension_numbers<[1], [0], [0], [1], [0, 0, 1, 1], [], []>} : vector<17x32xf32>, vector<32x64xf32>, vector<17x64xf32> -> vector<17x64xf32>
    %307 = vector.extract_strided_slice %304 {offsets = [32, 0], sizes = [1, 64], strides = [1, 1]} : vector<33x64xf32> to vector<1x64xf32>
    %308 = vector.broadcast %307 : vector<1x64xf32> to vector<17x64xf32>
    %309 = arith.addf %306, %308 : vector<17x64xf32>
    %cst_98 = arith.constant 5.000000e-01 : f32
    %310 = vector.broadcast %cst_98 : f32 to vector<17x64xf32>
    %311 = arith.mulf %310, %309 : vector<17x64xf32>
    %cst_99 = arith.constant 0.707106769 : f32
    %312 = vector.broadcast %cst_99 : f32 to vector<17x64xf32>
    %313 = arith.mulf %309, %312 : vector<17x64xf32>
    %314 = math.erf %313 : vector<17x64xf32>
    %cst_100 = arith.constant 1.000000e+00 : f32
    %315 = vector.broadcast %cst_100 : f32 to vector<17x64xf32>
    %316 = arith.addf %315, %314 : vector<17x64xf32>
    %317 = arith.mulf %311, %316 : vector<17x64xf32>
    %318 = vector.extract_strided_slice %272 {offsets = [32, 0], sizes = [64, 32], strides = [1, 1]} : vector<96x32xf32> to vector<64x32xf32>
    %cst_101 = arith.constant dense<0.000000e+00> : vector<17x32xf32>
    %319 = tpu.matmul %317, %318, %cst_101 {dimension_numbers = #tpu.dot_dimension_numbers<[1], [0], [0], [1], [0, 0, 1, 1], [], []>} : vector<17x64xf32>, vector<64x32xf32>, vector<17x32xf32> -> vector<17x32xf32>
    %320 = arith.addf %278, %319 : vector<17x32xf32>
    %321 = vector.extract_strided_slice %180 {offsets = [5, 0], sizes = [1, 32], strides = [1, 1]} : vector<6x32xf32> to vector<1x32xf32>
    %322 = vector.broadcast %321 : vector<1x32xf32> to vector<17x32xf32>
    %323 = arith.addf %320, %322 : vector<17x32xf32>
    %c0_102 = arith.constant 0 : index
    %c0_103 = arith.constant 0 : index
    %324 = vector.load %arg9[%c0_102, %c0_103] : memref<2x32xf32, #tpu.memory_space<vmem>>, vector<2x32xf32>
    %325 = vector.extract_strided_slice %323 {offsets = [0, 0], sizes = [1, 32], strides = [1, 1]} : vector<17x32xf32> to vector<1x32xf32>
    %326 = vector.extract_strided_slice %324 {offsets = [0, 0], sizes = [1, 32], strides = [1, 1]} : vector<2x32xf32> to vector<1x32xf32>
    %327 = vector.extract_strided_slice %324 {offsets = [1, 0], sizes = [1, 32], strides = [1, 1]} : vector<2x32xf32> to vector<1x32xf32>
    %cst_104 = arith.constant dense<0.000000e+00> : vector<1xf32>
    %328 = vector.multi_reduction <add>, %325, %cst_104 [1] : vector<1x32xf32> to vector<1xf32>
    %329 = vector.shape_cast %328 : vector<1xf32> to vector<1x1xf32>
    %cst_105 = arith.constant 3.200000e+01 : f32
    %330 = vector.broadcast %cst_105 : f32 to vector<1x1xf32>
    %331 = arith.divf %329, %330 : vector<1x1xf32>
    %332 = vector.broadcast %331 : vector<1x1xf32> to vector<1x32xf32>
    %333 = arith.subf %325, %332 : vector<1x32xf32>
    %334 = arith.mulf %333, %333 : vector<1x32xf32>
    %cst_106 = arith.constant dense<0.000000e+00> : vector<1xf32>
    %335 = vector.multi_reduction <add>, %334, %cst_106 [1] : vector<1x32xf32> to vector<1xf32>
    %336 = vector.shape_cast %335 : vector<1xf32> to vector<1x1xf32>
    %cst_107 = arith.constant 3.200000e+01 : f32
    %337 = vector.broadcast %cst_107 : f32 to vector<1x1xf32>
    %338 = arith.divf %336, %337 : vector<1x1xf32>
    %339 = vector.broadcast %331 : vector<1x1xf32> to vector<1x32xf32>
    %340 = arith.subf %325, %339 : vector<1x32xf32>
    %cst_108 = arith.constant 9.99999974E-6 : f32
    %341 = vector.broadcast %cst_108 : f32 to vector<1x1xf32>
    %342 = arith.addf %338, %341 : vector<1x1xf32>
    %343 = math.rsqrt %342 : vector<1x1xf32>
    %344 = vector.broadcast %343 : vector<1x1xf32> to vector<1x32xf32>
    %345 = arith.mulf %340, %344 : vector<1x32xf32>
    %346 = arith.mulf %345, %326 : vector<1x32xf32>
    %347 = arith.addf %346, %327 : vector<1x32xf32>
    %c0_109 = arith.constant 0 : index
    %c0_110 = arith.constant 0 : index
    %348 = vector.load %arg10[%c0_109, %c0_110] : memref<33x10xf32, #tpu.memory_space<vmem>>, vector<33x10xf32>
    %349 = vector.extract_strided_slice %348 {offsets = [0, 0], sizes = [32, 10], strides = [1, 1]} : vector<33x10xf32> to vector<32x10xf32>
    %cst_111 = arith.constant dense<0.000000e+00> : vector<1x10xf32>
    %350 = tpu.matmul %347, %349, %cst_111 {dimension_numbers = #tpu.dot_dimension_numbers<[1], [0], [0], [1], [0, 0, 1, 1], [], []>} : vector<1x32xf32>, vector<32x10xf32>, vector<1x10xf32> -> vector<1x10xf32>
    %351 = vector.extract_strided_slice %348 {offsets = [32, 0], sizes = [1, 10], strides = [1, 1]} : vector<33x10xf32> to vector<1x10xf32>
    %352 = arith.addf %350, %351 : vector<1x10xf32>
    %c0_112 = arith.constant 0 : index
    %c0_113 = arith.constant 0 : index
    %c0_114 = arith.constant 0 : index
    %353 = vector.load %arg11[%c0_112, %c0_113, %c0_114] : memref<1x1x10xf32, #tpu.memory_space<vmem>>, vector<1x1x10xf32>
    %354 = vector.shape_cast %353 : vector<1x1x10xf32> to vector<1x10xf32>
    %355 = vector.shape_cast %352 : vector<1x10xf32> to vector<1x1x10xf32>
    tpu.vector_store %arg11[%c0_112, %c0_113, %c0_114], %355 {strides = array<i32>} : memref<1x1x10xf32, #tpu.memory_space<vmem>>, vector<1x1x10xf32>,
    return
  }
  func.func @transform_0(%arg0: i32) -> (i32, i32, i32) {
    %c0_i32 = arith.constant 0 : i32
    %c0_i32_0 = arith.constant 0 : i32
    %c0_i32_1 = arith.constant 0 : i32
    return %arg0, %c0_i32, %c0_i32_0 : i32, i32, i32
  }
  func.func @transform_1(%arg0: i32) -> (i32, i32) {
    %c0_i32 = arith.constant 0 : i32
    %c0_i32_0 = arith.constant 0 : i32
    %c0_i32_1 = arith.constant 0 : i32
    return %c0_i32, %c0_i32_0 : i32, i32
  }
  func.func @transform_2(%arg0: i32) -> (i32, i32) {
    %c0_i32 = arith.constant 0 : i32
    %c0_i32_0 = arith.constant 0 : i32
    %c0_i32_1 = arith.constant 0 : i32
    return %c0_i32, %c0_i32_0 : i32, i32
  }
  func.func @transform_3(%arg0: i32) -> (i32, i32) {
    %c0_i32 = arith.constant 0 : i32
    %c0_i32_0 = arith.constant 0 : i32
    %c0_i32_1 = arith.constant 0 : i32
    return %c0_i32, %c0_i32_0 : i32, i32
  }
  func.func @transform_4(%arg0: i32) -> (i32, i32, i32) {
    %c0_i32 = arith.constant 0 : i32
    %c0_i32_0 = arith.constant 0 : i32
    %c0_i32_1 = arith.constant 0 : i32
    %c0_i32_2 = arith.constant 0 : i32
    return %c0_i32, %c0_i32_0, %c0_i32_1 : i32, i32, i32
  }
  func.func @transform_5(%arg0: i32) -> (i32, i32, i32) {
    %c0_i32 = arith.constant 0 : i32
    %c0_i32_0 = arith.constant 0 : i32
    %c0_i32_1 = arith.constant 0 : i32
    %c0_i32_2 = arith.constant 0 : i32
    return %c0_i32, %c0_i32_0, %c0_i32_1 : i32, i32, i32
  }
  func.func @transform_6(%arg0: i32) -> (i32, i32, i32) {
    %c0_i32 = arith.constant 0 : i32
    %c0_i32_0 = arith.constant 0 : i32
    %c0_i32_1 = arith.constant 0 : i32
    %c0_i32_2 = arith.constant 0 : i32
    return %c0_i32, %c0_i32_0, %c0_i32_1 : i32, i32, i32
  }
  func.func @transform_7(%arg0: i32) -> (i32, i32, i32) {
    %c0_i32 = arith.constant 0 : i32
    %c0_i32_0 = arith.constant 0 : i32
    %c0_i32_1 = arith.constant 0 : i32
    %c0_i32_2 = arith.constant 0 : i32
    return %c0_i32, %c0_i32_0, %c0_i32_1 : i32, i32, i32
  }
  func.func @transform_8(%arg0: i32) -> (i32, i32) {
    %c0_i32 = arith.constant 0 : i32
    %c0_i32_0 = arith.constant 0 : i32
    %c0_i32_1 = arith.constant 0 : i32
    return %c0_i32, %c0_i32_0 : i32, i32
  }
  func.func @transform_9(%arg0: i32) -> (i32, i32) {
    %c0_i32 = arith.constant 0 : i32
    %c0_i32_0 = arith.constant 0 : i32
    %c0_i32_1 = arith.constant 0 : i32
    return %c0_i32, %c0_i32_0 : i32, i32
  }
  func.func @transform_10(%arg0: i32) -> (i32, i32, i32) {
    %c0_i32 = arith.constant 0 : i32
    %c0_i32_0 = arith.constant 0 : i32
    %c0_i32_1 = arith.constant 0 : i32
    return %arg0, %c0_i32, %c0_i32_0 : i32, i32, i32
  }
}

</mosaic_0001>

<llo_original>
// kernel: git_forward.1
$region0: #{git_forward.1}
  #allocation0 [shape = 'u32[]', space=smem, size = 0x4, offset = 0x4, fixed_abs, tag = 'smem constant byte address 0x4 - core index']
  #allocation1 [shape = 'u32[144,128]{1,0:T(1,128)}', space=vmem, size = 0x12000, scoped, tag = 'internal scratch']
  %s0 = inlined_call_operand.vmem [shape: f32[2,16,240], index: 0, kind: input, shape index: {}]
  %s1 = inlined_call_operand.vmem [shape: f32[2,240], index: 1, kind: input, shape index: {}]
  %s2 = inlined_call_operand.vmem [shape: f32[240,32], index: 2, kind: input, shape index: {}]
  %s3 = inlined_call_operand.vmem [shape: f32[17,32], index: 3, kind: input, shape index: {}]
  %s4 = inlined_call_operand.vmem [shape: f32[2,6,32], index: 4, kind: input, shape index: {}]
  %s5 = inlined_call_operand.vmem [shape: f32[2,32,96], index: 5, kind: input, shape index: {}]
  %s6 = inlined_call_operand.vmem [shape: f32[2,33,64], index: 6, kind: input, shape index: {}]
  %s7 = inlined_call_operand.vmem [shape: f32[2,96,32], index: 7, kind: input, shape index: {}]
  %s8 = inlined_call_operand.vmem [shape: f32[2,32], index: 8, kind: input, shape index: {}]
  %s9 = inlined_call_operand.vmem [shape: f32[33,10], index: 9, kind: input, shape index: {}]
  %s10 = inlined_call_operand.hbm [shape: f32[2,1,10], index: 10, kind: output, shape index: {}]
  %s11 = sld [smem:[#allocation0]]
  $region73: #{git_forward.1} parent=0
    _
  %s13 = ssub.s32 1, %s11
  %s14 = scalar_select 0, %s13, %s11
  $region1: #{git_forward.1} parent=0
    #allocation2 [shape = 'u8[1024]{0}', space=vmem, size = 0x400, scoped, tag = 'output window, operand 0']
    #allocation3 [shape = 's32[2]{0}', space=sflag, size = 0x8, scoped, tag = 'scoped memory for git_forward.1']
    %15 = vsyncpa [#allocation3], 0
    %s16 = scalar_lea.sflag [#allocation3], 1
    %17 = vsyncpa %s16, 0
    loop: start=0, step=1, limit=4
    $region2: #{git_forward.1} parent=1 // loop_pre_header
      _
    $region3: #{git_forward.1} parent=1 // loop_header
      %s19 = sphi 0, %s23
      %p20 = scmp.ge.s32.totalorder %s19, 4
      %s29 = sphi 0, %s31
      %s32 = sphi 0, %s29
      %s33 = sphi 0, %s32
      %s49 = sphi 0, %s33
      %s53 = sphi 0, %s53
      %s55 = sphi 0, %s53
      %s56 = sphi 0, %s55
      %s70 = sphi 0, %s56
      %s74 = sphi 0, %s74
      %s76 = sphi 0, %s74
      %s77 = sphi 0, %s76
      %s91 = sphi 0, %s77
      %s95 = sphi 0, %s95
      %s97 = sphi 0, %s95
      %s98 = sphi 0, %s97
      %s112 = sphi 0, %s98
      %s116 = sphi 0, %s116
      %s118 = sphi 0, %s116
      %s119 = sphi 0, %s118
      %s133 = sphi 0, %s119
      %s137 = sphi 0, %s137
      %s139 = sphi 0, %s137
      %s140 = sphi 0, %s139
      %s154 = sphi 0, %s140
      %s158 = sphi 0, %s158
      %s160 = sphi 0, %s158
      %s161 = sphi 0, %s160
      %s175 = sphi 0, %s161
      %s179 = sphi 0, %s179
      %s181 = sphi 0, %s179
      %s182 = sphi 0, %s181
      %s196 = sphi 0, %s182
      %s200 = sphi 0, %s200
      %s202 = sphi 0, %s200
      %s203 = sphi 0, %s202
      %s217 = sphi 0, %s203
      %s221 = sphi 0, %s221
      %s223 = sphi 0, %s221
      %s224 = sphi 0, %s223
      %s238 = sphi 0, %s224
      %s244 = sphi 0, %s246
      %s247 = sphi 0, %s244
      %s248 = sphi 0, %s247
      %s264 = sphi 0, %s248
    $region4: #{git_forward.1} parent=1 // loop_header_branch
      %22 = sbr.rel (%p20) target = $region8
    $region5: #{git_forward.1} parent=1 // loop_body
      %s24 = ssub.s32 %s19, 1
      %s25 = ssub.s32 %s19, 2
      %s26 = sadd.s32 %s19, 1
      %s27 = ssub.s32 %s19, %s26
      %p28 = scmp.eq.s32.totalorder %s27, 0
      %s30 = sadd.s32 %s29, 1
      %s31 = scalar_select %p28, %s29, %s30
      %p34 = pneg %p28
      %p35 = scmp.eq.s32.totalorder %s19, 1
      %p36 = por %p34, %p35
      %p37 = scmp.ne.s32.totalorder %s29, %s32
      %p38 = scmp.eq.s32.totalorder %s19, 0
      %p39 = por %p37, %p38
      %p40 = scmp.ne.s32.totalorder %s29, %s32
      %p41 = scmp.eq.s32.totalorder %s24, 1
      %p42 = por %p40, %p41
      %p43 = scmp.ne.s32.totalorder %s32, %s33
      %p44 = scmp.eq.s32.totalorder %s24, 0
      %p45 = por %p43, %p44
      %p46 = scmp.ne.s32.totalorder %s32, %s33
      %p47 = scmp.eq.s32.totalorder %s25, 1
      %p48 = por %p46, %p47
      %p50 = scmp.ne.s32.totalorder %s33, %s49
      %p51 = scmp.eq.s32.totalorder %s25, 0
      %p52 = por %p50, %p51
      %s54 = sadd.s32 %s53, 1
      %p57 = scmp.eq.s32.totalorder %s19, 1
      %p58 = scmp.ne.s32.totalorder %s53, %s55
      %p59 = scmp.eq.s32.totalorder %s19, 0
      %p60 = por %p58, %p59
      %p61 = scmp.ne.s32.totalorder %s53, %s55
      %p62 = scmp.eq.s32.totalorder %s24, 1
      %p63 = por %p61, %p62
      %p64 = scmp.ne.s32.totalorder %s55, %s56
      %p65 = scmp.eq.s32.totalorder %s24, 0
      %p66 = por %p64, %p65
      %p67 = scmp.ne.s32.totalorder %s55, %s56
      %p68 = scmp.eq.s32.totalorder %s25, 1
      %p69 = por %p67, %p68
      %p71 = scmp.ne.s32.totalorder %s56, %s70
      %p72 = scmp.eq.s32.totalorder %s25, 0
      %p73 = por %p71, %p72
      %s75 = sadd.s32 %s74, 1
      %p78 = scmp.eq.s32.totalorder %s19, 1
      %p79 = scmp.ne.s32.totalorder %s74, %s76
      %p80 = scmp.eq.s32.totalorder %s19, 0
      %p81 = por %p79, %p80
      %p82 = scmp.ne.s32.totalorder %s74, %s76
      %p83 = scmp.eq.s32.totalorder %s24, 1
      %p84 = por %p82, %p83
      %p85 = scmp.ne.s32.totalorder %s76, %s77
      %p86 = scmp.eq.s32.totalorder %s24, 0
      %p87 = por %p85, %p86
      %p88 = scmp.ne.s32.totalorder %s76, %s77
      %p89 = scmp.eq.s32.totalorder %s25, 1
      %p90 = por %p88, %p89
      %p92 = scmp.ne.s32.totalorder %s77, %s91
      %p93 = scmp.eq.s32.totalorder %s25, 0
      %p94 = por %p92, %p93
      %s96 = sadd.s32 %s95, 1
      %p99 = scmp.eq.s32.totalorder %s19, 1
      %p100 = scmp.ne.s32.totalorder %s95, %s97
      %p101 = scmp.eq.s32.totalorder %s19, 0
      %p102 = por %p100, %p101
      %p103 = scmp.ne.s32.totalorder %s95, %s97
      %p104 = scmp.eq.s32.totalorder %s24, 1
      %p105 = por %p103, %p104
      %p106 = scmp.ne.s32.totalorder %s97, %s98
      %p107 = scmp.eq.s32.totalorder %s24, 0
      %p108 = por %p106, %p107
      %p109 = scmp.ne.s32.totalorder %s97, %s98
      %p110 = scmp.eq.s32.totalorder %s25, 1
      %p111 = por %p109, %p110
      %p113 = scmp.ne.s32.totalorder %s98, %s112
      %p114 = scmp.eq.s32.totalorder %s25, 0
      %p115 = por %p113, %p114
      %s117 = sadd.s32 %s116, 1
      %p120 = scmp.eq.s32.totalorder %s19, 1
      %p121 = scmp.ne.s32.totalorder %s116, %s118
      %p122 = scmp.eq.s32.totalorder %s19, 0
      %p123 = por %p121, %p122
      %p124 = scmp.ne.s32.totalorder %s116, %s118
      %p125 = scmp.eq.s32.totalorder %s24, 1
      %p126 = por %p124, %p125
      %p127 = scmp.ne.s32.totalorder %s118, %s119
      %p128 = scmp.eq.s32.totalorder %s24, 0
      %p129 = por %p127, %p128
      %p130 = scmp.ne.s32.totalorder %s118, %s119
      %p131 = scmp.eq.s32.totalorder %s25, 1
      %p132 = por %p130, %p131
      %p134 = scmp.ne.s32.totalorder %s119, %s133
      %p135 = scmp.eq.s32.totalorder %s25, 0
      %p136 = por %p134, %p135
      %s138 = sadd.s32 %s137, 1
      %p141 = scmp.eq.s32.totalorder %s19, 1
      %p142 = scmp.ne.s32.totalorder %s137, %s139
      %p143 = scmp.eq.s32.totalorder %s19, 0
      %p144 = por %p142, %p143
      %p145 = scmp.ne.s32.totalorder %s137, %s139
      %p146 = scmp.eq.s32.totalorder %s24, 1
      %p147 = por %p145, %p146
      %p148 = scmp.ne.s32.totalorder %s139, %s140
      %p149 = scmp.eq.s32.totalorder %s24, 0
      %p150 = por %p148, %p149
      %p151 = scmp.ne.s32.totalorder %s139, %s140
      %p152 = scmp.eq.s32.totalorder %s25, 1
      %p153 = por %p151, %p152
      %p155 = scmp.ne.s32.totalorder %s140, %s154
      %p156 = scmp.eq.s32.totalorder %s25, 0
      %p157 = por %p155, %p156
      %s159 = sadd.s32 %s158, 1
      %p162 = scmp.eq.s32.totalorder %s19, 1
      %p163 = scmp.ne.s32.totalorder %s158, %s160
      %p164 = scmp.eq.s32.totalorder %s19, 0
      %p165 = por %p163, %p164
      %p166 = scmp.ne.s32.totalorder %s158, %s160
      %p167 = scmp.eq.s32.totalorder %s24, 1
      %p168 = por %p166, %p167
      %p169 = scmp.ne.s32.totalorder %s160, %s161
      %p170 = scmp.eq.s32.totalorder %s24, 0
      %p171 = por %p169, %p170
      %p172 = scmp.ne.s32.totalorder %s160, %s161
      %p173 = scmp.eq.s32.totalorder %s25, 1
      %p174 = por %p172, %p173
      %p176 = scmp.ne.s32.totalorder %s161, %s175
      %p177 = scmp.eq.s32.totalorder %s25, 0
      %p178 = por %p176, %p177
      %s180 = sadd.s32 %s179, 1
      %p183 = scmp.eq.s32.totalorder %s19, 1
      %p184 = scmp.ne.s32.totalorder %s179, %s181
      %p185 = scmp.eq.s32.totalorder %s19, 0
      %p186 = por %p184, %p185
      %p187 = scmp.ne.s32.totalorder %s179, %s181
      %p188 = scmp.eq.s32.totalorder %s24, 1
      %p189 = por %p187, %p188
      %p190 = scmp.ne.s32.totalorder %s181, %s182
      %p191 = scmp.eq.s32.totalorder %s24, 0
      %p192 = por %p190, %p191
      %p193 = scmp.ne.s32.totalorder %s181, %s182
      %p194 = scmp.eq.s32.totalorder %s25, 1
      %p195 = por %p193, %p194
      %p197 = scmp.ne.s32.totalorder %s182, %s196
      %p198 = scmp.eq.s32.totalorder %s25, 0
      %p199 = por %p197, %p198
      %s201 = sadd.s32 %s200, 1
      %p204 = scmp.eq.s32.totalorder %s19, 1
      %p205 = scmp.ne.s32.totalorder %s200, %s202
      %p206 = scmp.eq.s32.totalorder %s19, 0
      %p207 = por %p205, %p206
      %p208 = scmp.ne.s32.totalorder %s200, %s202
      %p209 = scmp.eq.s32.totalorder %s24, 1
      %p210 = por %p208, %p209
      %p211 = scmp.ne.s32.totalorder %s202, %s203
      %p212 = scmp.eq.s32.totalorder %s24, 0
      %p213 = por %p211, %p212
      %p214 = scmp.ne.s32.totalorder %s202, %s203
      %p215 = scmp.eq.s32.totalorder %s25, 1
      %p216 = por %p214, %p215
      %p218 = scmp.ne.s32.totalorder %s203, %s217
      %p219 = scmp.eq.s32.totalorder %s25, 0
      %p220 = por %p218, %p219
      %s222 = sadd.s32 %s221, 1
      %p225 = scmp.eq.s32.totalorder %s19, 1
      %p226 = scmp.ne.s32.totalorder %s221, %s223
      %p227 = scmp.eq.s32.totalorder %s19, 0
      %p228 = por %p226, %p227
      %p229 = scmp.ne.s32.totalorder %s221, %s223
      %p230 = scmp.eq.s32.totalorder %s24, 1
      %p231 = por %p229, %p230
      %p232 = scmp.ne.s32.totalorder %s223, %s224
      %p233 = scmp.eq.s32.totalorder %s24, 0
      %p234 = por %p232, %p233
      %p235 = scmp.ne.s32.totalorder %s223, %s224
      %p236 = scmp.eq.s32.totalorder %s25, 1
      %p237 = por %p235, %p236
      %p239 = scmp.ne.s32.totalorder %s224, %s238
      %p240 = scmp.eq.s32.totalorder %s25, 0
      %p241 = por %p239, %p240
      %s242 = ssub.s32 %s19, %s26
      %p243 = scmp.eq.s32.totalorder %s242, 0
      %s245 = sadd.s32 %s244, 1
      %s246 = scalar_select %p243, %s244, %s245
      %p249 = pneg %p243
      %p250 = scmp.eq.s32.totalorder %s19, 1
      %p251 = por %p249, %p250
      %p252 = scmp.ne.s32.totalorder %s244, %s247
      %p253 = scmp.eq.s32.totalorder %s19, 0
      %p254 = por %p252, %p253
      %p255 = scmp.ne.s32.totalorder %s244, %s247
      %p256 = scmp.eq.s32.totalorder %s24, 1
      %p257 = por %p255, %p256
      %p258 = scmp.ne.s32.totalorder %s247, %s248
      %p259 = scmp.eq.s32.totalorder %s24, 0
      %p260 = por %p258, %p259
      %p261 = scmp.ne.s32.totalorder %s247, %s248
      %p262 = scmp.eq.s32.totalorder %s25, 1
      %p263 = por %p261, %p262
      %p265 = scmp.ne.s32.totalorder %s248, %s264
      %p266 = scmp.eq.s32.totalorder %s25, 0
      %p267 = por %p265, %p266
      %p268 = scmp.le.s32.totalorder 1, %s19
      %p269 = scmp.lt.s32.totalorder %s19, 3
      %p270 = pnand %p268, %p269
      %p271 = pneg %p270
      // Predicated region
      $region9: #{git_forward.1} parent=5 // pred_check
        _
      $region10: #{git_forward.1} parent=5 // pred_check_branch
        %273 = sbr.rel (%p270) target = $region12
      $region11: #{git_forward.1} parent=5 // pred_region
        %s274 = ssub.s32 %s19, 1
        // Predicated region
        $region13: #{git_forward.1} parent=11 // pred_check
          %p275 = pneg %p66
        $region14: #{git_forward.1} parent=11 // pred_check_branch
          %277 = sbr.rel (%p275) target = $region16
        $region15: #{git_forward.1} parent=11 // pred_region
          _
        $region16: #{git_forward.1} parent=11 // pred_fallthru
          _
        // Predicated region
        $region17: #{git_forward.1} parent=11 // pred_check
          %p278 = pneg %p87
        $region18: #{git_forward.1} parent=11 // pred_check_branch
          %280 = sbr.rel (%p278) target = $region20
        $region19: #{git_forward.1} parent=11 // pred_region
          _
        $region20: #{git_forward.1} parent=11 // pred_fallthru
          _
        // Predicated region
        $region21: #{git_forward.1} parent=11 // pred_check
          %p281 = pneg %p108
        $region22: #{git_forward.1} parent=11 // pred_check_branch
          %283 = sbr.rel (%p281) target = $region24
        $region23: #{git_forward.1} parent=11 // pred_region
          _
        $region24: #{git_forward.1} parent=11 // pred_fallthru
          _
        // Predicated region
        $region25: #{git_forward.1} parent=11 // pred_check
          %p284 = pneg %p129
        $region26: #{git_forward.1} parent=11 // pred_check_branch
          %286 = sbr.rel (%p284) target = $region28
        $region27: #{git_forward.1} parent=11 // pred_region
          _
        $region28: #{git_forward.1} parent=11 // pred_fallthru
          _
        // Predicated region
        $region29: #{git_forward.1} parent=11 // pred_check
          %p287 = pneg %p150
        $region30: #{git_forward.1} parent=11 // pred_check_branch
          %289 = sbr.rel (%p287) target = $region32
        $region31: #{git_forward.1} parent=11 // pred_region
          _
        $region32: #{git_forward.1} parent=11 // pred_fallthru
          _
        // Predicated region
        $region33: #{git_forward.1} parent=11 // pred_check
          %p290 = pneg %p171
        $region34: #{git_forward.1} parent=11 // pred_check_branch
          %292 = sbr.rel (%p290) target = $region36
        $region35: #{git_forward.1} parent=11 // pred_region
          _
        $region36: #{git_forward.1} parent=11 // pred_fallthru
          _
        // Predicated region
        $region37: #{git_forward.1} parent=11 // pred_check
          %p293 = pneg %p192
        $region38: #{git_forward.1} parent=11 // pred_check_branch
          %295 = sbr.rel (%p293) target = $region40
        $region39: #{git_forward.1} parent=11 // pred_region
          _
        $region40: #{git_forward.1} parent=11 // pred_fallthru
          _
        // Predicated region
        $region41: #{git_forward.1} parent=11 // pred_check
          %p296 = pneg %p213
        $region42: #{git_forward.1} parent=11 // pred_check_branch
          %298 = sbr.rel (%p296) target = $region44
        $region43: #{git_forward.1} parent=11 // pred_region
          _
        $region44: #{git_forward.1} parent=11 // pred_fallthru
          _
        // Predicated region
        $region45: #{git_forward.1} parent=11 // pred_check
          %p299 = pneg %p234
        $region46: #{git_forward.1} parent=11 // pred_check_branch
          %301 = sbr.rel (%p299) target = $region48
        $region47: #{git_forward.1} parent=11 // pred_region
          _
        $region48: #{git_forward.1} parent=11 // pred_fallthru
          _
      $region12: #{git_forward.1} parent=5 // pred_fallthru
        _
      %p302 = scmp.lt.s32.totalorder %s19, 2
      // Predicated region
      $region49: #{git_forward.1} parent=5 // pred_check
        %p303 = pneg %p302
      $region50: #{git_forward.1} parent=5 // pred_check_branch
        %305 = sbr.rel (%p303) target = $region52
      $region51: #{git_forward.1} parent=5 // pred_region
        // Predicated region
        $region53: #{git_forward.1} parent=51 // pred_check
          %p306 = pneg %p39
        $region54: #{git_forward.1} parent=51 // pred_check_branch
          %308 = sbr.rel (%p306) target = $region56
        $region55: #{git_forward.1} parent=51 // pred_region
          %p309 = scmp.lt.s32.totalorder %s19, 1
          %s310 = scalar_select %p309, %s19, 1
          %s311 = smul.addr %s310, 4
          %s312 = smul.addr %s311, 8
          %s313 = scalar_lea.vmem %s0, %s312
        $region56: #{git_forward.1} parent=51 // pred_fallthru
          _
      $region52: #{git_forward.1} parent=5 // pred_fallthru
        _
      %p314 = scmp.le.s32.totalorder 1, %s19
      %p315 = scmp.lt.s32.totalorder %s19, 3
      %p316 = pnand %p314, %p315
      %p317 = pneg %p316
      // Predicated region
      $region57: #{git_forward.1} parent=5 // pred_check
        _
      $region58: #{git_forward.1} parent=5 // pred_check_branch
        %319 = sbr.rel (%p316) target = $region60
      $region59: #{git_forward.1} parent=5 // pred_region
        %s320 = ssub.s32 %s19, 1
        %p321 = scmp.lt.s32.totalorder %s24, 1
        %s322 = scalar_select %p321, %s24, 1
        %s323 = smul.addr %s322, 4
        %s324 = smul.addr %s323, 8
        %s325 = scalar_lea.vmem %s0, %s324
        %p326 = pneg %p45
        %p327 = pneg %p42
        %p328 = pneg %p66
        %p329 = pneg %p63
        %p330 = pneg %p87
        %p331 = pneg %p84
        %p332 = pneg %p108
        %p333 = pneg %p105
        %p334 = pneg %p129
        %p335 = pneg %p126
        %p336 = pneg %p150
        %p337 = pneg %p147
        %p338 = pneg %p171
        %p339 = pneg %p168
        %p340 = pneg %p192
        %p341 = pneg %p189
        %p342 = pneg %p213
        %p343 = pneg %p210
        %p344 = pneg %p234
        %p345 = pneg %p231
        %p346 = pneg %p260
        %p347 = pneg %p257
        %s348 = sand.u32 %s247, 1
        %s349 = scalar_lea.sflag [#allocation3], %s348
        %s350 = sand.u32 %s247, 1
        %s351 = scalar_lea.vmem [#allocation2], %s350
        %p352 = scmp.lt.s32.totalorder %s24, 1
        %s353 = scalar_select %p352, %s24, 1
        %s354 = smul.addr %s353, 4
        %s355 = smul.addr %s354, 8
        %s356 = scalar_lea.vmem %s0, %s355
        %v357 = vld [vmem:[%s356] sm:$0xff]
        %v358 = vld [vmem:[%s356 + $0x8] sm:$0xff]
        %v359 = vld [vmem:[%s356 + $0x10] sm:$0xff]
        %v360 = vld [vmem:[%s356 + $0x18] sm:$0xff]
        %v361 = vld [vmem:[%s1] sm:$0xf]
        %vm362 = vcmask 916480
        %v363 = vsel %vm362, %v358, 0.0
        %v364 = vadd.f32 %v357, %v363
        %365 = vadd.xlane.f32.xlu0 %v364
        %v366 = vpop.xlane.xlu0 %365
        %v367 = vsel %vm362, %v360, 0.0
        %v368 = vadd.f32 %v359, %v367
        %369 = vadd.xlane.f32.xlu0 %v368
        %v370 = vpop.xlane.xlu0 %369
        %v371 = vrcp.pop 240.0
        %v372 = vmul.f32 %v366, %v371
        %v373 = vmul.f32 %v370, %v371
        %v374 = vsub.f32 %v357, %v372
        %v375 = vsub.f32 %v358, %v372
        %v376 = vsub.f32 %v359, %v373
        %v377 = vsub.f32 %v360, %v373
        %v378 = vmul.f32 %v374, %v374
        %v379 = vmul.f32 %v375, %v375
        %v380 = vmul.f32 %v376, %v376
        %v381 = vmul.f32 %v377, %v377
        %v382 = vsel %vm362, %v379, 0.0
        %v383 = vadd.f32 %v378, %v382
        %384 = vadd.xlane.f32.xlu0 %v383
        %v385 = vpop.xlane.xlu0 %384
        %v386 = vsel %vm362, %v381, 0.0
        %v387 = vadd.f32 %v380, %v386
        %388 = vadd.xlane.f32.xlu0 %v387
        %v389 = vpop.xlane.xlu0 %388
        %v390 = vmul.f32 %v385, %v371
        %v391 = vmul.f32 %v389, %v371
        %v392 = vadd.f32 %v390, 1e-05
        %v393 = vadd.f32 %v391, 1e-05
        %v394 = vrsqrt.pop %v392
        %v395 = vrsqrt.pop %v393
        %v396 = vmul.f32 %v374, %v394
        %v397 = vmul.f32 %v375, %v394
        %v398 = vmul.f32 %v376, %v395
        %v399 = vmul.f32 %v377, %v395
        %v401 = vlaneseq
        %v402 = vshrl.u32 %v401, 7
        %v403 = vsub.s32 0, %v402
        %v404 = vrot.slane %v361, %v403
        %v405 = vlaneseq
        %v406 = vshrl.u32 %v405, 7
        %v407 = vsub.s32 2, %v406
        %v408 = vrot.slane %v361, %v407
        %v411 = vlaneseq
        %v412 = vshrl.u32 %v411, 7
        %v413 = vsub.s32 0, %v412
        %v414 = vrot.slane %v404, %v413
        %v415 = vlaneseq
        %v416 = vshrl.u32 %v415, 7
        %v417 = vsub.s32 0, %v416
        %v418 = vrot.slane %v408, %v417
        %v419 = vmul.f32 %v396, %v414
        %v420 = vmul.f32 %v397, %v418
        %v421 = vmul.f32 %v398, %v414
        %v422 = vmul.f32 %v399, %v418
        %v423 = vlaneseq
        %v424 = vshrl.u32 %v423, 7
        %v425 = vsub.s32 1, %v424
        %v426 = vrot.slane %v361, %v425
        %v427 = vlaneseq
        %v428 = vshrl.u32 %v427, 7
        %v429 = vsub.s32 3, %v428
        %v430 = vrot.slane %v361, %v429
        %v433 = vlaneseq
        %v434 = vshrl.u32 %v433, 7
        %v435 = vsub.s32 1, %v434
        %v436 = vrot.slane %v426, %v435
        %v437 = vlaneseq
        %v438 = vshrl.u32 %v437, 7
        %v439 = vsub.s32 1, %v438
        %v440 = vrot.slane %v430, %v439
        %v441 = vadd.f32 %v419, %v436
        %v442 = vadd.f32 %v420, %v440
        %v443 = vadd.f32 %v421, %v436
        %v444 = vadd.f32 %v422, %v440
        %v445 = vld [vmem:[%s2] sm:$0xff]
        %v446 = vld [vmem:[%s2 + $0x8] sm:$0xff]
        %v447 = vld [vmem:[%s2 + $0x10] sm:$0xff]
        %v448 = vld [vmem:[%s2 + $0x18] sm:$0xff]
        %v449 = vld [vmem:[%s2 + $0x20] sm:$0xff]
        %v450 = vld [vmem:[%s2 + $0x28] sm:$0xff]
        %v451 = vld [vmem:[%s2 + $0x30] sm:$0xff]
        %v452 = vld [vmem:[%s2 + $0x38] sm:$0xff]
        %v453 = vld [vmem:[%s2 + $0x40] sm:$0xff]
        %v454 = vld [vmem:[%s2 + $0x48] sm:$0xff]
        %v455 = vld [vmem:[%s2 + $0x50] sm:$0xff]
        %v456 = vld [vmem:[%s2 + $0x58] sm:$0xff]
        %v457 = vld [vmem:[%s2 + $0x60] sm:$0xff]
        %v458 = vld [vmem:[%s2 + $0x68] sm:$0xff]
        %v459 = vld [vmem:[%s2 + $0x70] sm:$0xff]
        %v460 = vld [vmem:[%s2 + $0x78] sm:$0xff]
        %v461 = vld [vmem:[%s2 + $0x80] sm:$0xff]
        %v462 = vld [vmem:[%s2 + $0x88] sm:$0xff]
        %v463 = vld [vmem:[%s2 + $0x90] sm:$0xff]
        %v464 = vld [vmem:[%s2 + $0x98] sm:$0xff]
        %v465 = vld [vmem:[%s2 + $0xa0] sm:$0xff]
        %v466 = vld [vmem:[%s2 + $0xa8] sm:$0xff]
        %v467 = vld [vmem:[%s2 + $0xb0] sm:$0xff]
        %v468 = vld [vmem:[%s2 + $0xb8] sm:$0xff]
        %v469 = vld [vmem:[%s2 + $0xc0] sm:$0xff]
        %v470 = vld [vmem:[%s2 + $0xc8] sm:$0xff]
        %v471 = vld [vmem:[%s2 + $0xd0] sm:$0xff]
        %v472 = vld [vmem:[%s2 + $0xd8] sm:$0xff]
        %v473 = vld [vmem:[%s2 + $0xe0] sm:$0xff]
        %v474 = vld [vmem:[%s2 + $0xe8] sm:$0xff]
        %v475 = vld [vmem:[%s3] sm:$0xff]
        %v476 = vld [vmem:[%s3 + $0x8] sm:$0xff]
        %v477 = vld [vmem:[%s3 + $0x10] sm:$0x1]
        %vm481 = vcmask 1046528
        %v482 = vrot.slane %v475, 1
        %v483 = vrot.slane %v476, 1
        %v484 = vsel %vm481, %v482, %v483
        %v485 = vrot.slane %v477, 1
        %v486 = vsel %vm481, %v483, %v485
        %v490 = vsel %vm362, %v442, 0
        %v493 = vsel %vm362, %v444, 0
        %495 = vmatprep.subr.mxu0 0.0
        %496 = vmatpush1.msra.mxu0 %v460
        %497 = vmatprep.subr.mxu0 0.0
        %498 = vmatpush1.msra.mxu0 %v459
        %499 = vmatprep.subr.mxu0 0.0
        %500 = vmatpush1.msra.mxu0 %v458
        %501 = vmatprep.subr.mxu0 0.0
        %502 = vmatpush1.msra.mxu0 %v457
        %503 = vmatprep.subr.mxu0 0.0
        %504 = vmatpush1.msra.mxu0 %v456
        %505 = vmatprep.subr.mxu0 0.0
        %506 = vmatpush1.msra.mxu0 %v455
        %507 = vmatprep.subr.mxu0 0.0
        %508 = vmatpush1.msra.mxu0 %v454
        %509 = vmatprep.subr.mxu0 0.0
        %510 = vmatpush1.msra.mxu0 %v453
        %511 = vmatprep.subr.mxu0 0.0
        %512 = vmatpush1.msra.mxu0 %v452
        %513 = vmatprep.subr.mxu0 0.0
        %514 = vmatpush1.msra.mxu0 %v451
        %515 = vmatprep.subr.mxu0 0.0
        %516 = vmatpush1.msra.mxu0 %v450
        %517 = vmatprep.subr.mxu0 0.0
        %518 = vmatpush1.msra.mxu0 %v449
        %519 = vmatprep.subr.mxu0 0.0
        %520 = vmatpush1.msra.mxu0 %v448
        %521 = vmatprep.subr.mxu0 0.0
        %522 = vmatpush1.msra.mxu0 %v447
        %523 = vmatprep.subr.mxu0 0.0
        %524 = vmatpush1.msra.mxu0 %v446
        %525 = vmatprep.subr.mxu0 0.0
        %526 = vmatpush1.msra.mxu0 %v445
        %527 = vmatprep.subr.mxu0 0.0
        %528 = vmatpush2.msra.mxu0 0.0
        %529 = vmatprep.subr.mxu0 0.0
        %530 = vmatpush2.msra.mxu0 0.0
        %531 = vmatprep.subr.mxu0 0.0
        %532 = vmatpush2.msra.mxu0 %v474
        %533 = vmatprep.subr.mxu0 0.0
        %534 = vmatpush2.msra.mxu0 %v473
        %535 = vmatprep.subr.mxu0 0.0
        %536 = vmatpush2.msra.mxu0 %v472
        %537 = vmatprep.subr.mxu0 0.0
        %538 = vmatpush2.msra.mxu0 %v471
        %539 = vmatprep.subr.mxu0 0.0
        %540 = vmatpush2.msra.mxu0 %v470
        %541 = vmatprep.subr.mxu0 0.0
        %542 = vmatpush2.msra.mxu0 %v469
        %543 = vmatprep.subr.mxu0 0.0
        %544 = vmatpush2.msra.mxu0 %v468
        %545 = vmatprep.subr.mxu0 0.0
        %546 = vmatpush2.msra.mxu0 %v467
        %547 = vmatprep.subr.mxu0 0.0
        %548 = vmatpush2.msra.mxu0 %v466
        %549 = vmatprep.subr.mxu0 0.0
        %550 = vmatpush2.msra.mxu0 %v465
        %551 = vmatprep.subr.mxu0 0.0
        %552 = vmatpush2.msra.mxu0 %v464
        %553 = vmatprep.subr.mxu0 0.0
        %554 = vmatpush2.msra.mxu0 %v463
        %555 = vmatprep.subr.mxu0 0.0
        %556 = vmatpush2.msra.mxu0 %v462
        %557 = vmatprep.subr.mxu0 0.0
        %558 = vmatpush2.msra.mxu0 %v461
        %559 = vmatprep.mubr.f32.mxu0 %v490
        %560 = vmatmul.mubr.f32.gmra.mxu0 %v441
        %v561 = vpop.f32.mrf.mxu0
        %v562 = vadd.f32 %v484, %v561
        %v563 = vpop.f32.mrf.mxu0
        %564 = vmatprep.mubr.f32.mxu0 %v493
        %565 = vmatmul.mubr.f32.gmra.mxu0 %v443
        %v566 = vpop.f32.mrf.mxu0
        %v567 = vadd.f32 %v486, %v566
        %v568 = vpop.f32.mrf.mxu0
        %569 = vdwg.mxu0
        %vm572 = vcmask 1040384
        %v573 = vrot.slane %v562, 7
        %v574 = vrot.slane %v567, 7
        %v575 = vsel %vm572, %v573, %v574
        %v579 = vsel %vm572, %v475, %v573
        %v580 = vld [vmem:[%s4] sm:$0x3f]
        %vm581 = vcmask 261120
        %v582 = vsel %vm581, %v579, 0.0
        %583 = vadd.xlane.f32.xlu0 %v582
        %v584 = vpop.xlane.xlu0 %583
        %v585 = vsel %vm581, %v575, 0.0
        %586 = vadd.xlane.f32.xlu0 %v585
        %v587 = vpop.xlane.xlu0 %586
        %vm588 = vcmask 253952
        %v589 = vsel %vm588, %v574, 0.0
        %590 = vadd.xlane.f32.xlu0 %v589
        %v591 = vpop.xlane.xlu0 %590
        %v592 = vrcp.pop 32.0
        %v593 = vmul.f32 %v584, %v592
        %v594 = vmul.f32 %v587, %v592
        %v595 = vmul.f32 %v591, %v592
        %v596 = vsub.f32 %v579, %v593
        %v597 = vsub.f32 %v575, %v594
        %v598 = vsub.f32 %v574, %v595
        %v599 = vmul.f32 %v596, %v596
        %v600 = vmul.f32 %v597, %v597
        %v601 = vmul.f32 %v598, %v598
        %v602 = vsel %vm581, %v599, 0.0
        %603 = vadd.xlane.f32.xlu0 %v602
        %v604 = vpop.xlane.xlu0 %603
        %v605 = vsel %vm581, %v600, 0.0
        %606 = vadd.xlane.f32.xlu0 %v605
        %v607 = vpop.xlane.xlu0 %606
        %v608 = vsel %vm588, %v601, 0.0
        %609 = vadd.xlane.f32.xlu0 %v608
        %v610 = vpop.xlane.xlu0 %609
        %v611 = vmul.f32 %v604, %v592
        %v612 = vmul.f32 %v607, %v592
        %v613 = vmul.f32 %v610, %v592
        %v614 = vadd.f32 %v611, 1e-05
        %v615 = vadd.f32 %v612, 1e-05
        %v616 = vadd.f32 %v613, 1e-05
        %v617 = vrsqrt.pop %v614
        %v618 = vrsqrt.pop %v615
        %v619 = vrsqrt.pop %v616
        %v620 = vmul.f32 %v596, %v617
        %v621 = vmul.f32 %v597, %v618
        %v622 = vmul.f32 %v598, %v619
        %v623 = vlaneseq
        %v624 = vshrl.u32 %v623, 7
        %v625 = vsub.s32 0, %v624
        %v626 = vrot.slane %v580, %v625
        %v627 = vmul.f32 %v620, %v626
        %v628 = vmul.f32 %v621, %v626
        %v629 = vmul.f32 %v622, %v626
        %v630 = vlaneseq
        %v631 = vshrl.u32 %v630, 7
        %v632 = vsub.s32 1, %v631
        %v633 = vrot.slane %v580, %v632
        %v634 = vadd.f32 %v627, %v633
        %v635 = vadd.f32 %v628, %v633
        %v636 = vadd.f32 %v629, %v633
        %v637 = vld [vmem:[%s5] sm:$0xff]
        %v638 = vld [vmem:[%s5 + $0x8] sm:$0xff]
        %v639 = vld [vmem:[%s5 + $0x10] sm:$0xff]
        %v640 = vld [vmem:[%s5 + $0x18] sm:$0xff]
        %v642 = vsel %vm581, %v634, 0
        %v645 = vsel %vm581, %v635, 0
        %v648 = vsel %vm581, %v636, 0
        %650 = vmatprep.subr.mxu0 0.0
        %651 = vmatpush1.msra.mxu0 0.0
        %652 = vmatprep.subr.mxu0 0.0
        %653 = vmatpush1.msra.mxu0 0.0
        %654 = vmatprep.subr.mxu0 0.0
        %655 = vmatpush1.msra.mxu0 0.0
        %656 = vmatprep.subr.mxu0 0.0
        %657 = vmatpush1.msra.mxu0 0.0
        %658 = vmatprep.subr.mxu0 0.0
        %659 = vmatpush1.msra.mxu0 0.0
        %660 = vmatprep.subr.mxu0 0.0
        %661 = vmatpush1.msra.mxu0 0.0
        %662 = vmatprep.subr.mxu0 0.0
        %663 = vmatpush1.msra.mxu0 0.0
        %664 = vmatprep.subr.mxu0 0.0
        %665 = vmatpush1.msra.mxu0 0.0
        %666 = vmatprep.subr.mxu0 0.0
        %667 = vmatpush1.msra.mxu0 0.0
        %668 = vmatprep.subr.mxu0 0.0
        %669 = vmatpush1.msra.mxu0 0.0
        %670 = vmatprep.subr.mxu0 0.0
        %671 = vmatpush1.msra.mxu0 0.0
        %672 = vmatprep.subr.mxu0 0.0
        %673 = vmatpush1.msra.mxu0 0.0
        %674 = vmatprep.subr.mxu0 0.0
        %675 = vmatpush1.msra.mxu0 %v640
        %676 = vmatprep.subr.mxu0 0.0
        %677 = vmatpush1.msra.mxu0 %v639
        %678 = vmatprep.subr.mxu0 0.0
        %679 = vmatpush1.msra.mxu0 %v638
        %680 = vmatprep.subr.mxu0 0.0
        %681 = vmatpush1.msra.mxu0 %v637
        %682 = vmatprep.subr.mxu0 0.0
        %683 = vmatpush2.msra.mxu0 0.0
        %684 = vmatprep.subr.mxu0 0.0
        %685 = vmatpush2.msra.mxu0 0.0
        %686 = vmatprep.subr.mxu0 0.0
        %687 = vmatpush2.msra.mxu0 0.0
        %688 = vmatprep.subr.mxu0 0.0
        %689 = vmatpush2.msra.mxu0 0.0
        %690 = vmatprep.subr.mxu0 0.0
        %691 = vmatpush2.msra.mxu0 0.0
        %692 = vmatprep.subr.mxu0 0.0
        %693 = vmatpush2.msra.mxu0 0.0
        %694 = vmatprep.subr.mxu0 0.0
        %695 = vmatpush2.msra.mxu0 0.0
        %696 = vmatprep.subr.mxu0 0.0
        %697 = vmatpush2.msra.mxu0 0.0
        %698 = vmatprep.subr.mxu0 0.0
        %699 = vmatpush2.msra.mxu0 0.0
        %700 = vmatprep.subr.mxu0 0.0
        %701 = vmatpush2.msra.mxu0 0.0
        %702 = vmatprep.subr.mxu0 0.0
        %703 = vmatpush2.msra.mxu0 0.0
        %704 = vmatprep.subr.mxu0 0.0
        %705 = vmatpush2.msra.mxu0 0.0
        %706 = vmatprep.subr.mxu0 0.0
        %707 = vmatpush2.msra.mxu0 0.0
        %708 = vmatprep.subr.mxu0 0.0
        %709 = vmatpush2.msra.mxu0 0.0
        %710 = vmatprep.subr.mxu0 0.0
        %711 = vmatpush2.msra.mxu0 0.0
        %712 = vmatprep.subr.mxu0 0.0
        %713 = vmatpush2.msra.mxu0 0.0
        %714 = vmatprep.mubr.f32.mxu0 0.0
        %715 = vmatmul.mubr.f32.gmra.mxu0 %v642
        %v716 = vpop.f32.mrf.mxu0
        %v717 = vadd.f32 0.0, %v716
        %v718 = vpop.f32.mrf.mxu0
        %719 = vmatprep.mubr.f32.mxu0 0.0
        %720 = vmatmul.mubr.f32.gmra.mxu0 %v645
        %v721 = vpop.f32.mrf.mxu0
        %v722 = vadd.f32 0.0, %v721
        %v723 = vpop.f32.mrf.mxu0
        %724 = vmatprep.mubr.f32.mxu0 0.0
        %725 = vmatmul.mubr.f32.gmra.mxu0 %v648
        %v726 = vpop.f32.mrf.mxu0
        %v727 = vadd.f32 0.0, %v726
        %v728 = vpop.f32.mrf.mxu0
        %729 = vdwg.mxu0
        %733 = vrot.lane.b32.xlu0 %v717, 96
        %v734 = vpop.permute.xlu0 %733
        %735 = vrot.lane.b32.xlu0 %v722, 96
        %v736 = vpop.permute.xlu0 %735
        %737 = vrot.lane.b32.xlu0 %v727, 96
        %v738 = vpop.permute.xlu0 %737
        %vm739 = vcmask 64512
        %v740 = vsel %vm739, %v717, 0
        %v742 = vsel %vm739, %v722, 0
        %v744 = vsel %vm739, %v727, 0
        %v746 = vsel %vm739, %v734, 0
        %v748 = vsel %vm739, %v736, 0
        %v750 = vsel %vm739, %v738, 0
        %752 = vmatprep.subr.mxu0 0.0
        %753 = vmatpush1.xpose.msra.mxu0 0.0
        %754 = vmatprep.subr.mxu0 0.0
        %755 = vmatpush1.xpose.msra.mxu0 0.0
        %756 = vmatprep.subr.mxu0 0.0
        %757 = vmatpush1.xpose.msra.mxu0 0.0
        %758 = vmatprep.subr.mxu0 0.0
        %759 = vmatpush1.xpose.msra.mxu0 0.0
        %760 = vmatprep.subr.mxu0 0.0
        %761 = vmatpush1.xpose.msra.mxu0 0.0
        %762 = vmatprep.subr.mxu0 0.0
        %763 = vmatpush1.xpose.msra.mxu0 0.0
        %764 = vmatprep.subr.mxu0 0.0
        %765 = vmatpush1.xpose.msra.mxu0 0.0
        %766 = vmatprep.subr.mxu0 0.0
        %767 = vmatpush1.xpose.msra.mxu0 0.0
        %768 = vmatprep.subr.mxu0 0.0
        %769 = vmatpush1.xpose.msra.mxu0 0.0
        %770 = vmatprep.subr.mxu0 0.0
        %771 = vmatpush1.xpose.msra.mxu0 0.0
        %772 = vmatprep.subr.mxu0 0.0
        %773 = vmatpush1.xpose.msra.mxu0 0.0
        %774 = vmatprep.subr.mxu0 0.0
        %775 = vmatpush1.xpose.msra.mxu0 0.0
        %776 = vmatprep.subr.mxu0 0.0
        %777 = vmatpush1.xpose.msra.mxu0 0.0
        %778 = vmatprep.subr.mxu0 0.0
        %779 = vmatpush1.xpose.msra.mxu0 %v750
        %780 = vmatprep.subr.mxu0 0.0
        %781 = vmatpush1.xpose.msra.mxu0 %v748
        %782 = vmatprep.subr.mxu0 0.0
        %783 = vmatpush1.xpose.msra.mxu0 %v746
        %784 = vmatprep.subr.mxu0 0.0
        %785 = vmatpush2.xpose.msra.mxu0 0.0
        %786 = vmatprep.subr.mxu0 0.0
        %787 = vmatpush2.xpose.msra.mxu0 0.0
        %788 = vmatprep.subr.mxu0 0.0
        %789 = vmatpush2.xpose.msra.mxu0 0.0
        %790 = vmatprep.subr.mxu0 0.0
        %791 = vmatpush2.xpose.msra.mxu0 0.0
        %792 = vmatprep.subr.mxu0 0.0
        %793 = vmatpush2.xpose.msra.mxu0 0.0
        %794 = vmatprep.subr.mxu0 0.0
        %795 = vmatpush2.xpose.msra.mxu0 0.0
        %796 = vmatprep.subr.mxu0 0.0
        %797 = vmatpush2.xpose.msra.mxu0 0.0
        %798 = vmatprep.subr.mxu0 0.0
        %799 = vmatpush2.xpose.msra.mxu0 0.0
        %800 = vmatprep.subr.mxu0 0.0
        %801 = vmatpush2.xpose.msra.mxu0 0.0
        %802 = vmatprep.subr.mxu0 0.0
        %803 = vmatpush2.xpose.msra.mxu0 0.0
        %804 = vmatprep.subr.mxu0 0.0
        %805 = vmatpush2.xpose.msra.mxu0 0.0
        %806 = vmatprep.subr.mxu0 0.0
        %807 = vmatpush2.xpose.msra.mxu0 0.0
        %808 = vmatprep.subr.mxu0 0.0
        %809 = vmatpush2.xpose.msra.mxu0 0.0
        %810 = vmatprep.subr.mxu0 0.0
        %811 = vmatpush2.xpose.msra.mxu0 0.0
        %812 = vmatprep.subr.mxu0 0.0
        %813 = vmatpush2.xpose.msra.mxu0 0.0
        %814 = vmatprep.subr.mxu0 0.0
        %815 = vmatpush2.xpose.msra.mxu0 0.0
        %816 = vmatprep.mubr.f32.mxu0 0.0
        %817 = vmatmul.mubr.f32.gmra.mxu0 %v740
        %v818 = vpop.f32.mrf.mxu0
        %v819 = vadd.f32 0.0, %v818
        %v820 = vpop.f32.mrf.mxu0
        %821 = vmatprep.mubr.f32.mxu0 0.0
        %822 = vmatmul.mubr.f32.gmra.mxu0 %v742
        %v823 = vpop.f32.mrf.mxu0
        %v824 = vadd.f32 0.0, %v823
        %v825 = vpop.f32.mrf.mxu0
        %826 = vmatprep.mubr.f32.mxu0 0.0
        %827 = vmatmul.mubr.f32.gmra.mxu0 %v744
        %v828 = vpop.f32.mrf.mxu0
        %v829 = vadd.f32 0.0, %v828
        %v830 = vpop.f32.mrf.mxu0
        %831 = vdwg.mxu0
        %vm832 = vcmask 138240
        %v833 = vsel %vm832, %v819, -inf
        %834 = vmax.xlane.f32.xlu0 %v833
        %v835 = vpop.xlane.xlu0 %834
        %v836 = vsel %vm832, %v824, -inf
        %837 = vmax.xlane.f32.xlu0 %v836
        %v838 = vpop.xlane.xlu0 %837
        %vm839 = vcmask 131072
        %v840 = vsel %vm839, %v829, -inf
        %841 = vmax.xlane.f32.xlu0 %v840
        %v842 = vpop.xlane.xlu0 %841
        %v843 = vsub.f32 %v819, %v835
        %v844 = vsub.f32 %v824, %v838
        %v845 = vsub.f32 %v829, %v842
        %v846 = vmul.f32 %v843, 1.442695
        %v847 = vpow.pop %v846
        %v848 = vmul.f32 %v844, 1.442695
        %v849 = vpow.pop %v848
        %v850 = vmul.f32 %v845, 1.442695
        %v851 = vpow.pop %v850
        %v852 = vsel %vm832, %v847, 0.0
        %853 = vadd.xlane.f32.xlu0 %v852
        %v854 = vpop.xlane.xlu0 %853
        %v855 = vsel %vm832, %v849, 0.0
        %856 = vadd.xlane.f32.xlu0 %v855
        %v857 = vpop.xlane.xlu0 %856
        %v858 = vsel %vm839, %v851, 0.0
        %859 = vadd.xlane.f32.xlu0 %v858
        %v860 = vpop.xlane.xlu0 %859
        %v861 = vrcp.pop %v854
        %v862 = vrcp.pop %v857
        %v863 = vrcp.pop %v860
        %v864 = vmul.f32 %v847, %v861
        %v865 = vmul.f32 %v849, %v862
        %v866 = vmul.f32 %v851, %v863
        %867 = vrot.lane.b32.xlu0 %v717, 64
        %v868 = vpop.permute.xlu0 %867
        %869 = vrot.lane.b32.xlu0 %v722, 64
        %v870 = vpop.permute.xlu0 %869
        %871 = vrot.lane.b32.xlu0 %v727, 64
        %v872 = vpop.permute.xlu0 %871
        %v876 = vsel %vm832, %v864, 0
        %v879 = vsel %vm832, %v865, 0
        %v882 = vsel %vm832, %v866, 0
        %v884 = vsel %vm572, %v872, 0
        %886 = vmatprep.subr.mxu0 0.0
        %887 = vmatpush1.msra.mxu0 0.0
        %888 = vmatprep.subr.mxu0 0.0
        %889 = vmatpush1.msra.mxu0 0.0
        %890 = vmatprep.subr.mxu0 0.0
        %891 = vmatpush1.msra.mxu0 0.0
        %892 = vmatprep.subr.mxu0 0.0
        %893 = vmatpush1.msra.mxu0 0.0
        %894 = vmatprep.subr.mxu0 0.0
        %895 = vmatpush1.msra.mxu0 0.0
        %896 = vmatprep.subr.mxu0 0.0
        %897 = vmatpush1.msra.mxu0 0.0
        %898 = vmatprep.subr.mxu0 0.0
        %899 = vmatpush1.msra.mxu0 0.0
        %900 = vmatprep.subr.mxu0 0.0
        %901 = vmatpush1.msra.mxu0 0.0
        %902 = vmatprep.subr.mxu0 0.0
        %903 = vmatpush1.msra.mxu0 0.0
        %904 = vmatprep.subr.mxu0 0.0
        %905 = vmatpush1.msra.mxu0 0.0
        %906 = vmatprep.subr.mxu0 0.0
        %907 = vmatpush1.msra.mxu0 0.0
        %908 = vmatprep.subr.mxu0 0.0
        %909 = vmatpush1.msra.mxu0 0.0
        %910 = vmatprep.subr.mxu0 0.0
        %911 = vmatpush1.msra.mxu0 0.0
        %912 = vmatprep.subr.mxu0 0.0
        %913 = vmatpush1.msra.mxu0 %v884
        %914 = vmatprep.subr.mxu0 0.0
        %915 = vmatpush1.msra.mxu0 %v870
        %916 = vmatprep.subr.mxu0 0.0
        %917 = vmatpush1.msra.mxu0 %v868
        %918 = vmatprep.subr.mxu0 0.0
        %919 = vmatpush2.msra.mxu0 0.0
        %920 = vmatprep.subr.mxu0 0.0
        %921 = vmatpush2.msra.mxu0 0.0
        %922 = vmatprep.subr.mxu0 0.0
        %923 = vmatpush2.msra.mxu0 0.0
        %924 = vmatprep.subr.mxu0 0.0
        %925 = vmatpush2.msra.mxu0 0.0
        %926 = vmatprep.subr.mxu0 0.0
        %927 = vmatpush2.msra.mxu0 0.0
        %928 = vmatprep.subr.mxu0 0.0
        %929 = vmatpush2.msra.mxu0 0.0
        %930 = vmatprep.subr.mxu0 0.0
        %931 = vmatpush2.msra.mxu0 0.0
        %932 = vmatprep.subr.mxu0 0.0
        %933 = vmatpush2.msra.mxu0 0.0
        %934 = vmatprep.subr.mxu0 0.0
        %935 = vmatpush2.msra.mxu0 0.0
        %936 = vmatprep.subr.mxu0 0.0
        %937 = vmatpush2.msra.mxu0 0.0
        %938 = vmatprep.subr.mxu0 0.0
        %939 = vmatpush2.msra.mxu0 0.0
        %940 = vmatprep.subr.mxu0 0.0
        %941 = vmatpush2.msra.mxu0 0.0
        %942 = vmatprep.subr.mxu0 0.0
        %943 = vmatpush2.msra.mxu0 0.0
        %944 = vmatprep.subr.mxu0 0.0
        %945 = vmatpush2.msra.mxu0 0.0
        %946 = vmatprep.subr.mxu0 0.0
        %947 = vmatpush2.msra.mxu0 0.0
        %948 = vmatprep.subr.mxu0 0.0
        %949 = vmatpush2.msra.mxu0 0.0
        %950 = vmatprep.mubr.f32.mxu0 0.0
        %951 = vmatmul.mubr.f32.gmra.mxu0 %v876
        %v952 = vpop.f32.mrf.mxu0
        %v953 = vadd.f32 0.0, %v952
        %v954 = vpop.f32.mrf.mxu0
        %955 = vmatprep.mubr.f32.mxu0 0.0
        %956 = vmatmul.mubr.f32.gmra.mxu0 %v879
        %v957 = vpop.f32.mrf.mxu0
        %v958 = vadd.f32 0.0, %v957
        %v959 = vpop.f32.mrf.mxu0
        %960 = vmatprep.mubr.f32.mxu0 0.0
        %961 = vmatmul.mubr.f32.gmra.mxu0 %v882
        %v962 = vpop.f32.mrf.mxu0
        %v963 = vadd.f32 0.0, %v962
        %v964 = vpop.f32.mrf.mxu0
        %965 = vdwg.mxu0
        %966 = vrot.lane.b32.xlu0 %v717, 120
        %v967 = vpop.permute.xlu0 %966
        %968 = vrot.lane.b32.xlu0 %v722, 120
        %v969 = vpop.permute.xlu0 %968
        %970 = vrot.lane.b32.xlu0 %v727, 120
        %v971 = vpop.permute.xlu0 %970
        %972 = vrot.lane.b32.xlu0 %v717, 88
        %v973 = vpop.permute.xlu0 %972
        %974 = vrot.lane.b32.xlu0 %v722, 88
        %v975 = vpop.permute.xlu0 %974
        %976 = vrot.lane.b32.xlu0 %v727, 88
        %v977 = vpop.permute.xlu0 %976
        %v978 = vsel %vm739, %v967, 0
        %v980 = vsel %vm739, %v969, 0
        %v982 = vsel %vm739, %v971, 0
        %v984 = vsel %vm739, %v973, 0
        %v986 = vsel %vm739, %v975, 0
        %v988 = vsel %vm739, %v977, 0
        %990 = vmatprep.subr.mxu0 0.0
        %991 = vmatpush1.xpose.msra.mxu0 0.0
        %992 = vmatprep.subr.mxu0 0.0
        %993 = vmatpush1.xpose.msra.mxu0 0.0
        %994 = vmatprep.subr.mxu0 0.0
        %995 = vmatpush1.xpose.msra.mxu0 0.0
        %996 = vmatprep.subr.mxu0 0.0
        %997 = vmatpush1.xpose.msra.mxu0 0.0
        %998 = vmatprep.subr.mxu0 0.0
        %999 = vmatpush1.xpose.msra.mxu0 0.0
        %1000 = vmatprep.subr.mxu0 0.0
        %1001 = vmatpush1.xpose.msra.mxu0 0.0
        %1002 = vmatprep.subr.mxu0 0.0
        %1003 = vmatpush1.xpose.msra.mxu0 0.0
        %1004 = vmatprep.subr.mxu0 0.0
        %1005 = vmatpush1.xpose.msra.mxu0 0.0
        %1006 = vmatprep.subr.mxu0 0.0
        %1007 = vmatpush1.xpose.msra.mxu0 0.0
        %1008 = vmatprep.subr.mxu0 0.0
        %1009 = vmatpush1.xpose.msra.mxu0 0.0
        %1010 = vmatprep.subr.mxu0 0.0
        %1011 = vmatpush1.xpose.msra.mxu0 0.0
        %1012 = vmatprep.subr.mxu0 0.0
        %1013 = vmatpush1.xpose.msra.mxu0 0.0
        %1014 = vmatprep.subr.mxu0 0.0
        %1015 = vmatpush1.xpose.msra.mxu0 0.0
        %1016 = vmatprep.subr.mxu0 0.0
        %1017 = vmatpush1.xpose.msra.mxu0 %v988
        %1018 = vmatprep.subr.mxu0 0.0
        %1019 = vmatpush1.xpose.msra.mxu0 %v986
        %1020 = vmatprep.subr.mxu0 0.0
        %1021 = vmatpush1.xpose.msra.mxu0 %v984
        %1022 = vmatprep.subr.mxu0 0.0
        %1023 = vmatpush2.xpose.msra.mxu0 0.0
        %1024 = vmatprep.subr.mxu0 0.0
        %1025 = vmatpush2.xpose.msra.mxu0 0.0
        %1026 = vmatprep.subr.mxu0 0.0
        %1027 = vmatpush2.xpose.msra.mxu0 0.0
        %1028 = vmatprep.subr.mxu0 0.0
        %1029 = vmatpush2.xpose.msra.mxu0 0.0
        %1030 = vmatprep.subr.mxu0 0.0
        %1031 = vmatpush2.xpose.msra.mxu0 0.0
        %1032 = vmatprep.subr.mxu0 0.0
        %1033 = vmatpush2.xpose.msra.mxu0 0.0
        %1034 = vmatprep.subr.mxu0 0.0
        %1035 = vmatpush2.xpose.msra.mxu0 0.0
        %1036 = vmatprep.subr.mxu0 0.0
        %1037 = vmatpush2.xpose.msra.mxu0 0.0
        %1038 = vmatprep.subr.mxu0 0.0
        %1039 = vmatpush2.xpose.msra.mxu0 0.0
        %1040 = vmatprep.subr.mxu0 0.0
        %1041 = vmatpush2.xpose.msra.mxu0 0.0
        %1042 = vmatprep.subr.mxu0 0.0
        %1043 = vmatpush2.xpose.msra.mxu0 0.0
        %1044 = vmatprep.subr.mxu0 0.0
        %1045 = vmatpush2.xpose.msra.mxu0 0.0
        %1046 = vmatprep.subr.mxu0 0.0
        %1047 = vmatpush2.xpose.msra.mxu0 0.0
        %1048 = vmatprep.subr.mxu0 0.0
        %1049 = vmatpush2.xpose.msra.mxu0 0.0
        %1050 = vmatprep.subr.mxu0 0.0
        %1051 = vmatpush2.xpose.msra.mxu0 0.0
        %1052 = vmatprep.subr.mxu0 0.0
        %1053 = vmatpush2.xpose.msra.mxu0 0.0
        %1054 = vmatprep.mubr.f32.mxu0 0.0
        %1055 = vmatmul.mubr.f32.gmra.mxu0 %v978
        %v1056 = vpop.f32.mrf.mxu0
        %v1057 = vadd.f32 0.0, %v1056
        %v1058 = vpop.f32.mrf.mxu0
        %1059 = vmatprep.mubr.f32.mxu0 0.0
        %1060 = vmatmul.mubr.f32.gmra.mxu0 %v980
        %v1061 = vpop.f32.mrf.mxu0
        %v1062 = vadd.f32 0.0, %v1061
        %v1063 = vpop.f32.mrf.mxu0
        %1064 = vmatprep.mubr.f32.mxu0 0.0
        %1065 = vmatmul.mubr.f32.gmra.mxu0 %v982
        %v1066 = vpop.f32.mrf.mxu0
        %v1067 = vadd.f32 0.0, %v1066
        %v1068 = vpop.f32.mrf.mxu0
        %1069 = vdwg.mxu0
        %v1070 = vsel %vm832, %v1057, -inf
        %1071 = vmax.xlane.f32.xlu0 %v1070
        %v1072 = vpop.xlane.xlu0 %1071
        %v1073 = vsel %vm832, %v1062, -inf
        %1074 = vmax.xlane.f32.xlu0 %v1073
        %v1075 = vpop.xlane.xlu0 %1074
        %v1076 = vsel %vm839, %v1067, -inf
        %1077 = vmax.xlane.f32.xlu0 %v1076
        %v1078 = vpop.xlane.xlu0 %1077
        %v1079 = vsub.f32 %v1057, %v1072
        %v1080 = vsub.f32 %v1062, %v1075
        %v1081 = vsub.f32 %v1067, %v1078
        %v1082 = vmul.f32 %v1079, 1.442695
        %v1083 = vpow.pop %v1082
        %v1084 = vmul.f32 %v1080, 1.442695
        %v1085 = vpow.pop %v1084
        %v1086 = vmul.f32 %v1081, 1.442695
        %v1087 = vpow.pop %v1086
        %v1088 = vsel %vm832, %v1083, 0.0
        %1089 = vadd.xlane.f32.xlu0 %v1088
        %v1090 = vpop.xlane.xlu0 %1089
        %v1091 = vsel %vm832, %v1085, 0.0
        %1092 = vadd.xlane.f32.xlu0 %v1091
        %v1093 = vpop.xlane.xlu0 %1092
        %v1094 = vsel %vm839, %v1087, 0.0
        %1095 = vadd.xlane.f32.xlu0 %v1094
        %v1096 = vpop.xlane.xlu0 %1095
        %v1097 = vrcp.pop %v1090
        %v1098 = vrcp.pop %v1093
        %v1099 = vrcp.pop %v1096
        %v1100 = vmul.f32 %v1083, %v1097
        %v1101 = vmul.f32 %v1085, %v1098
        %v1102 = vmul.f32 %v1087, %v1099
        %1103 = vrot.lane.b32.xlu0 %v717, 56
        %v1104 = vpop.permute.xlu0 %1103
        %1105 = vrot.lane.b32.xlu0 %v722, 56
        %v1106 = vpop.permute.xlu0 %1105
        %1107 = vrot.lane.b32.xlu0 %v727, 56
        %v1108 = vpop.permute.xlu0 %1107
        %v1112 = vsel %vm832, %v1100, 0
        %v1115 = vsel %vm832, %v1101, 0
        %v1118 = vsel %vm832, %v1102, 0
        %v1120 = vsel %vm572, %v1108, 0
        %1122 = vmatprep.subr.mxu0 0.0
        %1123 = vmatpush1.msra.mxu0 0.0
        %1124 = vmatprep.subr.mxu0 0.0
        %1125 = vmatpush1.msra.mxu0 0.0
        %1126 = vmatprep.subr.mxu0 0.0
        %1127 = vmatpush1.msra.mxu0 0.0
        %1128 = vmatprep.subr.mxu0 0.0
        %1129 = vmatpush1.msra.mxu0 0.0
        %1130 = vmatprep.subr.mxu0 0.0
        %1131 = vmatpush1.msra.mxu0 0.0
        %1132 = vmatprep.subr.mxu0 0.0
        %1133 = vmatpush1.msra.mxu0 0.0
        %1134 = vmatprep.subr.mxu0 0.0
        %1135 = vmatpush1.msra.mxu0 0.0
        %1136 = vmatprep.subr.mxu0 0.0
        %1137 = vmatpush1.msra.mxu0 0.0
        %1138 = vmatprep.subr.mxu0 0.0
        %1139 = vmatpush1.msra.mxu0 0.0
        %1140 = vmatprep.subr.mxu0 0.0
        %1141 = vmatpush1.msra.mxu0 0.0
        %1142 = vmatprep.subr.mxu0 0.0
        %1143 = vmatpush1.msra.mxu0 0.0
        %1144 = vmatprep.subr.mxu0 0.0
        %1145 = vmatpush1.msra.mxu0 0.0
        %1146 = vmatprep.subr.mxu0 0.0
        %1147 = vmatpush1.msra.mxu0 0.0
        %1148 = vmatprep.subr.mxu0 0.0
        %1149 = vmatpush1.msra.mxu0 %v1120
        %1150 = vmatprep.subr.mxu0 0.0
        %1151 = vmatpush1.msra.mxu0 %v1106
        %1152 = vmatprep.subr.mxu0 0.0
        %1153 = vmatpush1.msra.mxu0 %v1104
        %1154 = vmatprep.subr.mxu0 0.0
        %1155 = vmatpush2.msra.mxu0 0.0
        %1156 = vmatprep.subr.mxu0 0.0
        %1157 = vmatpush2.msra.mxu0 0.0
        %1158 = vmatprep.subr.mxu0 0.0
        %1159 = vmatpush2.msra.mxu0 0.0
        %1160 = vmatprep.subr.mxu0 0.0
        %1161 = vmatpush2.msra.mxu0 0.0
        %1162 = vmatprep.subr.mxu0 0.0
        %1163 = vmatpush2.msra.mxu0 0.0
        %1164 = vmatprep.subr.mxu0 0.0
        %1165 = vmatpush2.msra.mxu0 0.0
        %1166 = vmatprep.subr.mxu0 0.0
        %1167 = vmatpush2.msra.mxu0 0.0
        %1168 = vmatprep.subr.mxu0 0.0
        %1169 = vmatpush2.msra.mxu0 0.0
        %1170 = vmatprep.subr.mxu0 0.0
        %1171 = vmatpush2.msra.mxu0 0.0
        %1172 = vmatprep.subr.mxu0 0.0
        %1173 = vmatpush2.msra.mxu0 0.0
        %1174 = vmatprep.subr.mxu0 0.0
        %1175 = vmatpush2.msra.mxu0 0.0
        %1176 = vmatprep.subr.mxu0 0.0
        %1177 = vmatpush2.msra.mxu0 0.0
        %1178 = vmatprep.subr.mxu0 0.0
        %1179 = vmatpush2.msra.mxu0 0.0
        %1180 = vmatprep.subr.mxu0 0.0
        %1181 = vmatpush2.msra.mxu0 0.0
        %1182 = vmatprep.subr.mxu0 0.0
        %1183 = vmatpush2.msra.mxu0 0.0
        %1184 = vmatprep.subr.mxu0 0.0
        %1185 = vmatpush2.msra.mxu0 0.0
        %1186 = vmatprep.mubr.f32.mxu0 0.0
        %1187 = vmatmul.mubr.f32.gmra.mxu0 %v1112
        %v1188 = vpop.f32.mrf.mxu0
        %v1189 = vadd.f32 0.0, %v1188
        %v1190 = vpop.f32.mrf.mxu0
        %1191 = vmatprep.mubr.f32.mxu0 0.0
        %1192 = vmatmul.mubr.f32.gmra.mxu0 %v1115
        %v1193 = vpop.f32.mrf.mxu0
        %v1194 = vadd.f32 0.0, %v1193
        %v1195 = vpop.f32.mrf.mxu0
        %1196 = vmatprep.mubr.f32.mxu0 0.0
        %1197 = vmatmul.mubr.f32.gmra.mxu0 %v1118
        %v1198 = vpop.f32.mrf.mxu0
        %v1199 = vadd.f32 0.0, %v1198
        %v1200 = vpop.f32.mrf.mxu0
        %1201 = vdwg.mxu0
        %1202 = vrot.lane.b32.xlu0 %v717, 112
        %v1203 = vpop.permute.xlu0 %1202
        %1204 = vrot.lane.b32.xlu0 %v722, 112
        %v1205 = vpop.permute.xlu0 %1204
        %1206 = vrot.lane.b32.xlu0 %v727, 112
        %v1207 = vpop.permute.xlu0 %1206
        %1208 = vrot.lane.b32.xlu0 %v717, 80
        %v1209 = vpop.permute.xlu0 %1208
        %1210 = vrot.lane.b32.xlu0 %v722, 80
        %v1211 = vpop.permute.xlu0 %1210
        %1212 = vrot.lane.b32.xlu0 %v727, 80
        %v1213 = vpop.permute.xlu0 %1212
        %v1214 = vsel %vm739, %v1203, 0
        %v1216 = vsel %vm739, %v1205, 0
        %v1218 = vsel %vm739, %v1207, 0
        %v1220 = vsel %vm739, %v1209, 0
        %v1222 = vsel %vm739, %v1211, 0
        %v1224 = vsel %vm739, %v1213, 0
        %1226 = vmatprep.subr.mxu0 0.0
        %1227 = vmatpush1.xpose.msra.mxu0 0.0
        %1228 = vmatprep.subr.mxu0 0.0
        %1229 = vmatpush1.xpose.msra.mxu0 0.0
        %1230 = vmatprep.subr.mxu0 0.0
        %1231 = vmatpush1.xpose.msra.mxu0 0.0
        %1232 = vmatprep.subr.mxu0 0.0
        %1233 = vmatpush1.xpose.msra.mxu0 0.0
        %1234 = vmatprep.subr.mxu0 0.0
        %1235 = vmatpush1.xpose.msra.mxu0 0.0
        %1236 = vmatprep.subr.mxu0 0.0
        %1237 = vmatpush1.xpose.msra.mxu0 0.0
        %1238 = vmatprep.subr.mxu0 0.0
        %1239 = vmatpush1.xpose.msra.mxu0 0.0
        %1240 = vmatprep.subr.mxu0 0.0
        %1241 = vmatpush1.xpose.msra.mxu0 0.0
        %1242 = vmatprep.subr.mxu0 0.0
        %1243 = vmatpush1.xpose.msra.mxu0 0.0
        %1244 = vmatprep.subr.mxu0 0.0
        %1245 = vmatpush1.xpose.msra.mxu0 0.0
        %1246 = vmatprep.subr.mxu0 0.0
        %1247 = vmatpush1.xpose.msra.mxu0 0.0
        %1248 = vmatprep.subr.mxu0 0.0
        %1249 = vmatpush1.xpose.msra.mxu0 0.0
        %1250 = vmatprep.subr.mxu0 0.0
        %1251 = vmatpush1.xpose.msra.mxu0 0.0
        %1252 = vmatprep.subr.mxu0 0.0
        %1253 = vmatpush1.xpose.msra.mxu0 %v1224
        %1254 = vmatprep.subr.mxu0 0.0
        %1255 = vmatpush1.xpose.msra.mxu0 %v1222
        %1256 = vmatprep.subr.mxu0 0.0
        %1257 = vmatpush1.xpose.msra.mxu0 %v1220
        %1258 = vmatprep.subr.mxu0 0.0
        %1259 = vmatpush2.xpose.msra.mxu0 0.0
        %1260 = vmatprep.subr.mxu0 0.0
        %1261 = vmatpush2.xpose.msra.mxu0 0.0
        %1262 = vmatprep.subr.mxu0 0.0
        %1263 = vmatpush2.xpose.msra.mxu0 0.0
        %1264 = vmatprep.subr.mxu0 0.0
        %1265 = vmatpush2.xpose.msra.mxu0 0.0
        %1266 = vmatprep.subr.mxu0 0.0
        %1267 = vmatpush2.xpose.msra.mxu0 0.0
        %1268 = vmatprep.subr.mxu0 0.0
        %1269 = vmatpush2.xpose.msra.mxu0 0.0
        %1270 = vmatprep.subr.mxu0 0.0
        %1271 = vmatpush2.xpose.msra.mxu0 0.0
        %1272 = vmatprep.subr.mxu0 0.0
        %1273 = vmatpush2.xpose.msra.mxu0 0.0
        %1274 = vmatprep.subr.mxu0 0.0
        %1275 = vmatpush2.xpose.msra.mxu0 0.0
        %1276 = vmatprep.subr.mxu0 0.0
        %1277 = vmatpush2.xpose.msra.mxu0 0.0
        %1278 = vmatprep.subr.mxu0 0.0
        %1279 = vmatpush2.xpose.msra.mxu0 0.0
        %1280 = vmatprep.subr.mxu0 0.0
        %1281 = vmatpush2.xpose.msra.mxu0 0.0
        %1282 = vmatprep.subr.mxu0 0.0
        %1283 = vmatpush2.xpose.msra.mxu0 0.0
        %1284 = vmatprep.subr.mxu0 0.0
        %1285 = vmatpush2.xpose.msra.mxu0 0.0
        %1286 = vmatprep.subr.mxu0 0.0
        %1287 = vmatpush2.xpose.msra.mxu0 0.0
        %1288 = vmatprep.subr.mxu0 0.0
        %1289 = vmatpush2.xpose.msra.mxu0 0.0
        %1290 = vmatprep.mubr.f32.mxu0 0.0
        %1291 = vmatmul.mubr.f32.gmra.mxu0 %v1214
        %v1292 = vpop.f32.mrf.mxu0
        %v1293 = vadd.f32 0.0, %v1292
        %v1294 = vpop.f32.mrf.mxu0
        %1295 = vmatprep.mubr.f32.mxu0 0.0
        %1296 = vmatmul.mubr.f32.gmra.mxu0 %v1216
        %v1297 = vpop.f32.mrf.mxu0
        %v1298 = vadd.f32 0.0, %v1297
        %v1299 = vpop.f32.mrf.mxu0
        %1300 = vmatprep.mubr.f32.mxu0 0.0
        %1301 = vmatmul.mubr.f32.gmra.mxu0 %v1218
        %v1302 = vpop.f32.mrf.mxu0
        %v1303 = vadd.f32 0.0, %v1302
        %v1304 = vpop.f32.mrf.mxu0
        %1305 = vdwg.mxu0
        %v1306 = vsel %vm832, %v1293, -inf
        %1307 = vmax.xlane.f32.xlu0 %v1306
        %v1308 = vpop.xlane.xlu0 %1307
        %v1309 = vsel %vm832, %v1298, -inf
        %1310 = vmax.xlane.f32.xlu0 %v1309
        %v1311 = vpop.xlane.xlu0 %1310
        %v1312 = vsel %vm839, %v1303, -inf
        %1313 = vmax.xlane.f32.xlu0 %v1312
        %v1314 = vpop.xlane.xlu0 %1313
        %v1315 = vsub.f32 %v1293, %v1308
        %v1316 = vsub.f32 %v1298, %v1311
        %v1317 = vsub.f32 %v1303, %v1314
        %v1318 = vmul.f32 %v1315, 1.442695
        %v1319 = vpow.pop %v1318
        %v1320 = vmul.f32 %v1316, 1.442695
        %v1321 = vpow.pop %v1320
        %v1322 = vmul.f32 %v1317, 1.442695
        %v1323 = vpow.pop %v1322
        %v1324 = vsel %vm832, %v1319, 0.0
        %1325 = vadd.xlane.f32.xlu0 %v1324
        %v1326 = vpop.xlane.xlu0 %1325
        %v1327 = vsel %vm832, %v1321, 0.0
        %1328 = vadd.xlane.f32.xlu0 %v1327
        %v1329 = vpop.xlane.xlu0 %1328
        %v1330 = vsel %vm839, %v1323, 0.0
        %1331 = vadd.xlane.f32.xlu0 %v1330
        %v1332 = vpop.xlane.xlu0 %1331
        %v1333 = vrcp.pop %v1326
        %v1334 = vrcp.pop %v1329
        %v1335 = vrcp.pop %v1332
        %v1336 = vmul.f32 %v1319, %v1333
        %v1337 = vmul.f32 %v1321, %v1334
        %v1338 = vmul.f32 %v1323, %v1335
        %1339 = vrot.lane.b32.xlu0 %v717, 48
        %v1340 = vpop.permute.xlu0 %1339
        %1341 = vrot.lane.b32.xlu0 %v722, 48
        %v1342 = vpop.permute.xlu0 %1341
        %1343 = vrot.lane.b32.xlu0 %v727, 48
        %v1344 = vpop.permute.xlu0 %1343
        %v1348 = vsel %vm832, %v1336, 0
        %v1351 = vsel %vm832, %v1337, 0
        %v1354 = vsel %vm832, %v1338, 0
        %v1356 = vsel %vm572, %v1344, 0
        %1358 = vmatprep.subr.mxu0 0.0
        %1359 = vmatpush1.msra.mxu0 0.0
        %1360 = vmatprep.subr.mxu0 0.0
        %1361 = vmatpush1.msra.mxu0 0.0
        %1362 = vmatprep.subr.mxu0 0.0
        %1363 = vmatpush1.msra.mxu0 0.0
        %1364 = vmatprep.subr.mxu0 0.0
        %1365 = vmatpush1.msra.mxu0 0.0
        %1366 = vmatprep.subr.mxu0 0.0
        %1367 = vmatpush1.msra.mxu0 0.0
        %1368 = vmatprep.subr.mxu0 0.0
        %1369 = vmatpush1.msra.mxu0 0.0
        %1370 = vmatprep.subr.mxu0 0.0
        %1371 = vmatpush1.msra.mxu0 0.0
        %1372 = vmatprep.subr.mxu0 0.0
        %1373 = vmatpush1.msra.mxu0 0.0
        %1374 = vmatprep.subr.mxu0 0.0
        %1375 = vmatpush1.msra.mxu0 0.0
        %1376 = vmatprep.subr.mxu0 0.0
        %1377 = vmatpush1.msra.mxu0 0.0
        %1378 = vmatprep.subr.mxu0 0.0
        %1379 = vmatpush1.msra.mxu0 0.0
        %1380 = vmatprep.subr.mxu0 0.0
        %1381 = vmatpush1.msra.mxu0 0.0
        %1382 = vmatprep.subr.mxu0 0.0
        %1383 = vmatpush1.msra.mxu0 0.0
        %1384 = vmatprep.subr.mxu0 0.0
        %1385 = vmatpush1.msra.mxu0 %v1356
        %1386 = vmatprep.subr.mxu0 0.0
        %1387 = vmatpush1.msra.mxu0 %v1342
        %1388 = vmatprep.subr.mxu0 0.0
        %1389 = vmatpush1.msra.mxu0 %v1340
        %1390 = vmatprep.subr.mxu0 0.0
        %1391 = vmatpush2.msra.mxu0 0.0
        %1392 = vmatprep.subr.mxu0 0.0
        %1393 = vmatpush2.msra.mxu0 0.0
        %1394 = vmatprep.subr.mxu0 0.0
        %1395 = vmatpush2.msra.mxu0 0.0
        %1396 = vmatprep.subr.mxu0 0.0
        %1397 = vmatpush2.msra.mxu0 0.0
        %1398 = vmatprep.subr.mxu0 0.0
        %1399 = vmatpush2.msra.mxu0 0.0
        %1400 = vmatprep.subr.mxu0 0.0
        %1401 = vmatpush2.msra.mxu0 0.0
        %1402 = vmatprep.subr.mxu0 0.0
        %1403 = vmatpush2.msra.mxu0 0.0
        %1404 = vmatprep.subr.mxu0 0.0
        %1405 = vmatpush2.msra.mxu0 0.0
        %1406 = vmatprep.subr.mxu0 0.0
        %1407 = vmatpush2.msra.mxu0 0.0
        %1408 = vmatprep.subr.mxu0 0.0
        %1409 = vmatpush2.msra.mxu0 0.0
        %1410 = vmatprep.subr.mxu0 0.0
        %1411 = vmatpush2.msra.mxu0 0.0
        %1412 = vmatprep.subr.mxu0 0.0
        %1413 = vmatpush2.msra.mxu0 0.0
        %1414 = vmatprep.subr.mxu0 0.0
        %1415 = vmatpush2.msra.mxu0 0.0
        %1416 = vmatprep.subr.mxu0 0.0
        %1417 = vmatpush2.msra.mxu0 0.0
        %1418 = vmatprep.subr.mxu0 0.0
        %1419 = vmatpush2.msra.mxu0 0.0
        %1420 = vmatprep.subr.mxu0 0.0
        %1421 = vmatpush2.msra.mxu0 0.0
        %1422 = vmatprep.mubr.f32.mxu0 0.0
        %1423 = vmatmul.mubr.f32.gmra.mxu0 %v1348
        %v1424 = vpop.f32.mrf.mxu0
        %v1425 = vadd.f32 0.0, %v1424
        %v1426 = vpop.f32.mrf.mxu0
        %1427 = vmatprep.mubr.f32.mxu0 0.0
        %1428 = vmatmul.mubr.f32.gmra.mxu0 %v1351
        %v1429 = vpop.f32.mrf.mxu0
        %v1430 = vadd.f32 0.0, %v1429
        %v1431 = vpop.f32.mrf.mxu0
        %1432 = vmatprep.mubr.f32.mxu0 0.0
        %1433 = vmatmul.mubr.f32.gmra.mxu0 %v1354
        %v1434 = vpop.f32.mrf.mxu0
        %v1435 = vadd.f32 0.0, %v1434
        %v1436 = vpop.f32.mrf.mxu0
        %1437 = vdwg.mxu0
        %1438 = vrot.lane.b32.xlu0 %v717, 104
        %v1439 = vpop.permute.xlu0 %1438
        %1440 = vrot.lane.b32.xlu0 %v722, 104
        %v1441 = vpop.permute.xlu0 %1440
        %1442 = vrot.lane.b32.xlu0 %v727, 104
        %v1443 = vpop.permute.xlu0 %1442
        %1444 = vrot.lane.b32.xlu0 %v717, 72
        %v1445 = vpop.permute.xlu0 %1444
        %1446 = vrot.lane.b32.xlu0 %v722, 72
        %v1447 = vpop.permute.xlu0 %1446
        %1448 = vrot.lane.b32.xlu0 %v727, 72
        %v1449 = vpop.permute.xlu0 %1448
        %v1450 = vsel %vm739, %v1439, 0
        %v1452 = vsel %vm739, %v1441, 0
        %v1454 = vsel %vm739, %v1443, 0
        %v1456 = vsel %vm739, %v1445, 0
        %v1458 = vsel %vm739, %v1447, 0
        %v1460 = vsel %vm739, %v1449, 0
        %1462 = vmatprep.subr.mxu0 0.0
        %1463 = vmatpush1.xpose.msra.mxu0 0.0
        %1464 = vmatprep.subr.mxu0 0.0
        %1465 = vmatpush1.xpose.msra.mxu0 0.0
        %1466 = vmatprep.subr.mxu0 0.0
        %1467 = vmatpush1.xpose.msra.mxu0 0.0
        %1468 = vmatprep.subr.mxu0 0.0
        %1469 = vmatpush1.xpose.msra.mxu0 0.0
        %1470 = vmatprep.subr.mxu0 0.0
        %1471 = vmatpush1.xpose.msra.mxu0 0.0
        %1472 = vmatprep.subr.mxu0 0.0
        %1473 = vmatpush1.xpose.msra.mxu0 0.0
        %1474 = vmatprep.subr.mxu0 0.0
        %1475 = vmatpush1.xpose.msra.mxu0 0.0
        %1476 = vmatprep.subr.mxu0 0.0
        %1477 = vmatpush1.xpose.msra.mxu0 0.0
        %1478 = vmatprep.subr.mxu0 0.0
        %1479 = vmatpush1.xpose.msra.mxu0 0.0
        %1480 = vmatprep.subr.mxu0 0.0
        %1481 = vmatpush1.xpose.msra.mxu0 0.0
        %1482 = vmatprep.subr.mxu0 0.0
        %1483 = vmatpush1.xpose.msra.mxu0 0.0
        %1484 = vmatprep.subr.mxu0 0.0
        %1485 = vmatpush1.xpose.msra.mxu0 0.0
        %1486 = vmatprep.subr.mxu0 0.0
        %1487 = vmatpush1.xpose.msra.mxu0 0.0
        %1488 = vmatprep.subr.mxu0 0.0
        %1489 = vmatpush1.xpose.msra.mxu0 %v1460
        %1490 = vmatprep.subr.mxu0 0.0
        %1491 = vmatpush1.xpose.msra.mxu0 %v1458
        %1492 = vmatprep.subr.mxu0 0.0
        %1493 = vmatpush1.xpose.msra.mxu0 %v1456
        %1494 = vmatprep.subr.mxu0 0.0
        %1495 = vmatpush2.xpose.msra.mxu0 0.0
        %1496 = vmatprep.subr.mxu0 0.0
        %1497 = vmatpush2.xpose.msra.mxu0 0.0
        %1498 = vmatprep.subr.mxu0 0.0
        %1499 = vmatpush2.xpose.msra.mxu0 0.0
        %1500 = vmatprep.subr.mxu0 0.0
        %1501 = vmatpush2.xpose.msra.mxu0 0.0
        %1502 = vmatprep.subr.mxu0 0.0
        %1503 = vmatpush2.xpose.msra.mxu0 0.0
        %1504 = vmatprep.subr.mxu0 0.0
        %1505 = vmatpush2.xpose.msra.mxu0 0.0
        %1506 = vmatprep.subr.mxu0 0.0
        %1507 = vmatpush2.xpose.msra.mxu0 0.0
        %1508 = vmatprep.subr.mxu0 0.0
        %1509 = vmatpush2.xpose.msra.mxu0 0.0
        %1510 = vmatprep.subr.mxu0 0.0
        %1511 = vmatpush2.xpose.msra.mxu0 0.0
        %1512 = vmatprep.subr.mxu0 0.0
        %1513 = vmatpush2.xpose.msra.mxu0 0.0
        %1514 = vmatprep.subr.mxu0 0.0
        %1515 = vmatpush2.xpose.msra.mxu0 0.0
        %1516 = vmatprep.subr.mxu0 0.0
        %1517 = vmatpush2.xpose.msra.mxu0 0.0
        %1518 = vmatprep.subr.mxu0 0.0
        %1519 = vmatpush2.xpose.msra.mxu0 0.0
        %1520 = vmatprep.subr.mxu0 0.0
        %1521 = vmatpush2.xpose.msra.mxu0 0.0
        %1522 = vmatprep.subr.mxu0 0.0
        %1523 = vmatpush2.xpose.msra.mxu0 0.0
        %1524 = vmatprep.subr.mxu0 0.0
        %1525 = vmatpush2.xpose.msra.mxu0 0.0
        %1526 = vmatprep.mubr.f32.mxu0 0.0
        %1527 = vmatmul.mubr.f32.gmra.mxu0 %v1450
        %v1528 = vpop.f32.mrf.mxu0
        %v1529 = vadd.f32 0.0, %v1528
        %v1530 = vpop.f32.mrf.mxu0
        %1531 = vmatprep.mubr.f32.mxu0 0.0
        %1532 = vmatmul.mubr.f32.gmra.mxu0 %v1452
        %v1533 = vpop.f32.mrf.mxu0
        %v1534 = vadd.f32 0.0, %v1533
        %v1535 = vpop.f32.mrf.mxu0
        %1536 = vmatprep.mubr.f32.mxu0 0.0
        %1537 = vmatmul.mubr.f32.gmra.mxu0 %v1454
        %v1538 = vpop.f32.mrf.mxu0
        %v1539 = vadd.f32 0.0, %v1538
        %v1540 = vpop.f32.mrf.mxu0
        %1541 = vdwg.mxu0
        %v1542 = vsel %vm832, %v1529, -inf
        %1543 = vmax.xlane.f32.xlu0 %v1542
        %v1544 = vpop.xlane.xlu0 %1543
        %v1545 = vsel %vm832, %v1534, -inf
        %1546 = vmax.xlane.f32.xlu0 %v1545
        %v1547 = vpop.xlane.xlu0 %1546
        %v1548 = vsel %vm839, %v1539, -inf
        %1549 = vmax.xlane.f32.xlu0 %v1548
        %v1550 = vpop.xlane.xlu0 %1549
        %v1551 = vsub.f32 %v1529, %v1544
        %v1552 = vsub.f32 %v1534, %v1547
        %v1553 = vsub.f32 %v1539, %v1550
        %v1554 = vmul.f32 %v1551, 1.442695
        %v1555 = vpow.pop %v1554
        %v1556 = vmul.f32 %v1552, 1.442695
        %v1557 = vpow.pop %v1556
        %v1558 = vmul.f32 %v1553, 1.442695
        %v1559 = vpow.pop %v1558
        %v1560 = vsel %vm832, %v1555, 0.0
        %1561 = vadd.xlane.f32.xlu0 %v1560
        %v1562 = vpop.xlane.xlu0 %1561
        %v1563 = vsel %vm832, %v1557, 0.0
        %1564 = vadd.xlane.f32.xlu0 %v1563
        %v1565 = vpop.xlane.xlu0 %1564
        %v1566 = vsel %vm839, %v1559, 0.0
        %1567 = vadd.xlane.f32.xlu0 %v1566
        %v1568 = vpop.xlane.xlu0 %1567
        %v1569 = vrcp.pop %v1562
        %v1570 = vrcp.pop %v1565
        %v1571 = vrcp.pop %v1568
        %v1572 = vmul.f32 %v1555, %v1569
        %v1573 = vmul.f32 %v1557, %v1570
        %v1574 = vmul.f32 %v1559, %v1571
        %1575 = vrot.lane.b32.xlu0 %v717, 40
        %v1576 = vpop.permute.xlu0 %1575
        %1577 = vrot.lane.b32.xlu0 %v722, 40
        %v1578 = vpop.permute.xlu0 %1577
        %1579 = vrot.lane.b32.xlu0 %v727, 40
        %v1580 = vpop.permute.xlu0 %1579
        %v1584 = vsel %vm832, %v1572, 0
        %v1587 = vsel %vm832, %v1573, 0
        %v1590 = vsel %vm832, %v1574, 0
        %v1592 = vsel %vm572, %v1580, 0
        %1594 = vmatprep.subr.mxu0 0.0
        %1595 = vmatpush1.msra.mxu0 0.0
        %1596 = vmatprep.subr.mxu0 0.0
        %1597 = vmatpush1.msra.mxu0 0.0
        %1598 = vmatprep.subr.mxu0 0.0
        %1599 = vmatpush1.msra.mxu0 0.0
        %1600 = vmatprep.subr.mxu0 0.0
        %1601 = vmatpush1.msra.mxu0 0.0
        %1602 = vmatprep.subr.mxu0 0.0
        %1603 = vmatpush1.msra.mxu0 0.0
        %1604 = vmatprep.subr.mxu0 0.0
        %1605 = vmatpush1.msra.mxu0 0.0
        %1606 = vmatprep.subr.mxu0 0.0
        %1607 = vmatpush1.msra.mxu0 0.0
        %1608 = vmatprep.subr.mxu0 0.0
        %1609 = vmatpush1.msra.mxu0 0.0
        %1610 = vmatprep.subr.mxu0 0.0
        %1611 = vmatpush1.msra.mxu0 0.0
        %1612 = vmatprep.subr.mxu0 0.0
        %1613 = vmatpush1.msra.mxu0 0.0
        %1614 = vmatprep.subr.mxu0 0.0
        %1615 = vmatpush1.msra.mxu0 0.0
        %1616 = vmatprep.subr.mxu0 0.0
        %1617 = vmatpush1.msra.mxu0 0.0
        %1618 = vmatprep.subr.mxu0 0.0
        %1619 = vmatpush1.msra.mxu0 0.0
        %1620 = vmatprep.subr.mxu0 0.0
        %1621 = vmatpush1.msra.mxu0 %v1592
        %1622 = vmatprep.subr.mxu0 0.0
        %1623 = vmatpush1.msra.mxu0 %v1578
        %1624 = vmatprep.subr.mxu0 0.0
        %1625 = vmatpush1.msra.mxu0 %v1576
        %1626 = vmatprep.subr.mxu0 0.0
        %1627 = vmatpush2.msra.mxu0 0.0
        %1628 = vmatprep.subr.mxu0 0.0
        %1629 = vmatpush2.msra.mxu0 0.0
        %1630 = vmatprep.subr.mxu0 0.0
        %1631 = vmatpush2.msra.mxu0 0.0
        %1632 = vmatprep.subr.mxu0 0.0
        %1633 = vmatpush2.msra.mxu0 0.0
        %1634 = vmatprep.subr.mxu0 0.0
        %1635 = vmatpush2.msra.mxu0 0.0
        %1636 = vmatprep.subr.mxu0 0.0
        %1637 = vmatpush2.msra.mxu0 0.0
        %1638 = vmatprep.subr.mxu0 0.0
        %1639 = vmatpush2.msra.mxu0 0.0
        %1640 = vmatprep.subr.mxu0 0.0
        %1641 = vmatpush2.msra.mxu0 0.0
        %1642 = vmatprep.subr.mxu0 0.0
        %1643 = vmatpush2.msra.mxu0 0.0
        %1644 = vmatprep.subr.mxu0 0.0
        %1645 = vmatpush2.msra.mxu0 0.0
        %1646 = vmatprep.subr.mxu0 0.0
        %1647 = vmatpush2.msra.mxu0 0.0
        %1648 = vmatprep.subr.mxu0 0.0
        %1649 = vmatpush2.msra.mxu0 0.0
        %1650 = vmatprep.subr.mxu0 0.0
        %1651 = vmatpush2.msra.mxu0 0.0
        %1652 = vmatprep.subr.mxu0 0.0
        %1653 = vmatpush2.msra.mxu0 0.0
        %1654 = vmatprep.subr.mxu0 0.0
        %1655 = vmatpush2.msra.mxu0 0.0
        %1656 = vmatprep.subr.mxu0 0.0
        %1657 = vmatpush2.msra.mxu0 0.0
        %1658 = vmatprep.mubr.f32.mxu0 0.0
        %1659 = vmatmul.mubr.f32.gmra.mxu0 %v1584
        %v1660 = vpop.f32.mrf.mxu0
        %v1661 = vadd.f32 0.0, %v1660
        %v1662 = vpop.f32.mrf.mxu0
        %1663 = vmatprep.mubr.f32.mxu0 0.0
        %1664 = vmatmul.mubr.f32.gmra.mxu0 %v1587
        %v1665 = vpop.f32.mrf.mxu0
        %v1666 = vadd.f32 0.0, %v1665
        %v1667 = vpop.f32.mrf.mxu0
        %1668 = vmatprep.mubr.f32.mxu0 0.0
        %1669 = vmatmul.mubr.f32.gmra.mxu0 %v1590
        %v1670 = vpop.f32.mrf.mxu0
        %v1671 = vadd.f32 0.0, %v1670
        %v1672 = vpop.f32.mrf.mxu0
        %1673 = vdwg.mxu0
        %1677 = vrot.lane.b32.xlu0 %v1189, 8
        %v1678 = vpop.permute.xlu0 %1677
        %1679 = vrot.lane.b32.xlu0 %v1194, 8
        %v1680 = vpop.permute.xlu0 %1679
        %1681 = vrot.lane.b32.xlu0 %v1199, 8
        %v1682 = vpop.permute.xlu0 %1681
        %1689 = vrot.lane.b32.xlu0 %v1425, 16
        %v1690 = vpop.permute.xlu0 %1689
        %1691 = vrot.lane.b32.xlu0 %v1430, 16
        %v1692 = vpop.permute.xlu0 %1691
        %1693 = vrot.lane.b32.xlu0 %v1435, 16
        %v1694 = vpop.permute.xlu0 %1693
        %1701 = vrot.lane.b32.xlu0 %v1661, 24
        %v1702 = vpop.permute.xlu0 %1701
        %1703 = vrot.lane.b32.xlu0 %v1666, 24
        %v1704 = vpop.permute.xlu0 %1703
        %1705 = vrot.lane.b32.xlu0 %v1671, 24
        %v1706 = vpop.permute.xlu0 %1705
        %v1710 = vsel %vm739, %v953, %v1678
        %v1711 = vsel %vm739, %v958, %v1680
        %v1712 = vsel %vm739, %v963, %v1682
        %vm1713 = vcmask 130048
        %v1714 = vsel %vm1713, %v1710, %v1690
        %v1715 = vsel %vm1713, %v1711, %v1692
        %v1716 = vsel %vm1713, %v1712, %v1694
        %vm1717 = vcmask 195584
        %v1718 = vsel %vm1717, %v1714, %v1702
        %v1719 = vsel %vm1717, %v1715, %v1704
        %v1720 = vsel %vm1717, %v1716, %v1706
        %v1721 = vld [vmem:[%s7] sm:$0xff]
        %v1722 = vld [vmem:[%s7 + $0x8] sm:$0xff]
        %v1723 = vld [vmem:[%s7 + $0x10] sm:$0xff]
        %v1724 = vld [vmem:[%s7 + $0x18] sm:$0xff]
        %v1725 = vld [vmem:[%s7 + $0x20] sm:$0xff]
        %v1726 = vld [vmem:[%s7 + $0x28] sm:$0xff]
        %v1727 = vld [vmem:[%s7 + $0x30] sm:$0xff]
        %v1728 = vld [vmem:[%s7 + $0x38] sm:$0xff]
        %v1729 = vld [vmem:[%s7 + $0x40] sm:$0xff]
        %v1730 = vld [vmem:[%s7 + $0x48] sm:$0xff]
        %v1731 = vld [vmem:[%s7 + $0x50] sm:$0xff]
        %v1732 = vld [vmem:[%s7 + $0x58] sm:$0xff]
        %v1734 = vsel %vm581, %v1718, 0
        %v1737 = vsel %vm581, %v1719, 0
        %v1740 = vsel %vm581, %v1720, 0
        %1742 = vmatprep.subr.mxu0 0.0
        %1743 = vmatpush1.msra.mxu0 0.0
        %1744 = vmatprep.subr.mxu0 0.0
        %1745 = vmatpush1.msra.mxu0 0.0
        %1746 = vmatprep.subr.mxu0 0.0
        %1747 = vmatpush1.msra.mxu0 0.0
        %1748 = vmatprep.subr.mxu0 0.0
        %1749 = vmatpush1.msra.mxu0 0.0
        %1750 = vmatprep.subr.mxu0 0.0
        %1751 = vmatpush1.msra.mxu0 0.0
        %1752 = vmatprep.subr.mxu0 0.0
        %1753 = vmatpush1.msra.mxu0 0.0
        %1754 = vmatprep.subr.mxu0 0.0
        %1755 = vmatpush1.msra.mxu0 0.0
        %1756 = vmatprep.subr.mxu0 0.0
        %1757 = vmatpush1.msra.mxu0 0.0
        %1758 = vmatprep.subr.mxu0 0.0
        %1759 = vmatpush1.msra.mxu0 0.0
        %1760 = vmatprep.subr.mxu0 0.0
        %1761 = vmatpush1.msra.mxu0 0.0
        %1762 = vmatprep.subr.mxu0 0.0
        %1763 = vmatpush1.msra.mxu0 0.0
        %1764 = vmatprep.subr.mxu0 0.0
        %1765 = vmatpush1.msra.mxu0 0.0
        %1766 = vmatprep.subr.mxu0 0.0
        %1767 = vmatpush1.msra.mxu0 %v1724
        %1768 = vmatprep.subr.mxu0 0.0
        %1769 = vmatpush1.msra.mxu0 %v1723
        %1770 = vmatprep.subr.mxu0 0.0
        %1771 = vmatpush1.msra.mxu0 %v1722
        %1772 = vmatprep.subr.mxu0 0.0
        %1773 = vmatpush1.msra.mxu0 %v1721
        %1774 = vmatprep.subr.mxu0 0.0
        %1775 = vmatpush2.msra.mxu0 0.0
        %1776 = vmatprep.subr.mxu0 0.0
        %1777 = vmatpush2.msra.mxu0 0.0
        %1778 = vmatprep.subr.mxu0 0.0
        %1779 = vmatpush2.msra.mxu0 0.0
        %1780 = vmatprep.subr.mxu0 0.0
        %1781 = vmatpush2.msra.mxu0 0.0
        %1782 = vmatprep.subr.mxu0 0.0
        %1783 = vmatpush2.msra.mxu0 0.0
        %1784 = vmatprep.subr.mxu0 0.0
        %1785 = vmatpush2.msra.mxu0 0.0
        %1786 = vmatprep.subr.mxu0 0.0
        %1787 = vmatpush2.msra.mxu0 0.0
        %1788 = vmatprep.subr.mxu0 0.0
        %1789 = vmatpush2.msra.mxu0 0.0
        %1790 = vmatprep.subr.mxu0 0.0
        %1791 = vmatpush2.msra.mxu0 0.0
        %1792 = vmatprep.subr.mxu0 0.0
        %1793 = vmatpush2.msra.mxu0 0.0
        %1794 = vmatprep.subr.mxu0 0.0
        %1795 = vmatpush2.msra.mxu0 0.0
        %1796 = vmatprep.subr.mxu0 0.0
        %1797 = vmatpush2.msra.mxu0 0.0
        %1798 = vmatprep.subr.mxu0 0.0
        %1799 = vmatpush2.msra.mxu0 0.0
        %1800 = vmatprep.subr.mxu0 0.0
        %1801 = vmatpush2.msra.mxu0 0.0
        %1802 = vmatprep.subr.mxu0 0.0
        %1803 = vmatpush2.msra.mxu0 0.0
        %1804 = vmatprep.subr.mxu0 0.0
        %1805 = vmatpush2.msra.mxu0 0.0
        %1806 = vmatprep.mubr.f32.mxu0 0.0
        %1807 = vmatmul.mubr.f32.gmra.mxu0 %v1734
        %v1808 = vpop.f32.mrf.mxu0
        %v1809 = vadd.f32 0.0, %v1808
        %v1810 = vpop.f32.mrf.mxu0
        %1811 = vmatprep.mubr.f32.mxu0 0.0
        %1812 = vmatmul.mubr.f32.gmra.mxu0 %v1737
        %v1813 = vpop.f32.mrf.mxu0
        %v1814 = vadd.f32 0.0, %v1813
        %v1815 = vpop.f32.mrf.mxu0
        %1816 = vmatprep.mubr.f32.mxu0 0.0
        %1817 = vmatmul.mubr.f32.gmra.mxu0 %v1740
        %v1818 = vpop.f32.mrf.mxu0
        %v1819 = vadd.f32 0.0, %v1818
        %v1820 = vpop.f32.mrf.mxu0
        %1821 = vdwg.mxu0
        %v1822 = vadd.f32 %v579, %v1809
        %v1823 = vadd.f32 %v575, %v1814
        %v1824 = vadd.f32 %v574, %v1819
        %v1825 = vlaneseq
        %v1826 = vshrl.u32 %v1825, 7
        %v1827 = vsub.s32 2, %v1826
        %v1828 = vrot.slane %v580, %v1827
        %v1829 = vadd.f32 %v1822, %v1828
        %v1830 = vadd.f32 %v1823, %v1828
        %v1831 = vadd.f32 %v1824, %v1828
        %v1832 = vsel %vm581, %v1829, 0.0
        %1833 = vadd.xlane.f32.xlu0 %v1832
        %v1834 = vpop.xlane.xlu0 %1833
        %v1835 = vsel %vm581, %v1830, 0.0
        %1836 = vadd.xlane.f32.xlu0 %v1835
        %v1837 = vpop.xlane.xlu0 %1836
        %v1838 = vsel %vm588, %v1831, 0.0
        %1839 = vadd.xlane.f32.xlu0 %v1838
        %v1840 = vpop.xlane.xlu0 %1839
        %v1841 = vmul.f32 %v1834, %v592
        %v1842 = vmul.f32 %v1837, %v592
        %v1843 = vmul.f32 %v1840, %v592
        %v1844 = vsub.f32 %v1829, %v1841
        %v1845 = vsub.f32 %v1830, %v1842
        %v1846 = vsub.f32 %v1831, %v1843
        %v1847 = vmul.f32 %v1844, %v1844
        %v1848 = vmul.f32 %v1845, %v1845
        %v1849 = vmul.f32 %v1846, %v1846
        %v1850 = vsel %vm581, %v1847, 0.0
        %1851 = vadd.xlane.f32.xlu0 %v1850
        %v1852 = vpop.xlane.xlu0 %1851
        %v1853 = vsel %vm581, %v1848, 0.0
        %1854 = vadd.xlane.f32.xlu0 %v1853
        %v1855 = vpop.xlane.xlu0 %1854
        %v1856 = vsel %vm588, %v1849, 0.0
        %1857 = vadd.xlane.f32.xlu0 %v1856
        %v1858 = vpop.xlane.xlu0 %1857
        %v1859 = vmul.f32 %v1852, %v592
        %v1860 = vmul.f32 %v1855, %v592
        %v1861 = vmul.f32 %v1858, %v592
        %v1862 = vadd.f32 %v1859, 1e-05
        %v1863 = vadd.f32 %v1860, 1e-05
        %v1864 = vadd.f32 %v1861, 1e-05
        %v1865 = vrsqrt.pop %v1862
        %v1866 = vrsqrt.pop %v1863
        %v1867 = vrsqrt.pop %v1864
        %v1868 = vmul.f32 %v1844, %v1865
        %v1869 = vmul.f32 %v1845, %v1866
        %v1870 = vmul.f32 %v1846, %v1867
        %v1871 = vlaneseq
        %v1872 = vshrl.u32 %v1871, 7
        %v1873 = vsub.s32 3, %v1872
        %v1874 = vrot.slane %v580, %v1873
        %v1875 = vmul.f32 %v1868, %v1874
        %v1876 = vmul.f32 %v1869, %v1874
        %v1877 = vmul.f32 %v1870, %v1874
        %v1878 = vlaneseq
        %v1879 = vshrl.u32 %v1878, 7
        %v1880 = vsub.s32 4, %v1879
        %v1881 = vrot.slane %v580, %v1880
        %v1882 = vadd.f32 %v1875, %v1881
        %v1883 = vadd.f32 %v1876, %v1881
        %v1884 = vadd.f32 %v1877, %v1881
        %v1885 = vld [vmem:[%s6] sm:$0xff]
        %v1886 = vld [vmem:[%s6 + $0x8] sm:$0xff]
        %v1887 = vld [vmem:[%s6 + $0x10] sm:$0xff]
        %v1888 = vld [vmem:[%s6 + $0x18] sm:$0xff]
        %v1889 = vld [vmem:[%s6 + $0x20] sm:$0x1]
        %v1890 = vlaneseq
        %v1891 = vshrl.u32 %v1890, 7
        %v1892 = vsub.s32 0, %v1891
        %v1893 = vrot.slane %v1889, %v1892
        %v1895 = vsel %vm581, %v1882, 0
        %v1898 = vsel %vm581, %v1883, 0
        %v1901 = vsel %vm581, %v1884, 0
        %1903 = vmatprep.subr.mxu0 0.0
        %1904 = vmatpush1.msra.mxu0 0.0
        %1905 = vmatprep.subr.mxu0 0.0
        %1906 = vmatpush1.msra.mxu0 0.0
        %1907 = vmatprep.subr.mxu0 0.0
        %1908 = vmatpush1.msra.mxu0 0.0
        %1909 = vmatprep.subr.mxu0 0.0
        %1910 = vmatpush1.msra.mxu0 0.0
        %1911 = vmatprep.subr.mxu0 0.0
        %1912 = vmatpush1.msra.mxu0 0.0
        %1913 = vmatprep.subr.mxu0 0.0
        %1914 = vmatpush1.msra.mxu0 0.0
        %1915 = vmatprep.subr.mxu0 0.0
        %1916 = vmatpush1.msra.mxu0 0.0
        %1917 = vmatprep.subr.mxu0 0.0
        %1918 = vmatpush1.msra.mxu0 0.0
        %1919 = vmatprep.subr.mxu0 0.0
        %1920 = vmatpush1.msra.mxu0 0.0
        %1921 = vmatprep.subr.mxu0 0.0
        %1922 = vmatpush1.msra.mxu0 0.0
        %1923 = vmatprep.subr.mxu0 0.0
        %1924 = vmatpush1.msra.mxu0 0.0
        %1925 = vmatprep.subr.mxu0 0.0
        %1926 = vmatpush1.msra.mxu0 0.0
        %1927 = vmatprep.subr.mxu0 0.0
        %1928 = vmatpush1.msra.mxu0 %v1888
        %1929 = vmatprep.subr.mxu0 0.0
        %1930 = vmatpush1.msra.mxu0 %v1887
        %1931 = vmatprep.subr.mxu0 0.0
        %1932 = vmatpush1.msra.mxu0 %v1886
        %1933 = vmatprep.subr.mxu0 0.0
        %1934 = vmatpush1.msra.mxu0 %v1885
        %1935 = vmatprep.subr.mxu0 0.0
        %1936 = vmatpush2.msra.mxu0 0.0
        %1937 = vmatprep.subr.mxu0 0.0
        %1938 = vmatpush2.msra.mxu0 0.0
        %1939 = vmatprep.subr.mxu0 0.0
        %1940 = vmatpush2.msra.mxu0 0.0
        %1941 = vmatprep.subr.mxu0 0.0
        %1942 = vmatpush2.msra.mxu0 0.0
        %1943 = vmatprep.subr.mxu0 0.0
        %1944 = vmatpush2.msra.mxu0 0.0
        %1945 = vmatprep.subr.mxu0 0.0
        %1946 = vmatpush2.msra.mxu0 0.0
        %1947 = vmatprep.subr.mxu0 0.0
        %1948 = vmatpush2.msra.mxu0 0.0
        %1949 = vmatprep.subr.mxu0 0.0
        %1950 = vmatpush2.msra.mxu0 0.0
        %1951 = vmatprep.subr.mxu0 0.0
        %1952 = vmatpush2.msra.mxu0 0.0
        %1953 = vmatprep.subr.mxu0 0.0
        %1954 = vmatpush2.msra.mxu0 0.0
        %1955 = vmatprep.subr.mxu0 0.0
        %1956 = vmatpush2.msra.mxu0 0.0
        %1957 = vmatprep.subr.mxu0 0.0
        %1958 = vmatpush2.msra.mxu0 0.0
        %1959 = vmatprep.subr.mxu0 0.0
        %1960 = vmatpush2.msra.mxu0 0.0
        %1961 = vmatprep.subr.mxu0 0.0
        %1962 = vmatpush2.msra.mxu0 0.0
        %1963 = vmatprep.subr.mxu0 0.0
        %1964 = vmatpush2.msra.mxu0 0.0
        %1965 = vmatprep.subr.mxu0 0.0
        %1966 = vmatpush2.msra.mxu0 0.0
        %1967 = vmatprep.mubr.f32.mxu0 0.0
        %1968 = vmatmul.mubr.f32.gmra.mxu0 %v1895
        %v1969 = vpop.f32.mrf.mxu0
        %v1970 = vadd.f32 %v1893, %v1969
        %v1971 = vpop.f32.mrf.mxu0
        %1972 = vmatprep.mubr.f32.mxu0 0.0
        %1973 = vmatmul.mubr.f32.gmra.mxu0 %v1898
        %v1974 = vpop.f32.mrf.mxu0
        %v1975 = vadd.f32 %v1893, %v1974
        %v1976 = vpop.f32.mrf.mxu0
        %1977 = vmatprep.mubr.f32.mxu0 0.0
        %1978 = vmatmul.mubr.f32.gmra.mxu0 %v1901
        %v1979 = vpop.f32.mrf.mxu0
        %v1980 = vadd.f32 %v1893, %v1979
        %v1981 = vpop.f32.mrf.mxu0
        %1982 = vdwg.mxu0
        %v1983 = vmul.f32 %v1970, 0.5
        %v1984 = vmul.f32 %v1975, 0.5
        %v1985 = vmul.f32 %v1980, 0.5
        %v1986 = vmul.f32 %v1970, 0.70710677
        %v1987 = vmul.f32 %v1975, 0.70710677
        %v1988 = vmul.f32 %v1980, 0.70710677
        %v1989 = verf.f32.pop %v1986
        %v1990 = verf.f32.pop %v1987
        %v1991 = verf.f32.pop %v1988
        %v1992 = vadd.f32 %v1989, 1.0
        %v1993 = vadd.f32 %v1990, 1.0
        %v1994 = vadd.f32 %v1991, 1.0
        %v1995 = vmul.f32 %v1983, %v1992
        %v1996 = vmul.f32 %v1984, %v1993
        %v1997 = vmul.f32 %v1985, %v1994
        %vm1998 = vcmask 523264
        %v2000 = vsel %vm1998, %v1995, 0
        %v2003 = vsel %vm1998, %v1996, 0
        %v2006 = vsel %vm1998, %v1997, 0
        %2008 = vmatprep.subr.mxu0 0.0
        %2009 = vmatpush1.msra.mxu0 0.0
        %2010 = vmatprep.subr.mxu0 0.0
        %2011 = vmatpush1.msra.mxu0 0.0
        %2012 = vmatprep.subr.mxu0 0.0
        %2013 = vmatpush1.msra.mxu0 0.0
        %2014 = vmatprep.subr.mxu0 0.0
        %2015 = vmatpush1.msra.mxu0 0.0
        %2016 = vmatprep.subr.mxu0 0.0
        %2017 = vmatpush1.msra.mxu0 0.0
        %2018 = vmatprep.subr.mxu0 0.0
        %2019 = vmatpush1.msra.mxu0 0.0
        %2020 = vmatprep.subr.mxu0 0.0
        %2021 = vmatpush1.msra.mxu0 0.0
        %2022 = vmatprep.subr.mxu0 0.0
        %2023 = vmatpush1.msra.mxu0 0.0
        %2024 = vmatprep.subr.mxu0 0.0
        %2025 = vmatpush1.msra.mxu0 %v1732
        %2026 = vmatprep.subr.mxu0 0.0
        %2027 = vmatpush1.msra.mxu0 %v1731
        %2028 = vmatprep.subr.mxu0 0.0
        %2029 = vmatpush1.msra.mxu0 %v1730
        %2030 = vmatprep.subr.mxu0 0.0
        %2031 = vmatpush1.msra.mxu0 %v1729
        %2032 = vmatprep.subr.mxu0 0.0
        %2033 = vmatpush1.msra.mxu0 %v1728
        %2034 = vmatprep.subr.mxu0 0.0
        %2035 = vmatpush1.msra.mxu0 %v1727
        %2036 = vmatprep.subr.mxu0 0.0
        %2037 = vmatpush1.msra.mxu0 %v1726
        %2038 = vmatprep.subr.mxu0 0.0
        %2039 = vmatpush1.msra.mxu0 %v1725
        %2040 = vmatprep.subr.mxu0 0.0
        %2041 = vmatpush2.msra.mxu0 0.0
        %2042 = vmatprep.subr.mxu0 0.0
        %2043 = vmatpush2.msra.mxu0 0.0
        %2044 = vmatprep.subr.mxu0 0.0
        %2045 = vmatpush2.msra.mxu0 0.0
        %2046 = vmatprep.subr.mxu0 0.0
        %2047 = vmatpush2.msra.mxu0 0.0
        %2048 = vmatprep.subr.mxu0 0.0
        %2049 = vmatpush2.msra.mxu0 0.0
        %2050 = vmatprep.subr.mxu0 0.0
        %2051 = vmatpush2.msra.mxu0 0.0
        %2052 = vmatprep.subr.mxu0 0.0
        %2053 = vmatpush2.msra.mxu0 0.0
        %2054 = vmatprep.subr.mxu0 0.0
        %2055 = vmatpush2.msra.mxu0 0.0
        %2056 = vmatprep.subr.mxu0 0.0
        %2057 = vmatpush2.msra.mxu0 0.0
        %2058 = vmatprep.subr.mxu0 0.0
        %2059 = vmatpush2.msra.mxu0 0.0
        %2060 = vmatprep.subr.mxu0 0.0
        %2061 = vmatpush2.msra.mxu0 0.0
        %2062 = vmatprep.subr.mxu0 0.0
        %2063 = vmatpush2.msra.mxu0 0.0
        %2064 = vmatprep.subr.mxu0 0.0
        %2065 = vmatpush2.msra.mxu0 0.0
        %2066 = vmatprep.subr.mxu0 0.0
        %2067 = vmatpush2.msra.mxu0 0.0
        %2068 = vmatprep.subr.mxu0 0.0
        %2069 = vmatpush2.msra.mxu0 0.0
        %2070 = vmatprep.subr.mxu0 0.0
        %2071 = vmatpush2.msra.mxu0 0.0
        %2072 = vmatprep.mubr.f32.mxu0 0.0
        %2073 = vmatmul.mubr.f32.gmra.mxu0 %v2000
        %v2074 = vpop.f32.mrf.mxu0
        %v2075 = vadd.f32 0.0, %v2074
        %v2076 = vpop.f32.mrf.mxu0
        %2077 = vmatprep.mubr.f32.mxu0 0.0
        %2078 = vmatmul.mubr.f32.gmra.mxu0 %v2003
        %v2079 = vpop.f32.mrf.mxu0
        %v2080 = vadd.f32 0.0, %v2079
        %v2081 = vpop.f32.mrf.mxu0
        %2082 = vmatprep.mubr.f32.mxu0 0.0
        %2083 = vmatmul.mubr.f32.gmra.mxu0 %v2006
        %v2084 = vpop.f32.mrf.mxu0
        %v2085 = vadd.f32 0.0, %v2084
        %v2086 = vpop.f32.mrf.mxu0
        %2087 = vdwg.mxu0
        %v2088 = vadd.f32 %v1829, %v2075
        %v2089 = vadd.f32 %v1830, %v2080
        %v2090 = vadd.f32 %v1831, %v2085
        %v2091 = vlaneseq
        %v2092 = vshrl.u32 %v2091, 7
        %v2093 = vsub.s32 5, %v2092
        %v2094 = vrot.slane %v580, %v2093
        %v2095 = vadd.f32 %v2088, %v2094
        %v2096 = vadd.f32 %v2089, %v2094
        %v2097 = vadd.f32 %v2090, %v2094
        %s2098 = scalar_lea.vmem %s4, 8
        %v2099 = vld [vmem:[%s2098] sm:$0x3f]
        %v2100 = vsel %vm581, %v2095, 0.0
        %2101 = vadd.xlane.f32.xlu0 %v2100
        %v2102 = vpop.xlane.xlu0 %2101
        %v2103 = vsel %vm581, %v2096, 0.0
        %2104 = vadd.xlane.f32.xlu0 %v2103
        %v2105 = vpop.xlane.xlu0 %2104
        %v2106 = vsel %vm588, %v2097, 0.0
        %2107 = vadd.xlane.f32.xlu0 %v2106
        %v2108 = vpop.xlane.xlu0 %2107
        %v2109 = vmul.f32 %v2102, %v592
        %v2110 = vmul.f32 %v2105, %v592
        %v2111 = vmul.f32 %v2108, %v592
        %v2112 = vsub.f32 %v2095, %v2109
        %v2113 = vsub.f32 %v2096, %v2110
        %v2114 = vsub.f32 %v2097, %v2111
        %v2115 = vmul.f32 %v2112, %v2112
        %v2116 = vmul.f32 %v2113, %v2113
        %v2117 = vmul.f32 %v2114, %v2114
        %v2118 = vsel %vm581, %v2115, 0.0
        %2119 = vadd.xlane.f32.xlu0 %v2118
        %v2120 = vpop.xlane.xlu0 %2119
        %v2121 = vsel %vm581, %v2116, 0.0
        %2122 = vadd.xlane.f32.xlu0 %v2121
        %v2123 = vpop.xlane.xlu0 %2122
        %v2124 = vsel %vm588, %v2117, 0.0
        %2125 = vadd.xlane.f32.xlu0 %v2124
        %v2126 = vpop.xlane.xlu0 %2125
        %v2127 = vmul.f32 %v2120, %v592
        %v2128 = vmul.f32 %v2123, %v592
        %v2129 = vmul.f32 %v2126, %v592
        %v2130 = vadd.f32 %v2127, 1e-05
        %v2131 = vadd.f32 %v2128, 1e-05
        %v2132 = vadd.f32 %v2129, 1e-05
        %v2133 = vrsqrt.pop %v2130
        %v2134 = vrsqrt.pop %v2131
        %v2135 = vrsqrt.pop %v2132
        %v2136 = vmul.f32 %v2112, %v2133
        %v2137 = vmul.f32 %v2113, %v2134
        %v2138 = vmul.f32 %v2114, %v2135
        %v2139 = vlaneseq
        %v2140 = vshrl.u32 %v2139, 7
        %v2141 = vsub.s32 0, %v2140
        %v2142 = vrot.slane %v2099, %v2141
        %v2143 = vmul.f32 %v2136, %v2142
        %v2144 = vmul.f32 %v2137, %v2142
        %v2145 = vmul.f32 %v2138, %v2142
        %v2146 = vlaneseq
        %v2147 = vshrl.u32 %v2146, 7
        %v2148 = vsub.s32 1, %v2147
        %v2149 = vrot.slane %v2099, %v2148
        %v2150 = vadd.f32 %v2143, %v2149
        %v2151 = vadd.f32 %v2144, %v2149
        %v2152 = vadd.f32 %v2145, %v2149
        %s2153 = scalar_lea.vmem %s5, 32
        %v2154 = vld [vmem:[%s2153] sm:$0xff]
        %v2155 = vld [vmem:[%s2153 + $0x8] sm:$0xff]
        %v2156 = vld [vmem:[%s2153 + $0x10] sm:$0xff]
        %v2157 = vld [vmem:[%s2153 + $0x18] sm:$0xff]
        %v2159 = vsel %vm581, %v2150, 0
        %v2162 = vsel %vm581, %v2151, 0
        %v2165 = vsel %vm581, %v2152, 0
        %2167 = vmatprep.subr.mxu0 0.0
        %2168 = vmatpush1.msra.mxu0 0.0
        %2169 = vmatprep.subr.mxu0 0.0
        %2170 = vmatpush1.msra.mxu0 0.0
        %2171 = vmatprep.subr.mxu0 0.0
        %2172 = vmatpush1.msra.mxu0 0.0
        %2173 = vmatprep.subr.mxu0 0.0
        %2174 = vmatpush1.msra.mxu0 0.0
        %2175 = vmatprep.subr.mxu0 0.0
        %2176 = vmatpush1.msra.mxu0 0.0
        %2177 = vmatprep.subr.mxu0 0.0
        %2178 = vmatpush1.msra.mxu0 0.0
        %2179 = vmatprep.subr.mxu0 0.0
        %2180 = vmatpush1.msra.mxu0 0.0
        %2181 = vmatprep.subr.mxu0 0.0
        %2182 = vmatpush1.msra.mxu0 0.0
        %2183 = vmatprep.subr.mxu0 0.0
        %2184 = vmatpush1.msra.mxu0 0.0
        %2185 = vmatprep.subr.mxu0 0.0
        %2186 = vmatpush1.msra.mxu0 0.0
        %2187 = vmatprep.subr.mxu0 0.0
        %2188 = vmatpush1.msra.mxu0 0.0
        %2189 = vmatprep.subr.mxu0 0.0
        %2190 = vmatpush1.msra.mxu0 0.0
        %2191 = vmatprep.subr.mxu0 0.0
        %2192 = vmatpush1.msra.mxu0 %v2157
        %2193 = vmatprep.subr.mxu0 0.0
        %2194 = vmatpush1.msra.mxu0 %v2156
        %2195 = vmatprep.subr.mxu0 0.0
        %2196 = vmatpush1.msra.mxu0 %v2155
        %2197 = vmatprep.subr.mxu0 0.0
        %2198 = vmatpush1.msra.mxu0 %v2154
        %2199 = vmatprep.subr.mxu0 0.0
        %2200 = vmatpush2.msra.mxu0 0.0
        %2201 = vmatprep.subr.mxu0 0.0
        %2202 = vmatpush2.msra.mxu0 0.0
        %2203 = vmatprep.subr.mxu0 0.0
        %2204 = vmatpush2.msra.mxu0 0.0
        %2205 = vmatprep.subr.mxu0 0.0
        %2206 = vmatpush2.msra.mxu0 0.0
        %2207 = vmatprep.subr.mxu0 0.0
        %2208 = vmatpush2.msra.mxu0 0.0
        %2209 = vmatprep.subr.mxu0 0.0
        %2210 = vmatpush2.msra.mxu0 0.0
        %2211 = vmatprep.subr.mxu0 0.0
        %2212 = vmatpush2.msra.mxu0 0.0
        %2213 = vmatprep.subr.mxu0 0.0
        %2214 = vmatpush2.msra.mxu0 0.0
        %2215 = vmatprep.subr.mxu0 0.0
        %2216 = vmatpush2.msra.mxu0 0.0
        %2217 = vmatprep.subr.mxu0 0.0
        %2218 = vmatpush2.msra.mxu0 0.0
        %2219 = vmatprep.subr.mxu0 0.0
        %2220 = vmatpush2.msra.mxu0 0.0
        %2221 = vmatprep.subr.mxu0 0.0
        %2222 = vmatpush2.msra.mxu0 0.0
        %2223 = vmatprep.subr.mxu0 0.0
        %2224 = vmatpush2.msra.mxu0 0.0
        %2225 = vmatprep.subr.mxu0 0.0
        %2226 = vmatpush2.msra.mxu0 0.0
        %2227 = vmatprep.subr.mxu0 0.0
        %2228 = vmatpush2.msra.mxu0 0.0
        %2229 = vmatprep.subr.mxu0 0.0
        %2230 = vmatpush2.msra.mxu0 0.0
        %2231 = vmatprep.mubr.f32.mxu0 0.0
        %2232 = vmatmul.mubr.f32.gmra.mxu0 %v2159
        %v2233 = vpop.f32.mrf.mxu0
        %v2234 = vadd.f32 0.0, %v2233
        %v2235 = vpop.f32.mrf.mxu0
        %2236 = vmatprep.mubr.f32.mxu0 0.0
        %2237 = vmatmul.mubr.f32.gmra.mxu0 %v2162
        %v2238 = vpop.f32.mrf.mxu0
        %v2239 = vadd.f32 0.0, %v2238
        %v2240 = vpop.f32.mrf.mxu0
        %2241 = vmatprep.mubr.f32.mxu0 0.0
        %2242 = vmatmul.mubr.f32.gmra.mxu0 %v2165
        %v2243 = vpop.f32.mrf.mxu0
        %v2244 = vadd.f32 0.0, %v2243
        %v2245 = vpop.f32.mrf.mxu0
        %2246 = vdwg.mxu0
        %2250 = vrot.lane.b32.xlu0 %v2234, 96
        %v2251 = vpop.permute.xlu0 %2250
        %2252 = vrot.lane.b32.xlu0 %v2239, 96
        %v2253 = vpop.permute.xlu0 %2252
        %2254 = vrot.lane.b32.xlu0 %v2244, 96
        %v2255 = vpop.permute.xlu0 %2254
        %v2256 = vsel %vm739, %v2234, 0
        %v2258 = vsel %vm739, %v2239, 0
        %v2260 = vsel %vm739, %v2244, 0
        %v2262 = vsel %vm739, %v2251, 0
        %v2264 = vsel %vm739, %v2253, 0
        %v2266 = vsel %vm739, %v2255, 0
        %2268 = vmatprep.subr.mxu0 0.0
        %2269 = vmatpush1.xpose.msra.mxu0 0.0
        %2270 = vmatprep.subr.mxu0 0.0
        %2271 = vmatpush1.xpose.msra.mxu0 0.0
        %2272 = vmatprep.subr.mxu0 0.0
        %2273 = vmatpush1.xpose.msra.mxu0 0.0
        %2274 = vmatprep.subr.mxu0 0.0
        %2275 = vmatpush1.xpose.msra.mxu0 0.0
        %2276 = vmatprep.subr.mxu0 0.0
        %2277 = vmatpush1.xpose.msra.mxu0 0.0
        %2278 = vmatprep.subr.mxu0 0.0
        %2279 = vmatpush1.xpose.msra.mxu0 0.0
        %2280 = vmatprep.subr.mxu0 0.0
        %2281 = vmatpush1.xpose.msra.mxu0 0.0
        %2282 = vmatprep.subr.mxu0 0.0
        %2283 = vmatpush1.xpose.msra.mxu0 0.0
        %2284 = vmatprep.subr.mxu0 0.0
        %2285 = vmatpush1.xpose.msra.mxu0 0.0
        %2286 = vmatprep.subr.mxu0 0.0
        %2287 = vmatpush1.xpose.msra.mxu0 0.0
        %2288 = vmatprep.subr.mxu0 0.0
        %2289 = vmatpush1.xpose.msra.mxu0 0.0
        %2290 = vmatprep.subr.mxu0 0.0
        %2291 = vmatpush1.xpose.msra.mxu0 0.0
        %2292 = vmatprep.subr.mxu0 0.0
        %2293 = vmatpush1.xpose.msra.mxu0 0.0
        %2294 = vmatprep.subr.mxu0 0.0
        %2295 = vmatpush1.xpose.msra.mxu0 %v2266
        %2296 = vmatprep.subr.mxu0 0.0
        %2297 = vmatpush1.xpose.msra.mxu0 %v2264
        %2298 = vmatprep.subr.mxu0 0.0
        %2299 = vmatpush1.xpose.msra.mxu0 %v2262
        %2300 = vmatprep.subr.mxu0 0.0
        %2301 = vmatpush2.xpose.msra.mxu0 0.0
        %2302 = vmatprep.subr.mxu0 0.0
        %2303 = vmatpush2.xpose.msra.mxu0 0.0
        %2304 = vmatprep.subr.mxu0 0.0
        %2305 = vmatpush2.xpose.msra.mxu0 0.0
        %2306 = vmatprep.subr.mxu0 0.0
        %2307 = vmatpush2.xpose.msra.mxu0 0.0
        %2308 = vmatprep.subr.mxu0 0.0
        %2309 = vmatpush2.xpose.msra.mxu0 0.0
        %2310 = vmatprep.subr.mxu0 0.0
        %2311 = vmatpush2.xpose.msra.mxu0 0.0
        %2312 = vmatprep.subr.mxu0 0.0
        %2313 = vmatpush2.xpose.msra.mxu0 0.0
        %2314 = vmatprep.subr.mxu0 0.0
        %2315 = vmatpush2.xpose.msra.mxu0 0.0
        %2316 = vmatprep.subr.mxu0 0.0
        %2317 = vmatpush2.xpose.msra.mxu0 0.0
        %2318 = vmatprep.subr.mxu0 0.0
        %2319 = vmatpush2.xpose.msra.mxu0 0.0
        %2320 = vmatprep.subr.mxu0 0.0
        %2321 = vmatpush2.xpose.msra.mxu0 0.0
        %2322 = vmatprep.subr.mxu0 0.0
        %2323 = vmatpush2.xpose.msra.mxu0 0.0
        %2324 = vmatprep.subr.mxu0 0.0
        %2325 = vmatpush2.xpose.msra.mxu0 0.0
        %2326 = vmatprep.subr.mxu0 0.0
        %2327 = vmatpush2.xpose.msra.mxu0 0.0
        %2328 = vmatprep.subr.mxu0 0.0
        %2329 = vmatpush2.xpose.msra.mxu0 0.0
        %2330 = vmatprep.subr.mxu0 0.0
        %2331 = vmatpush2.xpose.msra.mxu0 0.0
        %2332 = vmatprep.mubr.f32.mxu0 0.0
        %2333 = vmatmul.mubr.f32.gmra.mxu0 %v2256
        %v2334 = vpop.f32.mrf.mxu0
        %v2335 = vadd.f32 0.0, %v2334
        %v2336 = vpop.f32.mrf.mxu0
        %2337 = vmatprep.mubr.f32.mxu0 0.0
        %2338 = vmatmul.mubr.f32.gmra.mxu0 %v2258
        %v2339 = vpop.f32.mrf.mxu0
        %v2340 = vadd.f32 0.0, %v2339
        %v2341 = vpop.f32.mrf.mxu0
        %2342 = vmatprep.mubr.f32.mxu0 0.0
        %2343 = vmatmul.mubr.f32.gmra.mxu0 %v2260
        %v2344 = vpop.f32.mrf.mxu0
        %v2345 = vadd.f32 0.0, %v2344
        %v2346 = vpop.f32.mrf.mxu0
        %2347 = vdwg.mxu0
        %v2348 = vsel %vm832, %v2335, -inf
        %2349 = vmax.xlane.f32.xlu0 %v2348
        %v2350 = vpop.xlane.xlu0 %2349
        %v2351 = vsel %vm832, %v2340, -inf
        %2352 = vmax.xlane.f32.xlu0 %v2351
        %v2353 = vpop.xlane.xlu0 %2352
        %v2354 = vsel %vm839, %v2345, -inf
        %2355 = vmax.xlane.f32.xlu0 %v2354
        %v2356 = vpop.xlane.xlu0 %2355
        %v2357 = vsub.f32 %v2335, %v2350
        %v2358 = vsub.f32 %v2340, %v2353
        %v2359 = vsub.f32 %v2345, %v2356
        %v2360 = vmul.f32 %v2357, 1.442695
        %v2361 = vpow.pop %v2360
        %v2362 = vmul.f32 %v2358, 1.442695
        %v2363 = vpow.pop %v2362
        %v2364 = vmul.f32 %v2359, 1.442695
        %v2365 = vpow.pop %v2364
        %v2366 = vsel %vm832, %v2361, 0.0
        %2367 = vadd.xlane.f32.xlu0 %v2366
        %v2368 = vpop.xlane.xlu0 %2367
        %v2369 = vsel %vm832, %v2363, 0.0
        %2370 = vadd.xlane.f32.xlu0 %v2369
        %v2371 = vpop.xlane.xlu0 %2370
        %v2372 = vsel %vm839, %v2365, 0.0
        %2373 = vadd.xlane.f32.xlu0 %v2372
        %v2374 = vpop.xlane.xlu0 %2373
        %v2375 = vrcp.pop %v2368
        %v2376 = vrcp.pop %v2371
        %v2377 = vrcp.pop %v2374
        %v2378 = vmul.f32 %v2361, %v2375
        %v2379 = vmul.f32 %v2363, %v2376
        %v2380 = vmul.f32 %v2365, %v2377
        %2381 = vrot.lane.b32.xlu0 %v2234, 64
        %v2382 = vpop.permute.xlu0 %2381
        %2383 = vrot.lane.b32.xlu0 %v2239, 64
        %v2384 = vpop.permute.xlu0 %2383
        %2385 = vrot.lane.b32.xlu0 %v2244, 64
        %v2386 = vpop.permute.xlu0 %2385
        %v2390 = vsel %vm832, %v2378, 0
        %v2393 = vsel %vm832, %v2379, 0
        %v2396 = vsel %vm832, %v2380, 0
        %v2398 = vsel %vm572, %v2386, 0
        %2400 = vmatprep.subr.mxu0 0.0
        %2401 = vmatpush1.msra.mxu0 0.0
        %2402 = vmatprep.subr.mxu0 0.0
        %2403 = vmatpush1.msra.mxu0 0.0
        %2404 = vmatprep.subr.mxu0 0.0
        %2405 = vmatpush1.msra.mxu0 0.0
        %2406 = vmatprep.subr.mxu0 0.0
        %2407 = vmatpush1.msra.mxu0 0.0
        %2408 = vmatprep.subr.mxu0 0.0
        %2409 = vmatpush1.msra.mxu0 0.0
        %2410 = vmatprep.subr.mxu0 0.0
        %2411 = vmatpush1.msra.mxu0 0.0
        %2412 = vmatprep.subr.mxu0 0.0
        %2413 = vmatpush1.msra.mxu0 0.0
        %2414 = vmatprep.subr.mxu0 0.0
        %2415 = vmatpush1.msra.mxu0 0.0
        %2416 = vmatprep.subr.mxu0 0.0
        %2417 = vmatpush1.msra.mxu0 0.0
        %2418 = vmatprep.subr.mxu0 0.0
        %2419 = vmatpush1.msra.mxu0 0.0
        %2420 = vmatprep.subr.mxu0 0.0
        %2421 = vmatpush1.msra.mxu0 0.0
        %2422 = vmatprep.subr.mxu0 0.0
        %2423 = vmatpush1.msra.mxu0 0.0
        %2424 = vmatprep.subr.mxu0 0.0
        %2425 = vmatpush1.msra.mxu0 0.0
        %2426 = vmatprep.subr.mxu0 0.0
        %2427 = vmatpush1.msra.mxu0 %v2398
        %2428 = vmatprep.subr.mxu0 0.0
        %2429 = vmatpush1.msra.mxu0 %v2384
        %2430 = vmatprep.subr.mxu0 0.0
        %2431 = vmatpush1.msra.mxu0 %v2382
        %2432 = vmatprep.subr.mxu0 0.0
        %2433 = vmatpush2.msra.mxu0 0.0
        %2434 = vmatprep.subr.mxu0 0.0
        %2435 = vmatpush2.msra.mxu0 0.0
        %2436 = vmatprep.subr.mxu0 0.0
        %2437 = vmatpush2.msra.mxu0 0.0
        %2438 = vmatprep.subr.mxu0 0.0
        %2439 = vmatpush2.msra.mxu0 0.0
        %2440 = vmatprep.subr.mxu0 0.0
        %2441 = vmatpush2.msra.mxu0 0.0
        %2442 = vmatprep.subr.mxu0 0.0
        %2443 = vmatpush2.msra.mxu0 0.0
        %2444 = vmatprep.subr.mxu0 0.0
        %2445 = vmatpush2.msra.mxu0 0.0
        %2446 = vmatprep.subr.mxu0 0.0
        %2447 = vmatpush2.msra.mxu0 0.0
        %2448 = vmatprep.subr.mxu0 0.0
        %2449 = vmatpush2.msra.mxu0 0.0
        %2450 = vmatprep.subr.mxu0 0.0
        %2451 = vmatpush2.msra.mxu0 0.0
        %2452 = vmatprep.subr.mxu0 0.0
        %2453 = vmatpush2.msra.mxu0 0.0
        %2454 = vmatprep.subr.mxu0 0.0
        %2455 = vmatpush2.msra.mxu0 0.0
        %2456 = vmatprep.subr.mxu0 0.0
        %2457 = vmatpush2.msra.mxu0 0.0
        %2458 = vmatprep.subr.mxu0 0.0
        %2459 = vmatpush2.msra.mxu0 0.0
        %2460 = vmatprep.subr.mxu0 0.0
        %2461 = vmatpush2.msra.mxu0 0.0
        %2462 = vmatprep.subr.mxu0 0.0
        %2463 = vmatpush2.msra.mxu0 0.0
        %2464 = vmatprep.mubr.f32.mxu0 0.0
        %2465 = vmatmul.mubr.f32.gmra.mxu0 %v2390
        %v2466 = vpop.f32.mrf.mxu0
        %v2467 = vadd.f32 0.0, %v2466
        %v2468 = vpop.f32.mrf.mxu0
        %2469 = vmatprep.mubr.f32.mxu0 0.0
        %2470 = vmatmul.mubr.f32.gmra.mxu0 %v2393
        %v2471 = vpop.f32.mrf.mxu0
        %v2472 = vadd.f32 0.0, %v2471
        %v2473 = vpop.f32.mrf.mxu0
        %2474 = vmatprep.mubr.f32.mxu0 0.0
        %2475 = vmatmul.mubr.f32.gmra.mxu0 %v2396
        %v2476 = vpop.f32.mrf.mxu0
        %v2477 = vadd.f32 0.0, %v2476
        %v2478 = vpop.f32.mrf.mxu0
        %2479 = vdwg.mxu0
        %2480 = vrot.lane.b32.xlu0 %v2234, 120
        %v2481 = vpop.permute.xlu0 %2480
        %2482 = vrot.lane.b32.xlu0 %v2239, 120
        %v2483 = vpop.permute.xlu0 %2482
        %2484 = vrot.lane.b32.xlu0 %v2244, 120
        %v2485 = vpop.permute.xlu0 %2484
        %2486 = vrot.lane.b32.xlu0 %v2234, 88
        %v2487 = vpop.permute.xlu0 %2486
        %2488 = vrot.lane.b32.xlu0 %v2239, 88
        %v2489 = vpop.permute.xlu0 %2488
        %2490 = vrot.lane.b32.xlu0 %v2244, 88
        %v2491 = vpop.permute.xlu0 %2490
        %v2492 = vsel %vm739, %v2481, 0
        %v2494 = vsel %vm739, %v2483, 0
        %v2496 = vsel %vm739, %v2485, 0
        %v2498 = vsel %vm739, %v2487, 0
        %v2500 = vsel %vm739, %v2489, 0
        %v2502 = vsel %vm739, %v2491, 0
        %2504 = vmatprep.subr.mxu0 0.0
        %2505 = vmatpush1.xpose.msra.mxu0 0.0
        %2506 = vmatprep.subr.mxu0 0.0
        %2507 = vmatpush1.xpose.msra.mxu0 0.0
        %2508 = vmatprep.subr.mxu0 0.0
        %2509 = vmatpush1.xpose.msra.mxu0 0.0
        %2510 = vmatprep.subr.mxu0 0.0
        %2511 = vmatpush1.xpose.msra.mxu0 0.0
        %2512 = vmatprep.subr.mxu0 0.0
        %2513 = vmatpush1.xpose.msra.mxu0 0.0
        %2514 = vmatprep.subr.mxu0 0.0
        %2515 = vmatpush1.xpose.msra.mxu0 0.0
        %2516 = vmatprep.subr.mxu0 0.0
        %2517 = vmatpush1.xpose.msra.mxu0 0.0
        %2518 = vmatprep.subr.mxu0 0.0
        %2519 = vmatpush1.xpose.msra.mxu0 0.0
        %2520 = vmatprep.subr.mxu0 0.0
        %2521 = vmatpush1.xpose.msra.mxu0 0.0
        %2522 = vmatprep.subr.mxu0 0.0
        %2523 = vmatpush1.xpose.msra.mxu0 0.0
        %2524 = vmatprep.subr.mxu0 0.0
        %2525 = vmatpush1.xpose.msra.mxu0 0.0
        %2526 = vmatprep.subr.mxu0 0.0
        %2527 = vmatpush1.xpose.msra.mxu0 0.0
        %2528 = vmatprep.subr.mxu0 0.0
        %2529 = vmatpush1.xpose.msra.mxu0 0.0
        %2530 = vmatprep.subr.mxu0 0.0
        %2531 = vmatpush1.xpose.msra.mxu0 %v2502
        %2532 = vmatprep.subr.mxu0 0.0
        %2533 = vmatpush1.xpose.msra.mxu0 %v2500
        %2534 = vmatprep.subr.mxu0 0.0
        %2535 = vmatpush1.xpose.msra.mxu0 %v2498
        %2536 = vmatprep.subr.mxu0 0.0
        %2537 = vmatpush2.xpose.msra.mxu0 0.0
        %2538 = vmatprep.subr.mxu0 0.0
        %2539 = vmatpush2.xpose.msra.mxu0 0.0
        %2540 = vmatprep.subr.mxu0 0.0
        %2541 = vmatpush2.xpose.msra.mxu0 0.0
        %2542 = vmatprep.subr.mxu0 0.0
        %2543 = vmatpush2.xpose.msra.mxu0 0.0
        %2544 = vmatprep.subr.mxu0 0.0
        %2545 = vmatpush2.xpose.msra.mxu0 0.0
        %2546 = vmatprep.subr.mxu0 0.0
        %2547 = vmatpush2.xpose.msra.mxu0 0.0
        %2548 = vmatprep.subr.mxu0 0.0
        %2549 = vmatpush2.xpose.msra.mxu0 0.0
        %2550 = vmatprep.subr.mxu0 0.0
        %2551 = vmatpush2.xpose.msra.mxu0 0.0
        %2552 = vmatprep.subr.mxu0 0.0
        %2553 = vmatpush2.xpose.msra.mxu0 0.0
        %2554 = vmatprep.subr.mxu0 0.0
        %2555 = vmatpush2.xpose.msra.mxu0 0.0
        %2556 = vmatprep.subr.mxu0 0.0
        %2557 = vmatpush2.xpose.msra.mxu0 0.0
        %2558 = vmatprep.subr.mxu0 0.0
        %2559 = vmatpush2.xpose.msra.mxu0 0.0
        %2560 = vmatprep.subr.mxu0 0.0
        %2561 = vmatpush2.xpose.msra.mxu0 0.0
        %2562 = vmatprep.subr.mxu0 0.0
        %2563 = vmatpush2.xpose.msra.mxu0 0.0
        %2564 = vmatprep.subr.mxu0 0.0
        %2565 = vmatpush2.xpose.msra.mxu0 0.0
        %2566 = vmatprep.subr.mxu0 0.0
        %2567 = vmatpush2.xpose.msra.mxu0 0.0
        %2568 = vmatprep.mubr.f32.mxu0 0.0
        %2569 = vmatmul.mubr.f32.gmra.mxu0 %v2492
        %v2570 = vpop.f32.mrf.mxu0
        %v2571 = vadd.f32 0.0, %v2570
        %v2572 = vpop.f32.mrf.mxu0
        %2573 = vmatprep.mubr.f32.mxu0 0.0
        %2574 = vmatmul.mubr.f32.gmra.mxu0 %v2494
        %v2575 = vpop.f32.mrf.mxu0
        %v2576 = vadd.f32 0.0, %v2575
        %v2577 = vpop.f32.mrf.mxu0
        %2578 = vmatprep.mubr.f32.mxu0 0.0
        %2579 = vmatmul.mubr.f32.gmra.mxu0 %v2496
        %v2580 = vpop.f32.mrf.mxu0
        %v2581 = vadd.f32 0.0, %v2580
        %v2582 = vpop.f32.mrf.mxu0
        %2583 = vdwg.mxu0
        %v2584 = vsel %vm832, %v2571, -inf
        %2585 = vmax.xlane.f32.xlu0 %v2584
        %v2586 = vpop.xlane.xlu0 %2585
        %v2587 = vsel %vm832, %v2576, -inf
        %2588 = vmax.xlane.f32.xlu0 %v2587
        %v2589 = vpop.xlane.xlu0 %2588
        %v2590 = vsel %vm839, %v2581, -inf
        %2591 = vmax.xlane.f32.xlu0 %v2590
        %v2592 = vpop.xlane.xlu0 %2591
        %v2593 = vsub.f32 %v2571, %v2586
        %v2594 = vsub.f32 %v2576, %v2589
        %v2595 = vsub.f32 %v2581, %v2592
        %v2596 = vmul.f32 %v2593, 1.442695
        %v2597 = vpow.pop %v2596
        %v2598 = vmul.f32 %v2594, 1.442695
        %v2599 = vpow.pop %v2598
        %v2600 = vmul.f32 %v2595, 1.442695
        %v2601 = vpow.pop %v2600
        %v2602 = vsel %vm832, %v2597, 0.0
        %2603 = vadd.xlane.f32.xlu0 %v2602
        %v2604 = vpop.xlane.xlu0 %2603
        %v2605 = vsel %vm832, %v2599, 0.0
        %2606 = vadd.xlane.f32.xlu0 %v2605
        %v2607 = vpop.xlane.xlu0 %2606
        %v2608 = vsel %vm839, %v2601, 0.0
        %2609 = vadd.xlane.f32.xlu0 %v2608
        %v2610 = vpop.xlane.xlu0 %2609
        %v2611 = vrcp.pop %v2604
        %v2612 = vrcp.pop %v2607
        %v2613 = vrcp.pop %v2610
        %v2614 = vmul.f32 %v2597, %v2611
        %v2615 = vmul.f32 %v2599, %v2612
        %v2616 = vmul.f32 %v2601, %v2613
        %2617 = vrot.lane.b32.xlu0 %v2234, 56
        %v2618 = vpop.permute.xlu0 %2617
        %2619 = vrot.lane.b32.xlu0 %v2239, 56
        %v2620 = vpop.permute.xlu0 %2619
        %2621 = vrot.lane.b32.xlu0 %v2244, 56
        %v2622 = vpop.permute.xlu0 %2621
        %v2626 = vsel %vm832, %v2614, 0
        %v2629 = vsel %vm832, %v2615, 0
        %v2632 = vsel %vm832, %v2616, 0
        %v2634 = vsel %vm572, %v2622, 0
        %2636 = vmatprep.subr.mxu0 0.0
        %2637 = vmatpush1.msra.mxu0 0.0
        %2638 = vmatprep.subr.mxu0 0.0
        %2639 = vmatpush1.msra.mxu0 0.0
        %2640 = vmatprep.subr.mxu0 0.0
        %2641 = vmatpush1.msra.mxu0 0.0
        %2642 = vmatprep.subr.mxu0 0.0
        %2643 = vmatpush1.msra.mxu0 0.0
        %2644 = vmatprep.subr.mxu0 0.0
        %2645 = vmatpush1.msra.mxu0 0.0
        %2646 = vmatprep.subr.mxu0 0.0
        %2647 = vmatpush1.msra.mxu0 0.0
        %2648 = vmatprep.subr.mxu0 0.0
        %2649 = vmatpush1.msra.mxu0 0.0
        %2650 = vmatprep.subr.mxu0 0.0
        %2651 = vmatpush1.msra.mxu0 0.0
        %2652 = vmatprep.subr.mxu0 0.0
        %2653 = vmatpush1.msra.mxu0 0.0
        %2654 = vmatprep.subr.mxu0 0.0
        %2655 = vmatpush1.msra.mxu0 0.0
        %2656 = vmatprep.subr.mxu0 0.0
        %2657 = vmatpush1.msra.mxu0 0.0
        %2658 = vmatprep.subr.mxu0 0.0
        %2659 = vmatpush1.msra.mxu0 0.0
        %2660 = vmatprep.subr.mxu0 0.0
        %2661 = vmatpush1.msra.mxu0 0.0
        %2662 = vmatprep.subr.mxu0 0.0
        %2663 = vmatpush1.msra.mxu0 %v2634
        %2664 = vmatprep.subr.mxu0 0.0
        %2665 = vmatpush1.msra.mxu0 %v2620
        %2666 = vmatprep.subr.mxu0 0.0
        %2667 = vmatpush1.msra.mxu0 %v2618
        %2668 = vmatprep.subr.mxu0 0.0
        %2669 = vmatpush2.msra.mxu0 0.0
        %2670 = vmatprep.subr.mxu0 0.0
        %2671 = vmatpush2.msra.mxu0 0.0
        %2672 = vmatprep.subr.mxu0 0.0
        %2673 = vmatpush2.msra.mxu0 0.0
        %2674 = vmatprep.subr.mxu0 0.0
        %2675 = vmatpush2.msra.mxu0 0.0
        %2676 = vmatprep.subr.mxu0 0.0
        %2677 = vmatpush2.msra.mxu0 0.0
        %2678 = vmatprep.subr.mxu0 0.0
        %2679 = vmatpush2.msra.mxu0 0.0
        %2680 = vmatprep.subr.mxu0 0.0
        %2681 = vmatpush2.msra.mxu0 0.0
        %2682 = vmatprep.subr.mxu0 0.0
        %2683 = vmatpush2.msra.mxu0 0.0
        %2684 = vmatprep.subr.mxu0 0.0
        %2685 = vmatpush2.msra.mxu0 0.0
        %2686 = vmatprep.subr.mxu0 0.0
        %2687 = vmatpush2.msra.mxu0 0.0
        %2688 = vmatprep.subr.mxu0 0.0
        %2689 = vmatpush2.msra.mxu0 0.0
        %2690 = vmatprep.subr.mxu0 0.0
        %2691 = vmatpush2.msra.mxu0 0.0
        %2692 = vmatprep.subr.mxu0 0.0
        %2693 = vmatpush2.msra.mxu0 0.0
        %2694 = vmatprep.subr.mxu0 0.0
        %2695 = vmatpush2.msra.mxu0 0.0
        %2696 = vmatprep.subr.mxu0 0.0
        %2697 = vmatpush2.msra.mxu0 0.0
        %2698 = vmatprep.subr.mxu0 0.0
        %2699 = vmatpush2.msra.mxu0 0.0
        %2700 = vmatprep.mubr.f32.mxu0 0.0
        %2701 = vmatmul.mubr.f32.gmra.mxu0 %v2626
        %v2702 = vpop.f32.mrf.mxu0
        %v2703 = vadd.f32 0.0, %v2702
        %v2704 = vpop.f32.mrf.mxu0
        %2705 = vmatprep.mubr.f32.mxu0 0.0
        %2706 = vmatmul.mubr.f32.gmra.mxu0 %v2629
        %v2707 = vpop.f32.mrf.mxu0
        %v2708 = vadd.f32 0.0, %v2707
        %v2709 = vpop.f32.mrf.mxu0
        %2710 = vmatprep.mubr.f32.mxu0 0.0
        %2711 = vmatmul.mubr.f32.gmra.mxu0 %v2632
        %v2712 = vpop.f32.mrf.mxu0
        %v2713 = vadd.f32 0.0, %v2712
        %v2714 = vpop.f32.mrf.mxu0
        %2715 = vdwg.mxu0
        %2716 = vrot.lane.b32.xlu0 %v2234, 112
        %v2717 = vpop.permute.xlu0 %2716
        %2718 = vrot.lane.b32.xlu0 %v2239, 112
        %v2719 = vpop.permute.xlu0 %2718
        %2720 = vrot.lane.b32.xlu0 %v2244, 112
        %v2721 = vpop.permute.xlu0 %2720
        %2722 = vrot.lane.b32.xlu0 %v2234, 80
        %v2723 = vpop.permute.xlu0 %2722
        %2724 = vrot.lane.b32.xlu0 %v2239, 80
        %v2725 = vpop.permute.xlu0 %2724
        %2726 = vrot.lane.b32.xlu0 %v2244, 80
        %v2727 = vpop.permute.xlu0 %2726
        %v2728 = vsel %vm739, %v2717, 0
        %v2730 = vsel %vm739, %v2719, 0
        %v2732 = vsel %vm739, %v2721, 0
        %v2734 = vsel %vm739, %v2723, 0
        %v2736 = vsel %vm739, %v2725, 0
        %v2738 = vsel %vm739, %v2727, 0
        %2740 = vmatprep.subr.mxu0 0.0
        %2741 = vmatpush1.xpose.msra.mxu0 0.0
        %2742 = vmatprep.subr.mxu0 0.0
        %2743 = vmatpush1.xpose.msra.mxu0 0.0
        %2744 = vmatprep.subr.mxu0 0.0
        %2745 = vmatpush1.xpose.msra.mxu0 0.0
        %2746 = vmatprep.subr.mxu0 0.0
        %2747 = vmatpush1.xpose.msra.mxu0 0.0
        %2748 = vmatprep.subr.mxu0 0.0
        %2749 = vmatpush1.xpose.msra.mxu0 0.0
        %2750 = vmatprep.subr.mxu0 0.0
        %2751 = vmatpush1.xpose.msra.mxu0 0.0
        %2752 = vmatprep.subr.mxu0 0.0
        %2753 = vmatpush1.xpose.msra.mxu0 0.0
        %2754 = vmatprep.subr.mxu0 0.0
        %2755 = vmatpush1.xpose.msra.mxu0 0.0
        %2756 = vmatprep.subr.mxu0 0.0
        %2757 = vmatpush1.xpose.msra.mxu0 0.0
        %2758 = vmatprep.subr.mxu0 0.0
        %2759 = vmatpush1.xpose.msra.mxu0 0.0
        %2760 = vmatprep.subr.mxu0 0.0
        %2761 = vmatpush1.xpose.msra.mxu0 0.0
        %2762 = vmatprep.subr.mxu0 0.0
        %2763 = vmatpush1.xpose.msra.mxu0 0.0
        %2764 = vmatprep.subr.mxu0 0.0
        %2765 = vmatpush1.xpose.msra.mxu0 0.0
        %2766 = vmatprep.subr.mxu0 0.0
        %2767 = vmatpush1.xpose.msra.mxu0 %v2738
        %2768 = vmatprep.subr.mxu0 0.0
        %2769 = vmatpush1.xpose.msra.mxu0 %v2736
        %2770 = vmatprep.subr.mxu0 0.0
        %2771 = vmatpush1.xpose.msra.mxu0 %v2734
        %2772 = vmatprep.subr.mxu0 0.0
        %2773 = vmatpush2.xpose.msra.mxu0 0.0
        %2774 = vmatprep.subr.mxu0 0.0
        %2775 = vmatpush2.xpose.msra.mxu0 0.0
        %2776 = vmatprep.subr.mxu0 0.0
        %2777 = vmatpush2.xpose.msra.mxu0 0.0
        %2778 = vmatprep.subr.mxu0 0.0
        %2779 = vmatpush2.xpose.msra.mxu0 0.0
        %2780 = vmatprep.subr.mxu0 0.0
        %2781 = vmatpush2.xpose.msra.mxu0 0.0
        %2782 = vmatprep.subr.mxu0 0.0
        %2783 = vmatpush2.xpose.msra.mxu0 0.0
        %2784 = vmatprep.subr.mxu0 0.0
        %2785 = vmatpush2.xpose.msra.mxu0 0.0
        %2786 = vmatprep.subr.mxu0 0.0
        %2787 = vmatpush2.xpose.msra.mxu0 0.0
        %2788 = vmatprep.subr.mxu0 0.0
        %2789 = vmatpush2.xpose.msra.mxu0 0.0
        %2790 = vmatprep.subr.mxu0 0.0
        %2791 = vmatpush2.xpose.msra.mxu0 0.0
        %2792 = vmatprep.subr.mxu0 0.0
        %2793 = vmatpush2.xpose.msra.mxu0 0.0
        %2794 = vmatprep.subr.mxu0 0.0
        %2795 = vmatpush2.xpose.msra.mxu0 0.0
        %2796 = vmatprep.subr.mxu0 0.0
        %2797 = vmatpush2.xpose.msra.mxu0 0.0
        %2798 = vmatprep.subr.mxu0 0.0
        %2799 = vmatpush2.xpose.msra.mxu0 0.0
        %2800 = vmatprep.subr.mxu0 0.0
        %2801 = vmatpush2.xpose.msra.mxu0 0.0
        %2802 = vmatprep.subr.mxu0 0.0
        %2803 = vmatpush2.xpose.msra.mxu0 0.0
        %2804 = vmatprep.mubr.f32.mxu0 0.0
        %2805 = vmatmul.mubr.f32.gmra.mxu0 %v2728
        %v2806 = vpop.f32.mrf.mxu0
        %v2807 = vadd.f32 0.0, %v2806
        %v2808 = vpop.f32.mrf.mxu0
        %2809 = vmatprep.mubr.f32.mxu0 0.0
        %2810 = vmatmul.mubr.f32.gmra.mxu0 %v2730
        %v2811 = vpop.f32.mrf.mxu0
        %v2812 = vadd.f32 0.0, %v2811
        %v2813 = vpop.f32.mrf.mxu0
        %2814 = vmatprep.mubr.f32.mxu0 0.0
        %2815 = vmatmul.mubr.f32.gmra.mxu0 %v2732
        %v2816 = vpop.f32.mrf.mxu0
        %v2817 = vadd.f32 0.0, %v2816
        %v2818 = vpop.f32.mrf.mxu0
        %2819 = vdwg.mxu0
        %v2820 = vsel %vm832, %v2807, -inf
        %2821 = vmax.xlane.f32.xlu0 %v2820
        %v2822 = vpop.xlane.xlu0 %2821
        %v2823 = vsel %vm832, %v2812, -inf
        %2824 = vmax.xlane.f32.xlu0 %v2823
        %v2825 = vpop.xlane.xlu0 %2824
        %v2826 = vsel %vm839, %v2817, -inf
        %2827 = vmax.xlane.f32.xlu0 %v2826
        %v2828 = vpop.xlane.xlu0 %2827
        %v2829 = vsub.f32 %v2807, %v2822
        %v2830 = vsub.f32 %v2812, %v2825
        %v2831 = vsub.f32 %v2817, %v2828
        %v2832 = vmul.f32 %v2829, 1.442695
        %v2833 = vpow.pop %v2832
        %v2834 = vmul.f32 %v2830, 1.442695
        %v2835 = vpow.pop %v2834
        %v2836 = vmul.f32 %v2831, 1.442695
        %v2837 = vpow.pop %v2836
        %v2838 = vsel %vm832, %v2833, 0.0
        %2839 = vadd.xlane.f32.xlu0 %v2838
        %v2840 = vpop.xlane.xlu0 %2839
        %v2841 = vsel %vm832, %v2835, 0.0
        %2842 = vadd.xlane.f32.xlu0 %v2841
        %v2843 = vpop.xlane.xlu0 %2842
        %v2844 = vsel %vm839, %v2837, 0.0
        %2845 = vadd.xlane.f32.xlu0 %v2844
        %v2846 = vpop.xlane.xlu0 %2845
        %v2847 = vrcp.pop %v2840
        %v2848 = vrcp.pop %v2843
        %v2849 = vrcp.pop %v2846
        %v2850 = vmul.f32 %v2833, %v2847
        %v2851 = vmul.f32 %v2835, %v2848
        %v2852 = vmul.f32 %v2837, %v2849
        %2853 = vrot.lane.b32.xlu0 %v2234, 48
        %v2854 = vpop.permute.xlu0 %2853
        %2855 = vrot.lane.b32.xlu0 %v2239, 48
        %v2856 = vpop.permute.xlu0 %2855
        %2857 = vrot.lane.b32.xlu0 %v2244, 48
        %v2858 = vpop.permute.xlu0 %2857
        %v2862 = vsel %vm832, %v2850, 0
        %v2865 = vsel %vm832, %v2851, 0
        %v2868 = vsel %vm832, %v2852, 0
        %v2870 = vsel %vm572, %v2858, 0
        %2872 = vmatprep.subr.mxu0 0.0
        %2873 = vmatpush1.msra.mxu0 0.0
        %2874 = vmatprep.subr.mxu0 0.0
        %2875 = vmatpush1.msra.mxu0 0.0
        %2876 = vmatprep.subr.mxu0 0.0
        %2877 = vmatpush1.msra.mxu0 0.0
        %2878 = vmatprep.subr.mxu0 0.0
        %2879 = vmatpush1.msra.mxu0 0.0
        %2880 = vmatprep.subr.mxu0 0.0
        %2881 = vmatpush1.msra.mxu0 0.0
        %2882 = vmatprep.subr.mxu0 0.0
        %2883 = vmatpush1.msra.mxu0 0.0
        %2884 = vmatprep.subr.mxu0 0.0
        %2885 = vmatpush1.msra.mxu0 0.0
        %2886 = vmatprep.subr.mxu0 0.0
        %2887 = vmatpush1.msra.mxu0 0.0
        %2888 = vmatprep.subr.mxu0 0.0
        %2889 = vmatpush1.msra.mxu0 0.0
        %2890 = vmatprep.subr.mxu0 0.0
        %2891 = vmatpush1.msra.mxu0 0.0
        %2892 = vmatprep.subr.mxu0 0.0
        %2893 = vmatpush1.msra.mxu0 0.0
        %2894 = vmatprep.subr.mxu0 0.0
        %2895 = vmatpush1.msra.mxu0 0.0
        %2896 = vmatprep.subr.mxu0 0.0
        %2897 = vmatpush1.msra.mxu0 0.0
        %2898 = vmatprep.subr.mxu0 0.0
        %2899 = vmatpush1.msra.mxu0 %v2870
        %2900 = vmatprep.subr.mxu0 0.0
        %2901 = vmatpush1.msra.mxu0 %v2856
        %2902 = vmatprep.subr.mxu0 0.0
        %2903 = vmatpush1.msra.mxu0 %v2854
        %2904 = vmatprep.subr.mxu0 0.0
        %2905 = vmatpush2.msra.mxu0 0.0
        %2906 = vmatprep.subr.mxu0 0.0
        %2907 = vmatpush2.msra.mxu0 0.0
        %2908 = vmatprep.subr.mxu0 0.0
        %2909 = vmatpush2.msra.mxu0 0.0
        %2910 = vmatprep.subr.mxu0 0.0
        %2911 = vmatpush2.msra.mxu0 0.0
        %2912 = vmatprep.subr.mxu0 0.0
        %2913 = vmatpush2.msra.mxu0 0.0
        %2914 = vmatprep.subr.mxu0 0.0
        %2915 = vmatpush2.msra.mxu0 0.0
        %2916 = vmatprep.subr.mxu0 0.0
        %2917 = vmatpush2.msra.mxu0 0.0
        %2918 = vmatprep.subr.mxu0 0.0
        %2919 = vmatpush2.msra.mxu0 0.0
        %2920 = vmatprep.subr.mxu0 0.0
        %2921 = vmatpush2.msra.mxu0 0.0
        %2922 = vmatprep.subr.mxu0 0.0
        %2923 = vmatpush2.msra.mxu0 0.0
        %2924 = vmatprep.subr.mxu0 0.0
        %2925 = vmatpush2.msra.mxu0 0.0
        %2926 = vmatprep.subr.mxu0 0.0
        %2927 = vmatpush2.msra.mxu0 0.0
        %2928 = vmatprep.subr.mxu0 0.0
        %2929 = vmatpush2.msra.mxu0 0.0
        %2930 = vmatprep.subr.mxu0 0.0
        %2931 = vmatpush2.msra.mxu0 0.0
        %2932 = vmatprep.subr.mxu0 0.0
        %2933 = vmatpush2.msra.mxu0 0.0
        %2934 = vmatprep.subr.mxu0 0.0
        %2935 = vmatpush2.msra.mxu0 0.0
        %2936 = vmatprep.mubr.f32.mxu0 0.0
        %2937 = vmatmul.mubr.f32.gmra.mxu0 %v2862
        %v2938 = vpop.f32.mrf.mxu0
        %v2939 = vadd.f32 0.0, %v2938
        %v2940 = vpop.f32.mrf.mxu0
        %2941 = vmatprep.mubr.f32.mxu0 0.0
        %2942 = vmatmul.mubr.f32.gmra.mxu0 %v2865
        %v2943 = vpop.f32.mrf.mxu0
        %v2944 = vadd.f32 0.0, %v2943
        %v2945 = vpop.f32.mrf.mxu0
        %2946 = vmatprep.mubr.f32.mxu0 0.0
        %2947 = vmatmul.mubr.f32.gmra.mxu0 %v2868
        %v2948 = vpop.f32.mrf.mxu0
        %v2949 = vadd.f32 0.0, %v2948
        %v2950 = vpop.f32.mrf.mxu0
        %2951 = vdwg.mxu0
        %2952 = vrot.lane.b32.xlu0 %v2234, 104
        %v2953 = vpop.permute.xlu0 %2952
        %2954 = vrot.lane.b32.xlu0 %v2239, 104
        %v2955 = vpop.permute.xlu0 %2954
        %2956 = vrot.lane.b32.xlu0 %v2244, 104
        %v2957 = vpop.permute.xlu0 %2956
        %2958 = vrot.lane.b32.xlu0 %v2234, 72
        %v2959 = vpop.permute.xlu0 %2958
        %2960 = vrot.lane.b32.xlu0 %v2239, 72
        %v2961 = vpop.permute.xlu0 %2960
        %2962 = vrot.lane.b32.xlu0 %v2244, 72
        %v2963 = vpop.permute.xlu0 %2962
        %v2964 = vsel %vm739, %v2953, 0
        %v2966 = vsel %vm739, %v2955, 0
        %v2968 = vsel %vm739, %v2957, 0
        %v2970 = vsel %vm739, %v2959, 0
        %v2972 = vsel %vm739, %v2961, 0
        %v2974 = vsel %vm739, %v2963, 0
        %2976 = vmatprep.subr.mxu0 0.0
        %2977 = vmatpush1.xpose.msra.mxu0 0.0
        %2978 = vmatprep.subr.mxu0 0.0
        %2979 = vmatpush1.xpose.msra.mxu0 0.0
        %2980 = vmatprep.subr.mxu0 0.0
        %2981 = vmatpush1.xpose.msra.mxu0 0.0
        %2982 = vmatprep.subr.mxu0 0.0
        %2983 = vmatpush1.xpose.msra.mxu0 0.0
        %2984 = vmatprep.subr.mxu0 0.0
        %2985 = vmatpush1.xpose.msra.mxu0 0.0
        %2986 = vmatprep.subr.mxu0 0.0
        %2987 = vmatpush1.xpose.msra.mxu0 0.0
        %2988 = vmatprep.subr.mxu0 0.0
        %2989 = vmatpush1.xpose.msra.mxu0 0.0
        %2990 = vmatprep.subr.mxu0 0.0
        %2991 = vmatpush1.xpose.msra.mxu0 0.0
        %2992 = vmatprep.subr.mxu0 0.0
        %2993 = vmatpush1.xpose.msra.mxu0 0.0
        %2994 = vmatprep.subr.mxu0 0.0
        %2995 = vmatpush1.xpose.msra.mxu0 0.0
        %2996 = vmatprep.subr.mxu0 0.0
        %2997 = vmatpush1.xpose.msra.mxu0 0.0
        %2998 = vmatprep.subr.mxu0 0.0
        %2999 = vmatpush1.xpose.msra.mxu0 0.0
        %3000 = vmatprep.subr.mxu0 0.0
        %3001 = vmatpush1.xpose.msra.mxu0 0.0
        %3002 = vmatprep.subr.mxu0 0.0
        %3003 = vmatpush1.xpose.msra.mxu0 %v2974
        %3004 = vmatprep.subr.mxu0 0.0
        %3005 = vmatpush1.xpose.msra.mxu0 %v2972
        %3006 = vmatprep.subr.mxu0 0.0
        %3007 = vmatpush1.xpose.msra.mxu0 %v2970
        %3008 = vmatprep.subr.mxu0 0.0
        %3009 = vmatpush2.xpose.msra.mxu0 0.0
        %3010 = vmatprep.subr.mxu0 0.0
        %3011 = vmatpush2.xpose.msra.mxu0 0.0
        %3012 = vmatprep.subr.mxu0 0.0
        %3013 = vmatpush2.xpose.msra.mxu0 0.0
        %3014 = vmatprep.subr.mxu0 0.0
        %3015 = vmatpush2.xpose.msra.mxu0 0.0
        %3016 = vmatprep.subr.mxu0 0.0
        %3017 = vmatpush2.xpose.msra.mxu0 0.0
        %3018 = vmatprep.subr.mxu0 0.0
        %3019 = vmatpush2.xpose.msra.mxu0 0.0
        %3020 = vmatprep.subr.mxu0 0.0
        %3021 = vmatpush2.xpose.msra.mxu0 0.0
        %3022 = vmatprep.subr.mxu0 0.0
        %3023 = vmatpush2.xpose.msra.mxu0 0.0
        %3024 = vmatprep.subr.mxu0 0.0
        %3025 = vmatpush2.xpose.msra.mxu0 0.0
        %3026 = vmatprep.subr.mxu0 0.0
        %3027 = vmatpush2.xpose.msra.mxu0 0.0
        %3028 = vmatprep.subr.mxu0 0.0
        %3029 = vmatpush2.xpose.msra.mxu0 0.0
        %3030 = vmatprep.subr.mxu0 0.0
        %3031 = vmatpush2.xpose.msra.mxu0 0.0
        %3032 = vmatprep.subr.mxu0 0.0
        %3033 = vmatpush2.xpose.msra.mxu0 0.0
        %3034 = vmatprep.subr.mxu0 0.0
        %3035 = vmatpush2.xpose.msra.mxu0 0.0
        %3036 = vmatprep.subr.mxu0 0.0
        %3037 = vmatpush2.xpose.msra.mxu0 0.0
        %3038 = vmatprep.subr.mxu0 0.0
        %3039 = vmatpush2.xpose.msra.mxu0 0.0
        %3040 = vmatprep.mubr.f32.mxu0 0.0
        %3041 = vmatmul.mubr.f32.gmra.mxu0 %v2964
        %v3042 = vpop.f32.mrf.mxu0
        %v3043 = vadd.f32 0.0, %v3042
        %v3044 = vpop.f32.mrf.mxu0
        %3045 = vmatprep.mubr.f32.mxu0 0.0
        %3046 = vmatmul.mubr.f32.gmra.mxu0 %v2966
        %v3047 = vpop.f32.mrf.mxu0
        %v3048 = vadd.f32 0.0, %v3047
        %v3049 = vpop.f32.mrf.mxu0
        %3050 = vmatprep.mubr.f32.mxu0 0.0
        %3051 = vmatmul.mubr.f32.gmra.mxu0 %v2968
        %v3052 = vpop.f32.mrf.mxu0
        %v3053 = vadd.f32 0.0, %v3052
        %v3054 = vpop.f32.mrf.mxu0
        %3055 = vdwg.mxu0
        %v3056 = vsel %vm832, %v3043, -inf
        %3057 = vmax.xlane.f32.xlu0 %v3056
        %v3058 = vpop.xlane.xlu0 %3057
        %v3059 = vsel %vm832, %v3048, -inf
        %3060 = vmax.xlane.f32.xlu0 %v3059
        %v3061 = vpop.xlane.xlu0 %3060
        %v3062 = vsel %vm839, %v3053, -inf
        %3063 = vmax.xlane.f32.xlu0 %v3062
        %v3064 = vpop.xlane.xlu0 %3063
        %v3065 = vsub.f32 %v3043, %v3058
        %v3066 = vsub.f32 %v3048, %v3061
        %v3067 = vsub.f32 %v3053, %v3064
        %v3068 = vmul.f32 %v3065, 1.442695
        %v3069 = vpow.pop %v3068
        %v3070 = vmul.f32 %v3066, 1.442695
        %v3071 = vpow.pop %v3070
        %v3072 = vmul.f32 %v3067, 1.442695
        %v3073 = vpow.pop %v3072
        %v3074 = vsel %vm832, %v3069, 0.0
        %3075 = vadd.xlane.f32.xlu0 %v3074
        %v3076 = vpop.xlane.xlu0 %3075
        %v3077 = vsel %vm832, %v3071, 0.0
        %3078 = vadd.xlane.f32.xlu0 %v3077
        %v3079 = vpop.xlane.xlu0 %3078
        %v3080 = vsel %vm839, %v3073, 0.0
        %3081 = vadd.xlane.f32.xlu0 %v3080
        %v3082 = vpop.xlane.xlu0 %3081
        %v3083 = vrcp.pop %v3076
        %v3084 = vrcp.pop %v3079
        %v3085 = vrcp.pop %v3082
        %v3086 = vmul.f32 %v3069, %v3083
        %v3087 = vmul.f32 %v3071, %v3084
        %v3088 = vmul.f32 %v3073, %v3085
        %3089 = vrot.lane.b32.xlu0 %v2234, 40
        %v3090 = vpop.permute.xlu0 %3089
        %3091 = vrot.lane.b32.xlu0 %v2239, 40
        %v3092 = vpop.permute.xlu0 %3091
        %3093 = vrot.lane.b32.xlu0 %v2244, 40
        %v3094 = vpop.permute.xlu0 %3093
        %v3098 = vsel %vm832, %v3086, 0
        %v3101 = vsel %vm832, %v3087, 0
        %v3104 = vsel %vm832, %v3088, 0
        %v3106 = vsel %vm572, %v3094, 0
        %3108 = vmatprep.subr.mxu0 0.0
        %3109 = vmatpush1.msra.mxu0 0.0
        %3110 = vmatprep.subr.mxu0 0.0
        %3111 = vmatpush1.msra.mxu0 0.0
        %3112 = vmatprep.subr.mxu0 0.0
        %3113 = vmatpush1.msra.mxu0 0.0
        %3114 = vmatprep.subr.mxu0 0.0
        %3115 = vmatpush1.msra.mxu0 0.0
        %3116 = vmatprep.subr.mxu0 0.0
        %3117 = vmatpush1.msra.mxu0 0.0
        %3118 = vmatprep.subr.mxu0 0.0
        %3119 = vmatpush1.msra.mxu0 0.0
        %3120 = vmatprep.subr.mxu0 0.0
        %3121 = vmatpush1.msra.mxu0 0.0
        %3122 = vmatprep.subr.mxu0 0.0
        %3123 = vmatpush1.msra.mxu0 0.0
        %3124 = vmatprep.subr.mxu0 0.0
        %3125 = vmatpush1.msra.mxu0 0.0
        %3126 = vmatprep.subr.mxu0 0.0
        %3127 = vmatpush1.msra.mxu0 0.0
        %3128 = vmatprep.subr.mxu0 0.0
        %3129 = vmatpush1.msra.mxu0 0.0
        %3130 = vmatprep.subr.mxu0 0.0
        %3131 = vmatpush1.msra.mxu0 0.0
        %3132 = vmatprep.subr.mxu0 0.0
        %3133 = vmatpush1.msra.mxu0 0.0
        %3134 = vmatprep.subr.mxu0 0.0
        %3135 = vmatpush1.msra.mxu0 %v3106
        %3136 = vmatprep.subr.mxu0 0.0
        %3137 = vmatpush1.msra.mxu0 %v3092
        %3138 = vmatprep.subr.mxu0 0.0
        %3139 = vmatpush1.msra.mxu0 %v3090
        %3140 = vmatprep.subr.mxu0 0.0
        %3141 = vmatpush2.msra.mxu0 0.0
        %3142 = vmatprep.subr.mxu0 0.0
        %3143 = vmatpush2.msra.mxu0 0.0
        %3144 = vmatprep.subr.mxu0 0.0
        %3145 = vmatpush2.msra.mxu0 0.0
        %3146 = vmatprep.subr.mxu0 0.0
        %3147 = vmatpush2.msra.mxu0 0.0
        %3148 = vmatprep.subr.mxu0 0.0
        %3149 = vmatpush2.msra.mxu0 0.0
        %3150 = vmatprep.subr.mxu0 0.0
        %3151 = vmatpush2.msra.mxu0 0.0
        %3152 = vmatprep.subr.mxu0 0.0
        %3153 = vmatpush2.msra.mxu0 0.0
        %3154 = vmatprep.subr.mxu0 0.0
        %3155 = vmatpush2.msra.mxu0 0.0
        %3156 = vmatprep.subr.mxu0 0.0
        %3157 = vmatpush2.msra.mxu0 0.0
        %3158 = vmatprep.subr.mxu0 0.0
        %3159 = vmatpush2.msra.mxu0 0.0
        %3160 = vmatprep.subr.mxu0 0.0
        %3161 = vmatpush2.msra.mxu0 0.0
        %3162 = vmatprep.subr.mxu0 0.0
        %3163 = vmatpush2.msra.mxu0 0.0
        %3164 = vmatprep.subr.mxu0 0.0
        %3165 = vmatpush2.msra.mxu0 0.0
        %3166 = vmatprep.subr.mxu0 0.0
        %3167 = vmatpush2.msra.mxu0 0.0
        %3168 = vmatprep.subr.mxu0 0.0
        %3169 = vmatpush2.msra.mxu0 0.0
        %3170 = vmatprep.subr.mxu0 0.0
        %3171 = vmatpush2.msra.mxu0 0.0
        %3172 = vmatprep.mubr.f32.mxu0 0.0
        %3173 = vmatmul.mubr.f32.gmra.mxu0 %v3098
        %v3174 = vpop.f32.mrf.mxu0
        %v3175 = vadd.f32 0.0, %v3174
        %v3176 = vpop.f32.mrf.mxu0
        %3177 = vmatprep.mubr.f32.mxu0 0.0
        %3178 = vmatmul.mubr.f32.gmra.mxu0 %v3101
        %v3179 = vpop.f32.mrf.mxu0
        %v3180 = vadd.f32 0.0, %v3179
        %v3181 = vpop.f32.mrf.mxu0
        %3182 = vmatprep.mubr.f32.mxu0 0.0
        %3183 = vmatmul.mubr.f32.gmra.mxu0 %v3104
        %v3184 = vpop.f32.mrf.mxu0
        %v3185 = vadd.f32 0.0, %v3184
        %v3186 = vpop.f32.mrf.mxu0
        %3187 = vdwg.mxu0
        %3191 = vrot.lane.b32.xlu0 %v2703, 8
        %v3192 = vpop.permute.xlu0 %3191
        %3193 = vrot.lane.b32.xlu0 %v2708, 8
        %v3194 = vpop.permute.xlu0 %3193
        %3195 = vrot.lane.b32.xlu0 %v2713, 8
        %v3196 = vpop.permute.xlu0 %3195
        %3203 = vrot.lane.b32.xlu0 %v2939, 16
        %v3204 = vpop.permute.xlu0 %3203
        %3205 = vrot.lane.b32.xlu0 %v2944, 16
        %v3206 = vpop.permute.xlu0 %3205
        %3207 = vrot.lane.b32.xlu0 %v2949, 16
        %v3208 = vpop.permute.xlu0 %3207
        %3215 = vrot.lane.b32.xlu0 %v3175, 24
        %v3216 = vpop.permute.xlu0 %3215
        %3217 = vrot.lane.b32.xlu0 %v3180, 24
        %v3218 = vpop.permute.xlu0 %3217
        %3219 = vrot.lane.b32.xlu0 %v3185, 24
        %v3220 = vpop.permute.xlu0 %3219
        %v3224 = vsel %vm739, %v2467, %v3192
        %v3225 = vsel %vm739, %v2472, %v3194
        %v3226 = vsel %vm739, %v2477, %v3196
        %v3227 = vsel %vm1713, %v3224, %v3204
        %v3228 = vsel %vm1713, %v3225, %v3206
        %v3229 = vsel %vm1713, %v3226, %v3208
        %v3230 = vsel %vm1717, %v3227, %v3216
        %v3231 = vsel %vm1717, %v3228, %v3218
        %v3232 = vsel %vm1717, %v3229, %v3220
        %s3233 = scalar_lea.vmem %s7, 96
        %v3234 = vld [vmem:[%s3233] sm:$0xff]
        %v3235 = vld [vmem:[%s3233 + $0x8] sm:$0xff]
        %v3236 = vld [vmem:[%s3233 + $0x10] sm:$0xff]
        %v3237 = vld [vmem:[%s3233 + $0x18] sm:$0xff]
        %v3238 = vld [vmem:[%s3233 + $0x20] sm:$0xff]
        %v3239 = vld [vmem:[%s3233 + $0x28] sm:$0xff]
        %v3240 = vld [vmem:[%s3233 + $0x30] sm:$0xff]
        %v3241 = vld [vmem:[%s3233 + $0x38] sm:$0xff]
        %v3242 = vld [vmem:[%s3233 + $0x40] sm:$0xff]
        %v3243 = vld [vmem:[%s3233 + $0x48] sm:$0xff]
        %v3244 = vld [vmem:[%s3233 + $0x50] sm:$0xff]
        %v3245 = vld [vmem:[%s3233 + $0x58] sm:$0xff]
        %v3247 = vsel %vm581, %v3230, 0
        %v3250 = vsel %vm581, %v3231, 0
        %v3253 = vsel %vm581, %v3232, 0
        %3255 = vmatprep.subr.mxu0 0.0
        %3256 = vmatpush1.msra.mxu0 0.0
        %3257 = vmatprep.subr.mxu0 0.0
        %3258 = vmatpush1.msra.mxu0 0.0
        %3259 = vmatprep.subr.mxu0 0.0
        %3260 = vmatpush1.msra.mxu0 0.0
        %3261 = vmatprep.subr.mxu0 0.0
        %3262 = vmatpush1.msra.mxu0 0.0
        %3263 = vmatprep.subr.mxu0 0.0
        %3264 = vmatpush1.msra.mxu0 0.0
        %3265 = vmatprep.subr.mxu0 0.0
        %3266 = vmatpush1.msra.mxu0 0.0
        %3267 = vmatprep.subr.mxu0 0.0
        %3268 = vmatpush1.msra.mxu0 0.0
        %3269 = vmatprep.subr.mxu0 0.0
        %3270 = vmatpush1.msra.mxu0 0.0
        %3271 = vmatprep.subr.mxu0 0.0
        %3272 = vmatpush1.msra.mxu0 0.0
        %3273 = vmatprep.subr.mxu0 0.0
        %3274 = vmatpush1.msra.mxu0 0.0
        %3275 = vmatprep.subr.mxu0 0.0
        %3276 = vmatpush1.msra.mxu0 0.0
        %3277 = vmatprep.subr.mxu0 0.0
        %3278 = vmatpush1.msra.mxu0 0.0
        %3279 = vmatprep.subr.mxu0 0.0
        %3280 = vmatpush1.msra.mxu0 %v3237
        %3281 = vmatprep.subr.mxu0 0.0
        %3282 = vmatpush1.msra.mxu0 %v3236
        %3283 = vmatprep.subr.mxu0 0.0
        %3284 = vmatpush1.msra.mxu0 %v3235
        %3285 = vmatprep.subr.mxu0 0.0
        %3286 = vmatpush1.msra.mxu0 %v3234
        %3287 = vmatprep.subr.mxu0 0.0
        %3288 = vmatpush2.msra.mxu0 0.0
        %3289 = vmatprep.subr.mxu0 0.0
        %3290 = vmatpush2.msra.mxu0 0.0
        %3291 = vmatprep.subr.mxu0 0.0
        %3292 = vmatpush2.msra.mxu0 0.0
        %3293 = vmatprep.subr.mxu0 0.0
        %3294 = vmatpush2.msra.mxu0 0.0
        %3295 = vmatprep.subr.mxu0 0.0
        %3296 = vmatpush2.msra.mxu0 0.0
        %3297 = vmatprep.subr.mxu0 0.0
        %3298 = vmatpush2.msra.mxu0 0.0
        %3299 = vmatprep.subr.mxu0 0.0
        %3300 = vmatpush2.msra.mxu0 0.0
        %3301 = vmatprep.subr.mxu0 0.0
        %3302 = vmatpush2.msra.mxu0 0.0
        %3303 = vmatprep.subr.mxu0 0.0
        %3304 = vmatpush2.msra.mxu0 0.0
        %3305 = vmatprep.subr.mxu0 0.0
        %3306 = vmatpush2.msra.mxu0 0.0
        %3307 = vmatprep.subr.mxu0 0.0
        %3308 = vmatpush2.msra.mxu0 0.0
        %3309 = vmatprep.subr.mxu0 0.0
        %3310 = vmatpush2.msra.mxu0 0.0
        %3311 = vmatprep.subr.mxu0 0.0
        %3312 = vmatpush2.msra.mxu0 0.0
        %3313 = vmatprep.subr.mxu0 0.0
        %3314 = vmatpush2.msra.mxu0 0.0
        %3315 = vmatprep.subr.mxu0 0.0
        %3316 = vmatpush2.msra.mxu0 0.0
        %3317 = vmatprep.subr.mxu0 0.0
        %3318 = vmatpush2.msra.mxu0 0.0
        %3319 = vmatprep.mubr.f32.mxu0 0.0
        %3320 = vmatmul.mubr.f32.gmra.mxu0 %v3247
        %v3321 = vpop.f32.mrf.mxu0
        %v3322 = vadd.f32 0.0, %v3321
        %v3323 = vpop.f32.mrf.mxu0
        %3324 = vmatprep.mubr.f32.mxu0 0.0
        %3325 = vmatmul.mubr.f32.gmra.mxu0 %v3250
        %v3326 = vpop.f32.mrf.mxu0
        %v3327 = vadd.f32 0.0, %v3326
        %v3328 = vpop.f32.mrf.mxu0
        %3329 = vmatprep.mubr.f32.mxu0 0.0
        %3330 = vmatmul.mubr.f32.gmra.mxu0 %v3253
        %v3331 = vpop.f32.mrf.mxu0
        %v3332 = vadd.f32 0.0, %v3331
        %v3333 = vpop.f32.mrf.mxu0
        %3334 = vdwg.mxu0
        %v3335 = vadd.f32 %v2095, %v3322
        %v3336 = vadd.f32 %v2096, %v3327
        %v3337 = vadd.f32 %v2097, %v3332
        %v3338 = vlaneseq
        %v3339 = vshrl.u32 %v3338, 7
        %v3340 = vsub.s32 2, %v3339
        %v3341 = vrot.slane %v2099, %v3340
        %v3342 = vadd.f32 %v3335, %v3341
        %v3343 = vadd.f32 %v3336, %v3341
        %v3344 = vadd.f32 %v3337, %v3341
        %v3345 = vsel %vm581, %v3342, 0.0
        %3346 = vadd.xlane.f32.xlu0 %v3345
        %v3347 = vpop.xlane.xlu0 %3346
        %v3348 = vsel %vm581, %v3343, 0.0
        %3349 = vadd.xlane.f32.xlu0 %v3348
        %v3350 = vpop.xlane.xlu0 %3349
        %v3351 = vsel %vm588, %v3344, 0.0
        %3352 = vadd.xlane.f32.xlu0 %v3351
        %v3353 = vpop.xlane.xlu0 %3352
        %v3354 = vmul.f32 %v3347, %v592
        %v3355 = vmul.f32 %v3350, %v592
        %v3356 = vmul.f32 %v3353, %v592
        %v3357 = vsub.f32 %v3342, %v3354
        %v3358 = vsub.f32 %v3343, %v3355
        %v3359 = vsub.f32 %v3344, %v3356
        %v3360 = vmul.f32 %v3357, %v3357
        %v3361 = vmul.f32 %v3358, %v3358
        %v3362 = vmul.f32 %v3359, %v3359
        %v3363 = vsel %vm581, %v3360, 0.0
        %3364 = vadd.xlane.f32.xlu0 %v3363
        %v3365 = vpop.xlane.xlu0 %3364
        %v3366 = vsel %vm581, %v3361, 0.0
        %3367 = vadd.xlane.f32.xlu0 %v3366
        %v3368 = vpop.xlane.xlu0 %3367
        %v3369 = vsel %vm588, %v3362, 0.0
        %3370 = vadd.xlane.f32.xlu0 %v3369
        %v3371 = vpop.xlane.xlu0 %3370
        %v3372 = vmul.f32 %v3365, %v592
        %v3373 = vmul.f32 %v3368, %v592
        %v3374 = vmul.f32 %v3371, %v592
        %v3375 = vadd.f32 %v3372, 1e-05
        %v3376 = vadd.f32 %v3373, 1e-05
        %v3377 = vadd.f32 %v3374, 1e-05
        %v3378 = vrsqrt.pop %v3375
        %v3379 = vrsqrt.pop %v3376
        %v3380 = vrsqrt.pop %v3377
        %v3381 = vmul.f32 %v3357, %v3378
        %v3382 = vmul.f32 %v3358, %v3379
        %v3383 = vmul.f32 %v3359, %v3380
        %v3384 = vlaneseq
        %v3385 = vshrl.u32 %v3384, 7
        %v3386 = vsub.s32 3, %v3385
        %v3387 = vrot.slane %v2099, %v3386
        %v3388 = vmul.f32 %v3381, %v3387
        %v3389 = vmul.f32 %v3382, %v3387
        %v3390 = vmul.f32 %v3383, %v3387
        %v3391 = vlaneseq
        %v3392 = vshrl.u32 %v3391, 7
        %v3393 = vsub.s32 4, %v3392
        %v3394 = vrot.slane %v2099, %v3393
        %v3395 = vadd.f32 %v3388, %v3394
        %v3396 = vadd.f32 %v3389, %v3394
        %v3397 = vadd.f32 %v3390, %v3394
        %s3398 = scalar_lea.vmem %s6, 40
        %v3399 = vld [vmem:[%s3398] sm:$0xff]
        %v3400 = vld [vmem:[%s3398 + $0x8] sm:$0xff]
        %v3401 = vld [vmem:[%s3398 + $0x10] sm:$0xff]
        %v3402 = vld [vmem:[%s3398 + $0x18] sm:$0xff]
        %v3403 = vld [vmem:[%s3398 + $0x20] sm:$0x1]
        %v3404 = vlaneseq
        %v3405 = vshrl.u32 %v3404, 7
        %v3406 = vsub.s32 0, %v3405
        %v3407 = vrot.slane %v3403, %v3406
        %v3409 = vsel %vm581, %v3395, 0
        %v3412 = vsel %vm581, %v3396, 0
        %v3415 = vsel %vm581, %v3397, 0
        %3417 = vmatprep.subr.mxu0 0.0
        %3418 = vmatpush1.msra.mxu0 0.0
        %3419 = vmatprep.subr.mxu0 0.0
        %3420 = vmatpush1.msra.mxu0 0.0
        %3421 = vmatprep.subr.mxu0 0.0
        %3422 = vmatpush1.msra.mxu0 0.0
        %3423 = vmatprep.subr.mxu0 0.0
        %3424 = vmatpush1.msra.mxu0 0.0
        %3425 = vmatprep.subr.mxu0 0.0
        %3426 = vmatpush1.msra.mxu0 0.0
        %3427 = vmatprep.subr.mxu0 0.0
        %3428 = vmatpush1.msra.mxu0 0.0
        %3429 = vmatprep.subr.mxu0 0.0
        %3430 = vmatpush1.msra.mxu0 0.0
        %3431 = vmatprep.subr.mxu0 0.0
        %3432 = vmatpush1.msra.mxu0 0.0
        %3433 = vmatprep.subr.mxu0 0.0
        %3434 = vmatpush1.msra.mxu0 0.0
        %3435 = vmatprep.subr.mxu0 0.0
        %3436 = vmatpush1.msra.mxu0 0.0
        %3437 = vmatprep.subr.mxu0 0.0
        %3438 = vmatpush1.msra.mxu0 0.0
        %3439 = vmatprep.subr.mxu0 0.0
        %3440 = vmatpush1.msra.mxu0 0.0
        %3441 = vmatprep.subr.mxu0 0.0
        %3442 = vmatpush1.msra.mxu0 %v3402
        %3443 = vmatprep.subr.mxu0 0.0
        %3444 = vmatpush1.msra.mxu0 %v3401
        %3445 = vmatprep.subr.mxu0 0.0
        %3446 = vmatpush1.msra.mxu0 %v3400
        %3447 = vmatprep.subr.mxu0 0.0
        %3448 = vmatpush1.msra.mxu0 %v3399
        %3449 = vmatprep.subr.mxu0 0.0
        %3450 = vmatpush2.msra.mxu0 0.0
        %3451 = vmatprep.subr.mxu0 0.0
        %3452 = vmatpush2.msra.mxu0 0.0
        %3453 = vmatprep.subr.mxu0 0.0
        %3454 = vmatpush2.msra.mxu0 0.0
        %3455 = vmatprep.subr.mxu0 0.0
        %3456 = vmatpush2.msra.mxu0 0.0
        %3457 = vmatprep.subr.mxu0 0.0
        %3458 = vmatpush2.msra.mxu0 0.0
        %3459 = vmatprep.subr.mxu0 0.0
        %3460 = vmatpush2.msra.mxu0 0.0
        %3461 = vmatprep.subr.mxu0 0.0
        %3462 = vmatpush2.msra.mxu0 0.0
        %3463 = vmatprep.subr.mxu0 0.0
        %3464 = vmatpush2.msra.mxu0 0.0
        %3465 = vmatprep.subr.mxu0 0.0
        %3466 = vmatpush2.msra.mxu0 0.0
        %3467 = vmatprep.subr.mxu0 0.0
        %3468 = vmatpush2.msra.mxu0 0.0
        %3469 = vmatprep.subr.mxu0 0.0
        %3470 = vmatpush2.msra.mxu0 0.0
        %3471 = vmatprep.subr.mxu0 0.0
        %3472 = vmatpush2.msra.mxu0 0.0
        %3473 = vmatprep.subr.mxu0 0.0
        %3474 = vmatpush2.msra.mxu0 0.0
        %3475 = vmatprep.subr.mxu0 0.0
        %3476 = vmatpush2.msra.mxu0 0.0
        %3477 = vmatprep.subr.mxu0 0.0
        %3478 = vmatpush2.msra.mxu0 0.0
        %3479 = vmatprep.subr.mxu0 0.0
        %3480 = vmatpush2.msra.mxu0 0.0
        %3481 = vmatprep.mubr.f32.mxu0 0.0
        %3482 = vmatmul.mubr.f32.gmra.mxu0 %v3409
        %v3483 = vpop.f32.mrf.mxu0
        %v3484 = vadd.f32 %v3407, %v3483
        %v3485 = vpop.f32.mrf.mxu0
        %3486 = vmatprep.mubr.f32.mxu0 0.0
        %3487 = vmatmul.mubr.f32.gmra.mxu0 %v3412
        %v3488 = vpop.f32.mrf.mxu0
        %v3489 = vadd.f32 %v3407, %v3488
        %v3490 = vpop.f32.mrf.mxu0
        %3491 = vmatprep.mubr.f32.mxu0 0.0
        %3492 = vmatmul.mubr.f32.gmra.mxu0 %v3415
        %v3493 = vpop.f32.mrf.mxu0
        %v3494 = vadd.f32 %v3407, %v3493
        %v3495 = vpop.f32.mrf.mxu0
        %3496 = vdwg.mxu0
        %v3497 = vmul.f32 %v3484, 0.5
        %v3498 = vmul.f32 %v3489, 0.5
        %v3499 = vmul.f32 %v3494, 0.5
        %v3500 = vmul.f32 %v3484, 0.70710677
        %v3501 = vmul.f32 %v3489, 0.70710677
        %v3502 = vmul.f32 %v3494, 0.70710677
        %v3503 = verf.f32.pop %v3500
        %v3504 = verf.f32.pop %v3501
        %v3505 = verf.f32.pop %v3502
        %v3506 = vadd.f32 %v3503, 1.0
        %v3507 = vadd.f32 %v3504, 1.0
        %v3508 = vadd.f32 %v3505, 1.0
        %v3509 = vmul.f32 %v3497, %v3506
        %v3510 = vmul.f32 %v3498, %v3507
        %v3511 = vmul.f32 %v3499, %v3508
        %v3513 = vsel %vm1998, %v3509, 0
        %v3516 = vsel %vm1998, %v3510, 0
        %v3519 = vsel %vm1998, %v3511, 0
        %3521 = vmatprep.subr.mxu0 0.0
        %3522 = vmatpush1.msra.mxu0 0.0
        %3523 = vmatprep.subr.mxu0 0.0
        %3524 = vmatpush1.msra.mxu0 0.0
        %3525 = vmatprep.subr.mxu0 0.0
        %3526 = vmatpush1.msra.mxu0 0.0
        %3527 = vmatprep.subr.mxu0 0.0
        %3528 = vmatpush1.msra.mxu0 0.0
        %3529 = vmatprep.subr.mxu0 0.0
        %3530 = vmatpush1.msra.mxu0 0.0
        %3531 = vmatprep.subr.mxu0 0.0
        %3532 = vmatpush1.msra.mxu0 0.0
        %3533 = vmatprep.subr.mxu0 0.0
        %3534 = vmatpush1.msra.mxu0 0.0
        %3535 = vmatprep.subr.mxu0 0.0
        %3536 = vmatpush1.msra.mxu0 0.0
        %3537 = vmatprep.subr.mxu0 0.0
        %3538 = vmatpush1.msra.mxu0 %v3245
        %3539 = vmatprep.subr.mxu0 0.0
        %3540 = vmatpush1.msra.mxu0 %v3244
        %3541 = vmatprep.subr.mxu0 0.0
        %3542 = vmatpush1.msra.mxu0 %v3243
        %3543 = vmatprep.subr.mxu0 0.0
        %3544 = vmatpush1.msra.mxu0 %v3242
        %3545 = vmatprep.subr.mxu0 0.0
        %3546 = vmatpush1.msra.mxu0 %v3241
        %3547 = vmatprep.subr.mxu0 0.0
        %3548 = vmatpush1.msra.mxu0 %v3240
        %3549 = vmatprep.subr.mxu0 0.0
        %3550 = vmatpush1.msra.mxu0 %v3239
        %3551 = vmatprep.subr.mxu0 0.0
        %3552 = vmatpush1.msra.mxu0 %v3238
        %3553 = vmatprep.subr.mxu0 0.0
        %3554 = vmatpush2.msra.mxu0 0.0
        %3555 = vmatprep.subr.mxu0 0.0
        %3556 = vmatpush2.msra.mxu0 0.0
        %3557 = vmatprep.subr.mxu0 0.0
        %3558 = vmatpush2.msra.mxu0 0.0
        %3559 = vmatprep.subr.mxu0 0.0
        %3560 = vmatpush2.msra.mxu0 0.0
        %3561 = vmatprep.subr.mxu0 0.0
        %3562 = vmatpush2.msra.mxu0 0.0
        %3563 = vmatprep.subr.mxu0 0.0
        %3564 = vmatpush2.msra.mxu0 0.0
        %3565 = vmatprep.subr.mxu0 0.0
        %3566 = vmatpush2.msra.mxu0 0.0
        %3567 = vmatprep.subr.mxu0 0.0
        %3568 = vmatpush2.msra.mxu0 0.0
        %3569 = vmatprep.subr.mxu0 0.0
        %3570 = vmatpush2.msra.mxu0 0.0
        %3571 = vmatprep.subr.mxu0 0.0
        %3572 = vmatpush2.msra.mxu0 0.0
        %3573 = vmatprep.subr.mxu0 0.0
        %3574 = vmatpush2.msra.mxu0 0.0
        %3575 = vmatprep.subr.mxu0 0.0
        %3576 = vmatpush2.msra.mxu0 0.0
        %3577 = vmatprep.subr.mxu0 0.0
        %3578 = vmatpush2.msra.mxu0 0.0
        %3579 = vmatprep.subr.mxu0 0.0
        %3580 = vmatpush2.msra.mxu0 0.0
        %3581 = vmatprep.subr.mxu0 0.0
        %3582 = vmatpush2.msra.mxu0 0.0
        %3583 = vmatprep.subr.mxu0 0.0
        %3584 = vmatpush2.msra.mxu0 0.0
        %3585 = vmatprep.mubr.f32.mxu0 0.0
        %3586 = vmatmul.mubr.f32.gmra.mxu0 %v3513
        %v3587 = vpop.f32.mrf.mxu0
        %v3588 = vadd.f32 0.0, %v3587
        %v3589 = vpop.f32.mrf.mxu0
        %3590 = vmatprep.mubr.f32.mxu0 0.0
        %3591 = vmatmul.mubr.f32.gmra.mxu0 %v3516
        %v3592 = vpop.f32.mrf.mxu0
        %v3593 = vpop.f32.mrf.mxu0
        %3594 = vmatprep.mubr.f32.mxu0 0.0
        %3595 = vmatmul.mubr.f32.gmra.mxu0 %v3519
        %v3596 = vpop.f32.mrf.mxu0
        %v3597 = vpop.f32.mrf.mxu0
        %3598 = vdwg.mxu0
        %v3599 = vadd.f32 %v3342, %v3588
        %v3600 = vlaneseq
        %v3601 = vshrl.u32 %v3600, 7
        %v3602 = vsub.s32 5, %v3601
        %v3603 = vrot.slane %v2099, %v3602
        %v3604 = vadd.f32 %v3599, %v3603
        %v3605 = vld [vmem:[%s8] sm:$0x3]
        %v3606 = vsel %vm588, %v3604, 0.0
        %3607 = vadd.xlane.f32.xlu0 %v3606
        %v3608 = vpop.xlane.xlu0 %3607
        %v3609 = vmul.f32 %v3608, %v592
        %v3610 = vsub.f32 %v3604, %v3609
        %v3611 = vmul.f32 %v3610, %v3610
        %v3612 = vsel %vm588, %v3611, 0.0
        %3613 = vadd.xlane.f32.xlu0 %v3612
        %v3614 = vpop.xlane.xlu0 %3613
        %v3615 = vmul.f32 %v3614, %v592
        %v3616 = vadd.f32 %v3615, 1e-05
        %v3617 = vrsqrt.pop %v3616
        %v3618 = vmul.f32 %v3610, %v3617
        %v3619 = vmul.f32 %v3618, %v3605
        %v3621 = vrot.slane %v3605, 1
        %v3623 = vadd.f32 %v3619, %v3621
        %v3624 = vld [vmem:[%s9] sm:$0xff]
        %v3625 = vld [vmem:[%s9 + $0x8] sm:$0xff]
        %v3626 = vld [vmem:[%s9 + $0x10] sm:$0xff]
        %v3627 = vld [vmem:[%s9 + $0x18] sm:$0xff]
        %v3628 = vld [vmem:[%s9 + $0x20] sm:$0x1]
        %v3630 = vsel %vm581, %v3623, 0
        %3632 = vmatprep.subr.mxu0 0.0
        %3633 = vmatpush1.msra.mxu0 0.0
        %3634 = vmatprep.subr.mxu0 0.0
        %3635 = vmatpush1.msra.mxu0 0.0
        %3636 = vmatprep.subr.mxu0 0.0
        %3637 = vmatpush1.msra.mxu0 0.0
        %3638 = vmatprep.subr.mxu0 0.0
        %3639 = vmatpush1.msra.mxu0 0.0
        %3640 = vmatprep.subr.mxu0 0.0
        %3641 = vmatpush1.msra.mxu0 0.0
        %3642 = vmatprep.subr.mxu0 0.0
        %3643 = vmatpush1.msra.mxu0 0.0
        %3644 = vmatprep.subr.mxu0 0.0
        %3645 = vmatpush1.msra.mxu0 0.0
        %3646 = vmatprep.subr.mxu0 0.0
        %3647 = vmatpush1.msra.mxu0 0.0
        %3648 = vmatprep.subr.mxu0 0.0
        %3649 = vmatpush1.msra.mxu0 0.0
        %3650 = vmatprep.subr.mxu0 0.0
        %3651 = vmatpush1.msra.mxu0 0.0
        %3652 = vmatprep.subr.mxu0 0.0
        %3653 = vmatpush1.msra.mxu0 0.0
        %3654 = vmatprep.subr.mxu0 0.0
        %3655 = vmatpush1.msra.mxu0 0.0
        %3656 = vmatprep.subr.mxu0 0.0
        %3657 = vmatpush1.msra.mxu0 %v3627
        %3658 = vmatprep.subr.mxu0 0.0
        %3659 = vmatpush1.msra.mxu0 %v3626
        %3660 = vmatprep.subr.mxu0 0.0
        %3661 = vmatpush1.msra.mxu0 %v3625
        %3662 = vmatprep.subr.mxu0 0.0
        %3663 = vmatpush1.msra.mxu0 %v3624
        %3664 = vmatprep.subr.mxu0 0.0
        %3665 = vmatpush2.msra.mxu0 0.0
        %3666 = vmatprep.subr.mxu0 0.0
        %3667 = vmatpush2.msra.mxu0 0.0
        %3668 = vmatprep.subr.mxu0 0.0
        %3669 = vmatpush2.msra.mxu0 0.0
        %3670 = vmatprep.subr.mxu0 0.0
        %3671 = vmatpush2.msra.mxu0 0.0
        %3672 = vmatprep.subr.mxu0 0.0
        %3673 = vmatpush2.msra.mxu0 0.0
        %3674 = vmatprep.subr.mxu0 0.0
        %3675 = vmatpush2.msra.mxu0 0.0
        %3676 = vmatprep.subr.mxu0 0.0
        %3677 = vmatpush2.msra.mxu0 0.0
        %3678 = vmatprep.subr.mxu0 0.0
        %3679 = vmatpush2.msra.mxu0 0.0
        %3680 = vmatprep.subr.mxu0 0.0
        %3681 = vmatpush2.msra.mxu0 0.0
        %3682 = vmatprep.subr.mxu0 0.0
        %3683 = vmatpush2.msra.mxu0 0.0
        %3684 = vmatprep.subr.mxu0 0.0
        %3685 = vmatpush2.msra.mxu0 0.0
        %3686 = vmatprep.subr.mxu0 0.0
        %3687 = vmatpush2.msra.mxu0 0.0
        %3688 = vmatprep.subr.mxu0 0.0
        %3689 = vmatpush2.msra.mxu0 0.0
        %3690 = vmatprep.subr.mxu0 0.0
        %3691 = vmatpush2.msra.mxu0 0.0
        %3692 = vmatprep.subr.mxu0 0.0
        %3693 = vmatpush2.msra.mxu0 0.0
        %3694 = vmatprep.subr.mxu0 0.0
        %3695 = vmatpush2.msra.mxu0 0.0
        %3696 = vmatprep.mubr.f32.mxu0 0.0
        %3697 = vmatmul.mubr.f32.gmra.mxu0 %v3630
        %v3698 = vpop.f32.mrf.mxu0
        %v3699 = vadd.f32 %v3628, %v3698
        %v3700 = vpop.f32.mrf.mxu0
        %3701 = vdwg.mxu0
        %vm3702 = vcmask 73728
        %3703 = vst.msk [vmem:[%s351] sm:$0x1] %vm3702, %v3699
        %s3704 = sand.u32 %s247, 1
        %s3705 = scalar_lea.sflag [#allocation3], %s3704
        %s3706 = sand.u32 %s247, 1
        %s3707 = scalar_lea.vmem [#allocation2], %s3706
        // Predicated region
        $region61: #{git_forward.1} parent=59 // pred_check
          %p3708 = pneg %p257
        $region62: #{git_forward.1} parent=59 // pred_check_branch
          %3710 = sbr.rel (%p3708) target = $region64
        $region63: #{git_forward.1} parent=59 // pred_region
          %s3712 = ssub.s32 16, 16
          %3713 = vsyncadd %s3705, %s3712
          %s3714 = smul.addr %s24, 16
          %s3715 = scalar_lea.hbm %s10, %s3714
          %s3717 = sshll.u32 %s3707, 4
          %s3718 = int_to_ptr.vmem [resolvable:$true] %s3717
          %3720 = dma.vmem_to_hbm [thread:$0]  %s3718, 16, %s3715, %s3705
        $region64: #{git_forward.1} parent=59 // pred_fallthru
          _
      $region60: #{git_forward.1} parent=5 // pred_fallthru
        _
      %p3721 = scmp.le.s32.totalorder 2, %s19
      // Predicated region
      $region65: #{git_forward.1} parent=5 // pred_check
        %p3722 = pneg %p3721
      $region66: #{git_forward.1} parent=5 // pred_check_branch
        %3724 = sbr.rel (%p3722) target = $region68
      $region67: #{git_forward.1} parent=5 // pred_region
        %s3725 = ssub.s32 %s19, 2
        // Predicated region
        $region69: #{git_forward.1} parent=67 // pred_check
          %p3726 = pneg %p263
        $region70: #{git_forward.1} parent=67 // pred_check_branch
          %3728 = sbr.rel (%p3726) target = $region72
        $region71: #{git_forward.1} parent=67 // pred_region
          %s3729 = sand.u32 %s248, 1
          %s3730 = scalar_lea.sflag [#allocation3], %s3729
          %s3731 = sand.u32 %s248, 1
          %s3732 = scalar_lea.vmem [#allocation2], %s3731
          %3733 = dma.done %s3730, 16
        $region72: #{git_forward.1} parent=67 // pred_fallthru
          _
      $region68: #{git_forward.1} parent=5 // pred_fallthru
        _
    $region6: #{git_forward.1} parent=1 // loop_footer
      %s23 = sadd.s32 1, %s19
    $region7: #{git_forward.1} parent=1 // loop_footer_branch
      %18 = sbr.rel target = $region3
    $region8: #{git_forward.1} parent=1 // loop_exit
      _
    %3734 = vsyncpa [#allocation3], 1
    %s3735 = scalar_lea.sflag [#allocation3], 1
    %3736 = vsyncpa %s3735, 1

</llo_original>
